<compile_context>
chip_gen: v6e
topology: v6e:2x2x1
jax: 0.10.0
libtpu: 0.0.40
codegen_flags: <defaults>
</compile_context>

<pallas_src>
import math

import jax
import jax.numpy as jnp
from jax.experimental import pallas as pl
from jax.experimental.pallas import tpu as pltpu

# ----------------------------- model config (small, synthetic) -----------------------------
BATCH = 2
SEQ = 8
VOCAB = 64
HIDDEN = 32
NUM_HEADS = 4
HEAD_DIM = HIDDEN // NUM_HEADS
INTERMEDIATE = 4 * HIDDEN          # 128
NUM_LAYERS = 2
MAX_POS = 32
PAD_ID = 1                          # RoBERTa padding_idx
LN_EPS = 1e-5
QKV_PAD = 128                       # 3*HIDDEN = 96 zero-padded to 128 lanes
MASK_NEG = -1e9                     # finite additive mask (avoids -inf / NaN corner cases)


# --------------------------------- in-kernel helper math -----------------------------------
def _layernorm(x, g, b):
    mu = jnp.mean(x, axis=-1, keepdims=True)
    d = x - mu
    var = jnp.mean(d * d, axis=-1, keepdims=True)
    return d * jax.lax.rsqrt(var + LN_EPS) * g + b


def _gelu(y):
    # TODO(synk): HF (XLM-)RoBERTa uses exact erf GELU; tanh approximation used here.
    return 0.5 * y * (1.0 + jnp.tanh(0.7978845608028654 * (y + 0.044715 * y * y * y)))


# ------------------------------------ fused Pallas kernel ----------------------------------
def _roberta_xlm_kernel(
    emb_ref, addmask_ref, emb_lng_ref, emb_lnb_ref,
    wqkv_ref, bqkv_ref, wo_ref, bo_ref, ln1g_ref, ln1b_ref,
    wi_ref, bi_ref, wo2_ref, bo2_ref, ln2g_ref, ln2b_ref,
    poolw_ref, poolb_ref, l3w_ref, l3b_ref,
    out_ref,
    qkv_ref, buf_ref,
):
    scale = 1.0 / math.sqrt(HEAD_DIM)

    # --- embedding LayerNorm (no dummy residual) ---
    x = _layernorm(emb_ref[...], emb_lng_ref[...], emb_lnb_ref[...])

    # --- encoder layers (static unroll; everything stays in VMEM / vregs) ---
    for l in range(NUM_LAYERS):
        # fused Q|K|V projection: one lane-dense [H, 128] matmul (zero-padded 96 -> 128)
        qkv_ref[...] = (jnp.dot(x, wqkv_ref[l], preferred_element_type=jnp.float32)
                        + bqkv_ref[l])

        # multi-head self-attention, one (batch, head) [S, Dh] tile at a time
        for b in range(BATCH):
            r0 = b * SEQ
            m_b = addmask_ref[b:b + 1, :]                               # [1, S] additive mask
            for h in range(NUM_HEADS):
                c = h * HEAD_DIM
                q = qkv_ref[r0:r0 + SEQ, c:c + HEAD_DIM]                # [S, Dh]
                k = qkv_ref[r0:r0 + SEQ, HIDDEN + c:HIDDEN + c + HEAD_DIM]
                v = qkv_ref[r0:r0 + SEQ, 2 * HIDDEN + c:2 * HIDDEN + c + HEAD_DIM]
                s = jnp.einsum("qd,kd->qk", q, k,
                               preferred_element_type=jnp.float32) * scale + m_b
                s = s - jnp.max(s, axis=-1, keepdims=True)
                p = jnp.exp(s)
                p = p * pl.reciprocal(jnp.sum(p, axis=-1, keepdims=True), approx=True)
                buf_ref[r0:r0 + SEQ, c:c + HEAD_DIM] = jnp.dot(
                    p, v, preferred_element_type=jnp.float32)

        attn = (jnp.dot(buf_ref[...], wo_ref[l], preferred_element_type=jnp.float32)
                + bo_ref[l])
        x = _layernorm(attn + x, ln1g_ref[l], ln1b_ref[l])

        inter = _gelu(jnp.dot(x, wi_ref[l], preferred_element_type=jnp.float32)
                      + bi_ref[l])
        ffn = (jnp.dot(inter, wo2_ref[l], preferred_element_type=jnp.float32)
               + bo2_ref[l])
        x = _layernorm(ffn + x, ln2g_ref[l], ln2b_ref[l])

    # --- pooler: dense + tanh on the <s> (first) token; Dropout(0.3) is an inference no-op;
    #     l3: Linear(H, 1); l4: Sigmoid ---
    buf_ref[...] = x
    for b in range(BATCH):
        cls = buf_ref[b * SEQ:b * SEQ + 1, :]                           # [1, H]
        pooled = jnp.tanh(jnp.dot(cls, poolw_ref[...],
                                  preferred_element_type=jnp.float32) + poolb_ref[...])
        logit = jnp.sum(pooled * l3w_ref[...], axis=-1, keepdims=True) + l3b_ref[...]
        out_ref[b:b + 1, :] = jax.nn.sigmoid(logit)


# -------------------------------- parameter initialization --------------------------------
def init_params(key):
    std = 0.02
    L, H, I = NUM_LAYERS, HIDDEN, INTERMEDIATE

    def nrm(k, shape):
        return std * jax.random.normal(k, shape, dtype=jnp.float32)

    keys = jax.random.split(key, 11)
    # fused Q|K|V weight, zero-padded on the output (lane) axis to 128
    wq, wk, wv = nrm(keys[0], (L, H, H)), nrm(keys[1], (L, H, H)), nrm(keys[2], (L, H, H))
    wqkv = jnp.concatenate([wq, wk, wv], axis=-1)                       # [L, H, 3H]
    wqkv = jnp.pad(wqkv, ((0, 0), (0, 0), (0, QKV_PAD - 3 * H)))        # [L, H, 128]

    return {
        "word_emb": nrm(keys[3], (VOCAB, H)),
        "pos_emb": nrm(keys[4], (MAX_POS, H)),
        "type_emb": nrm(keys[5], (1, H)),                               # type_vocab_size = 1
        "emb_ln_g": jnp.ones((1, H), jnp.float32),
        "emb_ln_b": jnp.zeros((1, H), jnp.float32),
        "wqkv": wqkv,
        "bqkv": jnp.zeros((L, 1, QKV_PAD), jnp.float32),
        "wo": nrm(keys[6], (L, H, H)),  "bo": jnp.zeros((L, 1, H), jnp.float32),
        "ln1_g": jnp.ones((L, 1, H), jnp.float32), "ln1_b": jnp.zeros((L, 1, H), jnp.float32),
        "wi": nrm(keys[7], (L, H, I)),  "bi": jnp.zeros((L, 1, I), jnp.float32),
        "wo2": nrm(keys[8], (L, I, H)), "bo2": jnp.zeros((L, 1, H), jnp.float32),
        "ln2_g": jnp.ones((L, 1, H), jnp.float32), "ln2_b": jnp.zeros((L, 1, H), jnp.float32),
        "pool_w": nrm(keys[9], (H, H)), "pool_b": jnp.zeros((1, H), jnp.float32),
        "l3_w": nrm(keys[10], (1, H)),  "l3_b": jnp.zeros((1, 1), jnp.float32),
    }


# -------------------------------------- forward pass --------------------------------------
@jax.jit
def roberta_xlm_forward(params, ids, mask, token_type_ids):
    B, S = ids.shape
    H = HIDDEN

    # --- RoBERTa embeddings (table gathers are plain-JAX glue) ---
    not_pad = (ids != PAD_ID).astype(jnp.int32)
    position_ids = jnp.cumsum(not_pad, axis=1) * not_pad + PAD_ID       # RoBERTa position ids
    emb = (params["word_emb"][ids]
           + params["pos_emb"][position_ids]
           + params["type_emb"][token_type_ids])
    emb = emb.reshape(B * S, H).astype(jnp.float32)

    # extended additive attention mask (large finite negative, broadcast over queries)
    addmask = (1.0 - mask.astype(jnp.float32)) * MASK_NEG               # [B, S]

    args = (
        emb, addmask,
        params["emb_ln_g"], params["emb_ln_b"],
        params["wqkv"], params["bqkv"],
        params["wo"], params["bo"], params["ln1_g"], params["ln1_b"],
        params["wi"], params["bi"], params["wo2"], params["bo2"],
        params["ln2_g"], params["ln2_b"],
        params["pool_w"], params["pool_b"], params["l3_w"], params["l3_b"],
    )

    vmem_spec = pl.BlockSpec(memory_space=pltpu.MemorySpace.VMEM)
    return pl.pallas_call(
        _roberta_xlm_kernel,
        out_shape=jax.ShapeDtypeStruct((B, 1), jnp.float32),
        in_specs=[vmem_spec] * len(args),
        out_specs=vmem_spec,
        scratch_shapes=[
            pltpu.VMEM((B * S, QKV_PAD), jnp.float32),   # fused QKV projection
            pltpu.VMEM((B * S, H), jnp.float32),         # attention ctx / final hidden states
        ],
    )(*args)


# ------------------------------------------ main -------------------------------------------
if __name__ == "__main__":
    key = jax.random.PRNGKey(0)
    kp, kid = jax.random.split(key)
    params = init_params(kp)

    # deterministic synthetic inputs: token ids in [2, VOCAB); last two tokens of sample 1 padded
    ids = jax.random.randint(kid, (BATCH, SEQ), 2, VOCAB, dtype=jnp.int32)
    mask = jnp.ones((BATCH, SEQ), dtype=jnp.int32)
    ids = ids.at[1, SEQ - 2:].set(PAD_ID)
    mask = mask.at[1, SEQ - 2:].set(0)
    token_type_ids = jnp.zeros((BATCH, SEQ), dtype=jnp.int32)

    out = roberta_xlm_forward(params, ids, mask, token_type_ids)
    out = jax.block_until_ready(out)
    assert out.shape == (BATCH, 1)
    assert bool(jnp.all(jnp.isfinite(out)))
    assert bool(jnp.all((out > 0.0) & (out < 1.0)))
    print("KERNEL_OK")
</pallas_src>

<mosaic_0001>
module attributes {stable_mosaic.version = 11 : i64} {
  func.func @_roberta_xlm_kernel(%arg0: memref<16x32xf32, #tpu.memory_space<vmem>>, %arg1: memref<2x8xf32, #tpu.memory_space<vmem>>, %arg2: memref<1x32xf32, #tpu.memory_space<vmem>>, %arg3: memref<1x32xf32, #tpu.memory_space<vmem>>, %arg4: memref<2x32x128xf32, #tpu.memory_space<vmem>>, %arg5: memref<2x1x128xf32, #tpu.memory_space<vmem>>, %arg6: memref<2x32x32xf32, #tpu.memory_space<vmem>>, %arg7: memref<2x1x32xf32, #tpu.memory_space<vmem>>, %arg8: memref<2x1x32xf32, #tpu.memory_space<vmem>>, %arg9: memref<2x1x32xf32, #tpu.memory_space<vmem>>, %arg10: memref<2x32x128xf32, #tpu.memory_space<vmem>>, %arg11: memref<2x1x128xf32, #tpu.memory_space<vmem>>, %arg12: memref<2x128x32xf32, #tpu.memory_space<vmem>>, %arg13: memref<2x1x32xf32, #tpu.memory_space<vmem>>, %arg14: memref<2x1x32xf32, #tpu.memory_space<vmem>>, %arg15: memref<2x1x32xf32, #tpu.memory_space<vmem>>, %arg16: memref<32x32xf32, #tpu.memory_space<vmem>>, %arg17: memref<1x32xf32, #tpu.memory_space<vmem>>, %arg18: memref<1x32xf32, #tpu.memory_space<vmem>>, %arg19: memref<1x1xf32, #tpu.memory_space<vmem>>, %arg20: memref<2x1xf32, #tpu.memory_space<vmem>>, %arg21: memref<16x128xf32, #tpu.memory_space<vmem>>, %arg22: memref<16x32xf32, #tpu.memory_space<vmem>>) attributes {dimension_semantics = [], scalar_prefetch = 0 : i64, scratch_operands = 2 : i64, tpu.core_type = #tpu.core_type<tc>} {
    %c0 = arith.constant 0 : index
    %c0_0 = arith.constant 0 : index
    %0 = vector.load %arg0[%c0, %c0_0] : memref<16x32xf32, #tpu.memory_space<vmem>>, vector<16x32xf32>
    %c0_1 = arith.constant 0 : index
    %c0_2 = arith.constant 0 : index
    %1 = vector.load %arg2[%c0_1, %c0_2] : memref<1x32xf32, #tpu.memory_space<vmem>>, vector<1x32xf32>
    %c0_3 = arith.constant 0 : index
    %c0_4 = arith.constant 0 : index
    %2 = vector.load %arg3[%c0_3, %c0_4] : memref<1x32xf32, #tpu.memory_space<vmem>>, vector<1x32xf32>
    %cst = arith.constant dense<0.000000e+00> : vector<16xf32>
    %3 = vector.multi_reduction <add>, %0, %cst [1] : vector<16x32xf32> to vector<16xf32>
    %4 = vector.shape_cast %3 : vector<16xf32> to vector<16x1xf32>
    %cst_5 = arith.constant 3.200000e+01 : f32
    %5 = vector.broadcast %cst_5 : f32 to vector<16x1xf32>
    %6 = arith.divf %4, %5 : vector<16x1xf32>
    %7 = vector.broadcast %6 : vector<16x1xf32> to vector<16x32xf32>
    %8 = arith.subf %0, %7 : vector<16x32xf32>
    %9 = arith.mulf %8, %8 : vector<16x32xf32>
    %cst_6 = arith.constant dense<0.000000e+00> : vector<16xf32>
    %10 = vector.multi_reduction <add>, %9, %cst_6 [1] : vector<16x32xf32> to vector<16xf32>
    %11 = vector.shape_cast %10 : vector<16xf32> to vector<16x1xf32>
    %cst_7 = arith.constant 3.200000e+01 : f32
    %12 = vector.broadcast %cst_7 : f32 to vector<16x1xf32>
    %13 = arith.divf %11, %12 : vector<16x1xf32>
    %cst_8 = arith.constant 9.99999974E-6 : f32
    %14 = vector.broadcast %cst_8 : f32 to vector<16x1xf32>
    %15 = arith.addf %13, %14 : vector<16x1xf32>
    %16 = math.rsqrt %15 : vector<16x1xf32>
    %17 = vector.broadcast %16 : vector<16x1xf32> to vector<16x32xf32>
    %18 = arith.mulf %8, %17 : vector<16x32xf32>
    %19 = vector.broadcast %1 : vector<1x32xf32> to vector<16x32xf32>
    %20 = arith.mulf %18, %19 : vector<16x32xf32>
    %21 = vector.broadcast %2 : vector<1x32xf32> to vector<16x32xf32>
    %22 = arith.addf %20, %21 : vector<16x32xf32>
    %c0_9 = arith.constant 0 : index
    %c0_10 = arith.constant 0 : index
    %c0_11 = arith.constant 0 : index
    %23 = vector.load %arg4[%c0_9, %c0_10, %c0_11] : memref<2x32x128xf32, #tpu.memory_space<vmem>>, vector<1x32x128xf32>
    %24 = vector.shape_cast %23 : vector<1x32x128xf32> to vector<32x128xf32>
    %cst_12 = arith.constant dense<0.000000e+00> : vector<16x128xf32>
    %25 = tpu.matmul %22, %24, %cst_12 {dimension_numbers = #tpu.dot_dimension_numbers<[1], [0], [0], [1], [0, 0, 1, 1], [], []>} : vector<16x32xf32>, vector<32x128xf32>, vector<16x128xf32> -> vector<16x128xf32>
    %c0_13 = arith.constant 0 : index
    %c0_14 = arith.constant 0 : index
    %c0_15 = arith.constant 0 : index
    %26 = vector.load %arg5[%c0_13, %c0_14, %c0_15] : memref<2x1x128xf32, #tpu.memory_space<vmem>>, vector<1x1x128xf32>
    %27 = vector.shape_cast %26 : vector<1x1x128xf32> to vector<1x128xf32>
    %28 = vector.broadcast %27 : vector<1x128xf32> to vector<16x128xf32>
    %29 = arith.addf %25, %28 : vector<16x128xf32>
    %c0_16 = arith.constant 0 : index
    %c0_17 = arith.constant 0 : index
    %30 = vector.load %arg21[%c0_16, %c0_17] : memref<16x128xf32, #tpu.memory_space<vmem>>, vector<16x128xf32>
    tpu.vector_store %arg21[%c0_16, %c0_17], %29 {strides = array<i32>} : memref<16x128xf32, #tpu.memory_space<vmem>>, vector<16x128xf32>,
    %c0_18 = arith.constant 0 : index
    %c0_19 = arith.constant 0 : index
    %31 = vector.load %arg1[%c0_18, %c0_19] : memref<2x8xf32, #tpu.memory_space<vmem>>, vector<1x8xf32>
    %c0_20 = arith.constant 0 : index
    %c0_21 = arith.constant 0 : index
    %32 = vector.load %arg21[%c0_20, %c0_21] : memref<16x128xf32, #tpu.memory_space<vmem>>, vector<8x8xf32>
    %c0_22 = arith.constant 0 : index
    %c32 = arith.constant 32 : index
    %33 = vector.load %arg21[%c0_22, %c32] : memref<16x128xf32, #tpu.memory_space<vmem>>, vector<8x8xf32>
    %c0_23 = arith.constant 0 : index
    %c64 = arith.constant 64 : index
    %34 = vector.load %arg21[%c0_23, %c64] : memref<16x128xf32, #tpu.memory_space<vmem>>, vector<8x8xf32>
    "tpu.trace_start"() <{level = 10 : i32, message = "qd,kd->qk"}> : () -> ()
    %cst_24 = arith.constant dense<0.000000e+00> : vector<8x8xf32>
    %35 = tpu.matmul %32, %33, %cst_24 {dimension_numbers = #tpu.dot_dimension_numbers<[1], [1], [0], [0], [0, 0, 1, 0], [], []>} : vector<8x8xf32>, vector<8x8xf32>, vector<8x8xf32> -> vector<8x8xf32>
    "tpu.trace_stop"() : () -> ()
    %cst_25 = arith.constant 0.353553385 : f32
    %36 = vector.broadcast %cst_25 : f32 to vector<8x8xf32>
    %37 = arith.mulf %35, %36 : vector<8x8xf32>
    %38 = vector.broadcast %31 : vector<1x8xf32> to vector<8x8xf32>
    %39 = arith.addf %37, %38 : vector<8x8xf32>
    %cst_26 = arith.constant dense<0xFF800000> : vector<8xf32>
    %40 = vector.multi_reduction <maximumf>, %39, %cst_26 [1] : vector<8x8xf32> to vector<8xf32>
    %41 = vector.shape_cast %40 : vector<8xf32> to vector<8x1xf32>
    %42 = vector.broadcast %41 : vector<8x1xf32> to vector<8x8xf32>
    %43 = arith.subf %39, %42 : vector<8x8xf32>
    %44 = math.exp %43 : vector<8x8xf32>
    %cst_27 = arith.constant dense<0.000000e+00> : vector<8xf32>
    %45 = vector.multi_reduction <add>, %44, %cst_27 [1] : vector<8x8xf32> to vector<8xf32>
    %46 = vector.shape_cast %45 : vector<8xf32> to vector<8x1xf32>
    %47 = tpu.reciprocal %46 {approx = true} : vector<8x1xf32> -> vector<8x1xf32>
    %48 = vector.broadcast %47 : vector<8x1xf32> to vector<8x8xf32>
    %49 = arith.mulf %44, %48 : vector<8x8xf32>
    %cst_28 = arith.constant dense<0.000000e+00> : vector<8x8xf32>
    %50 = tpu.matmul %49, %34, %cst_28 {dimension_numbers = #tpu.dot_dimension_numbers<[1], [0], [0], [1], [0, 0, 1, 1], [], []>} : vector<8x8xf32>, vector<8x8xf32>, vector<8x8xf32> -> vector<8x8xf32>
    %c0_29 = arith.constant 0 : index
    %c0_30 = arith.constant 0 : index
    %51 = vector.load %arg22[%c0_29, %c0_30] : memref<16x32xf32, #tpu.memory_space<vmem>>, vector<8x8xf32>
    tpu.vector_store %arg22[%c0_29, %c0_30], %50 {strides = array<i32>} : memref<16x32xf32, #tpu.memory_space<vmem>>, vector<8x8xf32>,
    %c0_31 = arith.constant 0 : index
    %c8 = arith.constant 8 : index
    %52 = vector.load %arg21[%c0_31, %c8] : memref<16x128xf32, #tpu.memory_space<vmem>>, vector<8x8xf32>
    %c0_32 = arith.constant 0 : index
    %c40 = arith.constant 40 : index
    %53 = vector.load %arg21[%c0_32, %c40] : memref<16x128xf32, #tpu.memory_space<vmem>>, vector<8x8xf32>
    %c0_33 = arith.constant 0 : index
    %c72 = arith.constant 72 : index
    %54 = vector.load %arg21[%c0_33, %c72] : memref<16x128xf32, #tpu.memory_space<vmem>>, vector<8x8xf32>
    "tpu.trace_start"() <{level = 10 : i32, message = "qd,kd->qk"}> : () -> ()
    %cst_34 = arith.constant dense<0.000000e+00> : vector<8x8xf32>
    %55 = tpu.matmul %52, %53, %cst_34 {dimension_numbers = #tpu.dot_dimension_numbers<[1], [1], [0], [0], [0, 0, 1, 0], [], []>} : vector<8x8xf32>, vector<8x8xf32>, vector<8x8xf32> -> vector<8x8xf32>
    "tpu.trace_stop"() : () -> ()
    %cst_35 = arith.constant 0.353553385 : f32
    %56 = vector.broadcast %cst_35 : f32 to vector<8x8xf32>
    %57 = arith.mulf %55, %56 : vector<8x8xf32>
    %58 = vector.broadcast %31 : vector<1x8xf32> to vector<8x8xf32>
    %59 = arith.addf %57, %58 : vector<8x8xf32>
    %cst_36 = arith.constant dense<0xFF800000> : vector<8xf32>
    %60 = vector.multi_reduction <maximumf>, %59, %cst_36 [1] : vector<8x8xf32> to vector<8xf32>
    %61 = vector.shape_cast %60 : vector<8xf32> to vector<8x1xf32>
    %62 = vector.broadcast %61 : vector<8x1xf32> to vector<8x8xf32>
    %63 = arith.subf %59, %62 : vector<8x8xf32>
    %64 = math.exp %63 : vector<8x8xf32>
    %cst_37 = arith.constant dense<0.000000e+00> : vector<8xf32>
    %65 = vector.multi_reduction <add>, %64, %cst_37 [1] : vector<8x8xf32> to vector<8xf32>
    %66 = vector.shape_cast %65 : vector<8xf32> to vector<8x1xf32>
    %67 = tpu.reciprocal %66 {approx = true} : vector<8x1xf32> -> vector<8x1xf32>
    %68 = vector.broadcast %67 : vector<8x1xf32> to vector<8x8xf32>
    %69 = arith.mulf %64, %68 : vector<8x8xf32>
    %cst_38 = arith.constant dense<0.000000e+00> : vector<8x8xf32>
    %70 = tpu.matmul %69, %54, %cst_38 {dimension_numbers = #tpu.dot_dimension_numbers<[1], [0], [0], [1], [0, 0, 1, 1], [], []>} : vector<8x8xf32>, vector<8x8xf32>, vector<8x8xf32> -> vector<8x8xf32>
    %c0_39 = arith.constant 0 : index
    %c8_40 = arith.constant 8 : index
    %71 = vector.load %arg22[%c0_39, %c8_40] : memref<16x32xf32, #tpu.memory_space<vmem>>, vector<8x8xf32>
    tpu.vector_store %arg22[%c0_39, %c8_40], %70 {strides = array<i32>} : memref<16x32xf32, #tpu.memory_space<vmem>>, vector<8x8xf32>,
    %c0_41 = arith.constant 0 : index
    %c16 = arith.constant 16 : index
    %72 = vector.load %arg21[%c0_41, %c16] : memref<16x128xf32, #tpu.memory_space<vmem>>, vector<8x8xf32>
    %c0_42 = arith.constant 0 : index
    %c48 = arith.constant 48 : index
    %73 = vector.load %arg21[%c0_42, %c48] : memref<16x128xf32, #tpu.memory_space<vmem>>, vector<8x8xf32>
    %c0_43 = arith.constant 0 : index
    %c80 = arith.constant 80 : index
    %74 = vector.load %arg21[%c0_43, %c80] : memref<16x128xf32, #tpu.memory_space<vmem>>, vector<8x8xf32>
    "tpu.trace_start"() <{level = 10 : i32, message = "qd,kd->qk"}> : () -> ()
    %cst_44 = arith.constant dense<0.000000e+00> : vector<8x8xf32>
    %75 = tpu.matmul %72, %73, %cst_44 {dimension_numbers = #tpu.dot_dimension_numbers<[1], [1], [0], [0], [0, 0, 1, 0], [], []>} : vector<8x8xf32>, vector<8x8xf32>, vector<8x8xf32> -> vector<8x8xf32>
    "tpu.trace_stop"() : () -> ()
    %cst_45 = arith.constant 0.353553385 : f32
    %76 = vector.broadcast %cst_45 : f32 to vector<8x8xf32>
    %77 = arith.mulf %75, %76 : vector<8x8xf32>
    %78 = vector.broadcast %31 : vector<1x8xf32> to vector<8x8xf32>
    %79 = arith.addf %77, %78 : vector<8x8xf32>
    %cst_46 = arith.constant dense<0xFF800000> : vector<8xf32>
    %80 = vector.multi_reduction <maximumf>, %79, %cst_46 [1] : vector<8x8xf32> to vector<8xf32>
    %81 = vector.shape_cast %80 : vector<8xf32> to vector<8x1xf32>
    %82 = vector.broadcast %81 : vector<8x1xf32> to vector<8x8xf32>
    %83 = arith.subf %79, %82 : vector<8x8xf32>
    %84 = math.exp %83 : vector<8x8xf32>
    %cst_47 = arith.constant dense<0.000000e+00> : vector<8xf32>
    %85 = vector.multi_reduction <add>, %84, %cst_47 [1] : vector<8x8xf32> to vector<8xf32>
    %86 = vector.shape_cast %85 : vector<8xf32> to vector<8x1xf32>
    %87 = tpu.reciprocal %86 {approx = true} : vector<8x1xf32> -> vector<8x1xf32>
    %88 = vector.broadcast %87 : vector<8x1xf32> to vector<8x8xf32>
    %89 = arith.mulf %84, %88 : vector<8x8xf32>
    %cst_48 = arith.constant dense<0.000000e+00> : vector<8x8xf32>
    %90 = tpu.matmul %89, %74, %cst_48 {dimension_numbers = #tpu.dot_dimension_numbers<[1], [0], [0], [1], [0, 0, 1, 1], [], []>} : vector<8x8xf32>, vector<8x8xf32>, vector<8x8xf32> -> vector<8x8xf32>
    %c0_49 = arith.constant 0 : index
    %c16_50 = arith.constant 16 : index
    %91 = vector.load %arg22[%c0_49, %c16_50] : memref<16x32xf32, #tpu.memory_space<vmem>>, vector<8x8xf32>
    tpu.vector_store %arg22[%c0_49, %c16_50], %90 {strides = array<i32>} : memref<16x32xf32, #tpu.memory_space<vmem>>, vector<8x8xf32>,
    %c0_51 = arith.constant 0 : index
    %c24 = arith.constant 24 : index
    %92 = vector.load %arg21[%c0_51, %c24] : memref<16x128xf32, #tpu.memory_space<vmem>>, vector<8x8xf32>
    %c0_52 = arith.constant 0 : index
    %c56 = arith.constant 56 : index
    %93 = vector.load %arg21[%c0_52, %c56] : memref<16x128xf32, #tpu.memory_space<vmem>>, vector<8x8xf32>
    %c0_53 = arith.constant 0 : index
    %c88 = arith.constant 88 : index
    %94 = vector.load %arg21[%c0_53, %c88] : memref<16x128xf32, #tpu.memory_space<vmem>>, vector<8x8xf32>
    "tpu.trace_start"() <{level = 10 : i32, message = "qd,kd->qk"}> : () -> ()
    %cst_54 = arith.constant dense<0.000000e+00> : vector<8x8xf32>
    %95 = tpu.matmul %92, %93, %cst_54 {dimension_numbers = #tpu.dot_dimension_numbers<[1], [1], [0], [0], [0, 0, 1, 0], [], []>} : vector<8x8xf32>, vector<8x8xf32>, vector<8x8xf32> -> vector<8x8xf32>
    "tpu.trace_stop"() : () -> ()
    %cst_55 = arith.constant 0.353553385 : f32
    %96 = vector.broadcast %cst_55 : f32 to vector<8x8xf32>
    %97 = arith.mulf %95, %96 : vector<8x8xf32>
    %98 = vector.broadcast %31 : vector<1x8xf32> to vector<8x8xf32>
    %99 = arith.addf %97, %98 : vector<8x8xf32>
    %cst_56 = arith.constant dense<0xFF800000> : vector<8xf32>
    %100 = vector.multi_reduction <maximumf>, %99, %cst_56 [1] : vector<8x8xf32> to vector<8xf32>
    %101 = vector.shape_cast %100 : vector<8xf32> to vector<8x1xf32>
    %102 = vector.broadcast %101 : vector<8x1xf32> to vector<8x8xf32>
    %103 = arith.subf %99, %102 : vector<8x8xf32>
    %104 = math.exp %103 : vector<8x8xf32>
    %cst_57 = arith.constant dense<0.000000e+00> : vector<8xf32>
    %105 = vector.multi_reduction <add>, %104, %cst_57 [1] : vector<8x8xf32> to vector<8xf32>
    %106 = vector.shape_cast %105 : vector<8xf32> to vector<8x1xf32>
    %107 = tpu.reciprocal %106 {approx = true} : vector<8x1xf32> -> vector<8x1xf32>
    %108 = vector.broadcast %107 : vector<8x1xf32> to vector<8x8xf32>
    %109 = arith.mulf %104, %108 : vector<8x8xf32>
    %cst_58 = arith.constant dense<0.000000e+00> : vector<8x8xf32>
    %110 = tpu.matmul %109, %94, %cst_58 {dimension_numbers = #tpu.dot_dimension_numbers<[1], [0], [0], [1], [0, 0, 1, 1], [], []>} : vector<8x8xf32>, vector<8x8xf32>, vector<8x8xf32> -> vector<8x8xf32>
    %c0_59 = arith.constant 0 : index
    %c24_60 = arith.constant 24 : index
    %111 = vector.load %arg22[%c0_59, %c24_60] : memref<16x32xf32, #tpu.memory_space<vmem>>, vector<8x8xf32>
    tpu.vector_store %arg22[%c0_59, %c24_60], %110 {strides = array<i32>} : memref<16x32xf32, #tpu.memory_space<vmem>>, vector<8x8xf32>,
    %c1 = arith.constant 1 : index
    %c0_61 = arith.constant 0 : index
    %112 = vector.load %arg1[%c1, %c0_61] : memref<2x8xf32, #tpu.memory_space<vmem>>, vector<1x8xf32>
    %c8_62 = arith.constant 8 : index
    %c0_63 = arith.constant 0 : index
    %113 = vector.load %arg21[%c8_62, %c0_63] : memref<16x128xf32, #tpu.memory_space<vmem>>, vector<8x8xf32>
    %c8_64 = arith.constant 8 : index
    %c32_65 = arith.constant 32 : index
    %114 = vector.load %arg21[%c8_64, %c32_65] : memref<16x128xf32, #tpu.memory_space<vmem>>, vector<8x8xf32>
    %c8_66 = arith.constant 8 : index
    %c64_67 = arith.constant 64 : index
    %115 = vector.load %arg21[%c8_66, %c64_67] : memref<16x128xf32, #tpu.memory_space<vmem>>, vector<8x8xf32>
    "tpu.trace_start"() <{level = 10 : i32, message = "qd,kd->qk"}> : () -> ()
    %cst_68 = arith.constant dense<0.000000e+00> : vector<8x8xf32>
    %116 = tpu.matmul %113, %114, %cst_68 {dimension_numbers = #tpu.dot_dimension_numbers<[1], [1], [0], [0], [0, 0, 1, 0], [], []>} : vector<8x8xf32>, vector<8x8xf32>, vector<8x8xf32> -> vector<8x8xf32>
    "tpu.trace_stop"() : () -> ()
    %cst_69 = arith.constant 0.353553385 : f32
    %117 = vector.broadcast %cst_69 : f32 to vector<8x8xf32>
    %118 = arith.mulf %116, %117 : vector<8x8xf32>
    %119 = vector.broadcast %112 : vector<1x8xf32> to vector<8x8xf32>
    %120 = arith.addf %118, %119 : vector<8x8xf32>
    %cst_70 = arith.constant dense<0xFF800000> : vector<8xf32>
    %121 = vector.multi_reduction <maximumf>, %120, %cst_70 [1] : vector<8x8xf32> to vector<8xf32>
    %122 = vector.shape_cast %121 : vector<8xf32> to vector<8x1xf32>
    %123 = vector.broadcast %122 : vector<8x1xf32> to vector<8x8xf32>
    %124 = arith.subf %120, %123 : vector<8x8xf32>
    %125 = math.exp %124 : vector<8x8xf32>
    %cst_71 = arith.constant dense<0.000000e+00> : vector<8xf32>
    %126 = vector.multi_reduction <add>, %125, %cst_71 [1] : vector<8x8xf32> to vector<8xf32>
    %127 = vector.shape_cast %126 : vector<8xf32> to vector<8x1xf32>
    %128 = tpu.reciprocal %127 {approx = true} : vector<8x1xf32> -> vector<8x1xf32>
    %129 = vector.broadcast %128 : vector<8x1xf32> to vector<8x8xf32>
    %130 = arith.mulf %125, %129 : vector<8x8xf32>
    %cst_72 = arith.constant dense<0.000000e+00> : vector<8x8xf32>
    %131 = tpu.matmul %130, %115, %cst_72 {dimension_numbers = #tpu.dot_dimension_numbers<[1], [0], [0], [1], [0, 0, 1, 1], [], []>} : vector<8x8xf32>, vector<8x8xf32>, vector<8x8xf32> -> vector<8x8xf32>
    %c8_73 = arith.constant 8 : index
    %c0_74 = arith.constant 0 : index
    %132 = vector.load %arg22[%c8_73, %c0_74] : memref<16x32xf32, #tpu.memory_space<vmem>>, vector<8x8xf32>
    tpu.vector_store %arg22[%c8_73, %c0_74], %131 {strides = array<i32>} : memref<16x32xf32, #tpu.memory_space<vmem>>, vector<8x8xf32>,
    %c8_75 = arith.constant 8 : index
    %c8_76 = arith.constant 8 : index
    %133 = vector.load %arg21[%c8_75, %c8_76] : memref<16x128xf32, #tpu.memory_space<vmem>>, vector<8x8xf32>
    %c8_77 = arith.constant 8 : index
    %c40_78 = arith.constant 40 : index
    %134 = vector.load %arg21[%c8_77, %c40_78] : memref<16x128xf32, #tpu.memory_space<vmem>>, vector<8x8xf32>
    %c8_79 = arith.constant 8 : index
    %c72_80 = arith.constant 72 : index
    %135 = vector.load %arg21[%c8_79, %c72_80] : memref<16x128xf32, #tpu.memory_space<vmem>>, vector<8x8xf32>
    "tpu.trace_start"() <{level = 10 : i32, message = "qd,kd->qk"}> : () -> ()
    %cst_81 = arith.constant dense<0.000000e+00> : vector<8x8xf32>
    %136 = tpu.matmul %133, %134, %cst_81 {dimension_numbers = #tpu.dot_dimension_numbers<[1], [1], [0], [0], [0, 0, 1, 0], [], []>} : vector<8x8xf32>, vector<8x8xf32>, vector<8x8xf32> -> vector<8x8xf32>
    "tpu.trace_stop"() : () -> ()
    %cst_82 = arith.constant 0.353553385 : f32
    %137 = vector.broadcast %cst_82 : f32 to vector<8x8xf32>
    %138 = arith.mulf %136, %137 : vector<8x8xf32>
    %139 = vector.broadcast %112 : vector<1x8xf32> to vector<8x8xf32>
    %140 = arith.addf %138, %139 : vector<8x8xf32>
    %cst_83 = arith.constant dense<0xFF800000> : vector<8xf32>
    %141 = vector.multi_reduction <maximumf>, %140, %cst_83 [1] : vector<8x8xf32> to vector<8xf32>
    %142 = vector.shape_cast %141 : vector<8xf32> to vector<8x1xf32>
    %143 = vector.broadcast %142 : vector<8x1xf32> to vector<8x8xf32>
    %144 = arith.subf %140, %143 : vector<8x8xf32>
    %145 = math.exp %144 : vector<8x8xf32>
    %cst_84 = arith.constant dense<0.000000e+00> : vector<8xf32>
    %146 = vector.multi_reduction <add>, %145, %cst_84 [1] : vector<8x8xf32> to vector<8xf32>
    %147 = vector.shape_cast %146 : vector<8xf32> to vector<8x1xf32>
    %148 = tpu.reciprocal %147 {approx = true} : vector<8x1xf32> -> vector<8x1xf32>
    %149 = vector.broadcast %148 : vector<8x1xf32> to vector<8x8xf32>
    %150 = arith.mulf %145, %149 : vector<8x8xf32>
    %cst_85 = arith.constant dense<0.000000e+00> : vector<8x8xf32>
    %151 = tpu.matmul %150, %135, %cst_85 {dimension_numbers = #tpu.dot_dimension_numbers<[1], [0], [0], [1], [0, 0, 1, 1], [], []>} : vector<8x8xf32>, vector<8x8xf32>, vector<8x8xf32> -> vector<8x8xf32>
    %c8_86 = arith.constant 8 : index
    %c8_87 = arith.constant 8 : index
    %152 = vector.load %arg22[%c8_86, %c8_87] : memref<16x32xf32, #tpu.memory_space<vmem>>, vector<8x8xf32>
    tpu.vector_store %arg22[%c8_86, %c8_87], %151 {strides = array<i32>} : memref<16x32xf32, #tpu.memory_space<vmem>>, vector<8x8xf32>,
    %c8_88 = arith.constant 8 : index
    %c16_89 = arith.constant 16 : index
    %153 = vector.load %arg21[%c8_88, %c16_89] : memref<16x128xf32, #tpu.memory_space<vmem>>, vector<8x8xf32>
    %c8_90 = arith.constant 8 : index
    %c48_91 = arith.constant 48 : index
    %154 = vector.load %arg21[%c8_90, %c48_91] : memref<16x128xf32, #tpu.memory_space<vmem>>, vector<8x8xf32>
    %c8_92 = arith.constant 8 : index
    %c80_93 = arith.constant 80 : index
    %155 = vector.load %arg21[%c8_92, %c80_93] : memref<16x128xf32, #tpu.memory_space<vmem>>, vector<8x8xf32>
    "tpu.trace_start"() <{level = 10 : i32, message = "qd,kd->qk"}> : () -> ()
    %cst_94 = arith.constant dense<0.000000e+00> : vector<8x8xf32>
    %156 = tpu.matmul %153, %154, %cst_94 {dimension_numbers = #tpu.dot_dimension_numbers<[1], [1], [0], [0], [0, 0, 1, 0], [], []>} : vector<8x8xf32>, vector<8x8xf32>, vector<8x8xf32> -> vector<8x8xf32>
    "tpu.trace_stop"() : () -> ()
    %cst_95 = arith.constant 0.353553385 : f32
    %157 = vector.broadcast %cst_95 : f32 to vector<8x8xf32>
    %158 = arith.mulf %156, %157 : vector<8x8xf32>
    %159 = vector.broadcast %112 : vector<1x8xf32> to vector<8x8xf32>
    %160 = arith.addf %158, %159 : vector<8x8xf32>
    %cst_96 = arith.constant dense<0xFF800000> : vector<8xf32>
    %161 = vector.multi_reduction <maximumf>, %160, %cst_96 [1] : vector<8x8xf32> to vector<8xf32>
    %162 = vector.shape_cast %161 : vector<8xf32> to vector<8x1xf32>
    %163 = vector.broadcast %162 : vector<8x1xf32> to vector<8x8xf32>
    %164 = arith.subf %160, %163 : vector<8x8xf32>
    %165 = math.exp %164 : vector<8x8xf32>
    %cst_97 = arith.constant dense<0.000000e+00> : vector<8xf32>
    %166 = vector.multi_reduction <add>, %165, %cst_97 [1] : vector<8x8xf32> to vector<8xf32>
    %167 = vector.shape_cast %166 : vector<8xf32> to vector<8x1xf32>
    %168 = tpu.reciprocal %167 {approx = true} : vector<8x1xf32> -> vector<8x1xf32>
    %169 = vector.broadcast %168 : vector<8x1xf32> to vector<8x8xf32>
    %170 = arith.mulf %165, %169 : vector<8x8xf32>
    %cst_98 = arith.constant dense<0.000000e+00> : vector<8x8xf32>
    %171 = tpu.matmul %170, %155, %cst_98 {dimension_numbers = #tpu.dot_dimension_numbers<[1], [0], [0], [1], [0, 0, 1, 1], [], []>} : vector<8x8xf32>, vector<8x8xf32>, vector<8x8xf32> -> vector<8x8xf32>
    %c8_99 = arith.constant 8 : index
    %c16_100 = arith.constant 16 : index
    %172 = vector.load %arg22[%c8_99, %c16_100] : memref<16x32xf32, #tpu.memory_space<vmem>>, vector<8x8xf32>
    tpu.vector_store %arg22[%c8_99, %c16_100], %171 {strides = array<i32>} : memref<16x32xf32, #tpu.memory_space<vmem>>, vector<8x8xf32>,
    %c8_101 = arith.constant 8 : index
    %c24_102 = arith.constant 24 : index
    %173 = vector.load %arg21[%c8_101, %c24_102] : memref<16x128xf32, #tpu.memory_space<vmem>>, vector<8x8xf32>
    %c8_103 = arith.constant 8 : index
    %c56_104 = arith.constant 56 : index
    %174 = vector.load %arg21[%c8_103, %c56_104] : memref<16x128xf32, #tpu.memory_space<vmem>>, vector<8x8xf32>
    %c8_105 = arith.constant 8 : index
    %c88_106 = arith.constant 88 : index
    %175 = vector.load %arg21[%c8_105, %c88_106] : memref<16x128xf32, #tpu.memory_space<vmem>>, vector<8x8xf32>
    "tpu.trace_start"() <{level = 10 : i32, message = "qd,kd->qk"}> : () -> ()
    %cst_107 = arith.constant dense<0.000000e+00> : vector<8x8xf32>
    %176 = tpu.matmul %173, %174, %cst_107 {dimension_numbers = #tpu.dot_dimension_numbers<[1], [1], [0], [0], [0, 0, 1, 0], [], []>} : vector<8x8xf32>, vector<8x8xf32>, vector<8x8xf32> -> vector<8x8xf32>
    "tpu.trace_stop"() : () -> ()
    %cst_108 = arith.constant 0.353553385 : f32
    %177 = vector.broadcast %cst_108 : f32 to vector<8x8xf32>
    %178 = arith.mulf %176, %177 : vector<8x8xf32>
    %179 = vector.broadcast %112 : vector<1x8xf32> to vector<8x8xf32>
    %180 = arith.addf %178, %179 : vector<8x8xf32>
    %cst_109 = arith.constant dense<0xFF800000> : vector<8xf32>
    %181 = vector.multi_reduction <maximumf>, %180, %cst_109 [1] : vector<8x8xf32> to vector<8xf32>
    %182 = vector.shape_cast %181 : vector<8xf32> to vector<8x1xf32>
    %183 = vector.broadcast %182 : vector<8x1xf32> to vector<8x8xf32>
    %184 = arith.subf %180, %183 : vector<8x8xf32>
    %185 = math.exp %184 : vector<8x8xf32>
    %cst_110 = arith.constant dense<0.000000e+00> : vector<8xf32>
    %186 = vector.multi_reduction <add>, %185, %cst_110 [1] : vector<8x8xf32> to vector<8xf32>
    %187 = vector.shape_cast %186 : vector<8xf32> to vector<8x1xf32>
    %188 = tpu.reciprocal %187 {approx = true} : vector<8x1xf32> -> vector<8x1xf32>
    %189 = vector.broadcast %188 : vector<8x1xf32> to vector<8x8xf32>
    %190 = arith.mulf %185, %189 : vector<8x8xf32>
    %cst_111 = arith.constant dense<0.000000e+00> : vector<8x8xf32>
    %191 = tpu.matmul %190, %175, %cst_111 {dimension_numbers = #tpu.dot_dimension_numbers<[1], [0], [0], [1], [0, 0, 1, 1], [], []>} : vector<8x8xf32>, vector<8x8xf32>, vector<8x8xf32> -> vector<8x8xf32>
    %c8_112 = arith.constant 8 : index
    %c24_113 = arith.constant 24 : index
    %192 = vector.load %arg22[%c8_112, %c24_113] : memref<16x32xf32, #tpu.memory_space<vmem>>, vector<8x8xf32>
    tpu.vector_store %arg22[%c8_112, %c24_113], %191 {strides = array<i32>} : memref<16x32xf32, #tpu.memory_space<vmem>>, vector<8x8xf32>,
    %c0_114 = arith.constant 0 : index
    %c0_115 = arith.constant 0 : index
    %193 = vector.load %arg22[%c0_114, %c0_115] : memref<16x32xf32, #tpu.memory_space<vmem>>, vector<16x32xf32>
    %c0_116 = arith.constant 0 : index
    %c0_117 = arith.constant 0 : index
    %c0_118 = arith.constant 0 : index
    %194 = vector.load %arg6[%c0_116, %c0_117, %c0_118] : memref<2x32x32xf32, #tpu.memory_space<vmem>>, vector<1x32x32xf32>
    %195 = vector.shape_cast %194 : vector<1x32x32xf32> to vector<32x32xf32>
    %cst_119 = arith.constant dense<0.000000e+00> : vector<16x32xf32>
    %196 = tpu.matmul %193, %195, %cst_119 {dimension_numbers = #tpu.dot_dimension_numbers<[1], [0], [0], [1], [0, 0, 1, 1], [], []>} : vector<16x32xf32>, vector<32x32xf32>, vector<16x32xf32> -> vector<16x32xf32>
    %c0_120 = arith.constant 0 : index
    %c0_121 = arith.constant 0 : index
    %c0_122 = arith.constant 0 : index
    %197 = vector.load %arg7[%c0_120, %c0_121, %c0_122] : memref<2x1x32xf32, #tpu.memory_space<vmem>>, vector<1x1x32xf32>
    %198 = vector.shape_cast %197 : vector<1x1x32xf32> to vector<1x32xf32>
    %199 = vector.broadcast %198 : vector<1x32xf32> to vector<16x32xf32>
    %200 = arith.addf %196, %199 : vector<16x32xf32>
    %201 = arith.addf %200, %22 : vector<16x32xf32>
    %c0_123 = arith.constant 0 : index
    %c0_124 = arith.constant 0 : index
    %c0_125 = arith.constant 0 : index
    %202 = vector.load %arg8[%c0_123, %c0_124, %c0_125] : memref<2x1x32xf32, #tpu.memory_space<vmem>>, vector<1x1x32xf32>
    %203 = vector.shape_cast %202 : vector<1x1x32xf32> to vector<1x32xf32>
    %c0_126 = arith.constant 0 : index
    %c0_127 = arith.constant 0 : index
    %c0_128 = arith.constant 0 : index
    %204 = vector.load %arg9[%c0_126, %c0_127, %c0_128] : memref<2x1x32xf32, #tpu.memory_space<vmem>>, vector<1x1x32xf32>
    %205 = vector.shape_cast %204 : vector<1x1x32xf32> to vector<1x32xf32>
    %cst_129 = arith.constant dense<0.000000e+00> : vector<16xf32>
    %206 = vector.multi_reduction <add>, %201, %cst_129 [1] : vector<16x32xf32> to vector<16xf32>
    %207 = vector.shape_cast %206 : vector<16xf32> to vector<16x1xf32>
    %cst_130 = arith.constant 3.200000e+01 : f32
    %208 = vector.broadcast %cst_130 : f32 to vector<16x1xf32>
    %209 = arith.divf %207, %208 : vector<16x1xf32>
    %210 = vector.broadcast %209 : vector<16x1xf32> to vector<16x32xf32>
    %211 = arith.subf %201, %210 : vector<16x32xf32>
    %212 = arith.mulf %211, %211 : vector<16x32xf32>
    %cst_131 = arith.constant dense<0.000000e+00> : vector<16xf32>
    %213 = vector.multi_reduction <add>, %212, %cst_131 [1] : vector<16x32xf32> to vector<16xf32>
    %214 = vector.shape_cast %213 : vector<16xf32> to vector<16x1xf32>
    %cst_132 = arith.constant 3.200000e+01 : f32
    %215 = vector.broadcast %cst_132 : f32 to vector<16x1xf32>
    %216 = arith.divf %214, %215 : vector<16x1xf32>
    %cst_133 = arith.constant 9.99999974E-6 : f32
    %217 = vector.broadcast %cst_133 : f32 to vector<16x1xf32>
    %218 = arith.addf %216, %217 : vector<16x1xf32>
    %219 = math.rsqrt %218 : vector<16x1xf32>
    %220 = vector.broadcast %219 : vector<16x1xf32> to vector<16x32xf32>
    %221 = arith.mulf %211, %220 : vector<16x32xf32>
    %222 = vector.broadcast %203 : vector<1x32xf32> to vector<16x32xf32>
    %223 = arith.mulf %221, %222 : vector<16x32xf32>
    %224 = vector.broadcast %205 : vector<1x32xf32> to vector<16x32xf32>
    %225 = arith.addf %223, %224 : vector<16x32xf32>
    %c0_134 = arith.constant 0 : index
    %c0_135 = arith.constant 0 : index
    %c0_136 = arith.constant 0 : index
    %226 = vector.load %arg10[%c0_134, %c0_135, %c0_136] : memref<2x32x128xf32, #tpu.memory_space<vmem>>, vector<1x32x128xf32>
    %227 = vector.shape_cast %226 : vector<1x32x128xf32> to vector<32x128xf32>
    %cst_137 = arith.constant dense<0.000000e+00> : vector<16x128xf32>
    %228 = tpu.matmul %225, %227, %cst_137 {dimension_numbers = #tpu.dot_dimension_numbers<[1], [0], [0], [1], [0, 0, 1, 1], [], []>} : vector<16x32xf32>, vector<32x128xf32>, vector<16x128xf32> -> vector<16x128xf32>
    %c0_138 = arith.constant 0 : index
    %c0_139 = arith.constant 0 : index
    %c0_140 = arith.constant 0 : index
    %229 = vector.load %arg11[%c0_138, %c0_139, %c0_140] : memref<2x1x128xf32, #tpu.memory_space<vmem>>, vector<1x1x128xf32>
    %230 = vector.shape_cast %229 : vector<1x1x128xf32> to vector<1x128xf32>
    %231 = vector.broadcast %230 : vector<1x128xf32> to vector<16x128xf32>
    %232 = arith.addf %228, %231 : vector<16x128xf32>
    %cst_141 = arith.constant 5.000000e-01 : f32
    %233 = vector.broadcast %cst_141 : f32 to vector<16x128xf32>
    %234 = arith.mulf %233, %232 : vector<16x128xf32>
    %cst_142 = arith.constant 4.471500e-02 : f32
    %235 = vector.broadcast %cst_142 : f32 to vector<16x128xf32>
    %236 = arith.mulf %235, %232 : vector<16x128xf32>
    %237 = arith.mulf %236, %232 : vector<16x128xf32>
    %238 = arith.mulf %237, %232 : vector<16x128xf32>
    %239 = arith.addf %232, %238 : vector<16x128xf32>
    %cst_143 = arith.constant 0.797884583 : f32
    %240 = vector.broadcast %cst_143 : f32 to vector<16x128xf32>
    %241 = arith.mulf %240, %239 : vector<16x128xf32>
    %242 = math.tanh %241 : vector<16x128xf32>
    %cst_144 = arith.constant 1.000000e+00 : f32
    %243 = vector.broadcast %cst_144 : f32 to vector<16x128xf32>
    %244 = arith.addf %243, %242 : vector<16x128xf32>
    %245 = arith.mulf %234, %244 : vector<16x128xf32>
    %c0_145 = arith.constant 0 : index
    %c0_146 = arith.constant 0 : index
    %c0_147 = arith.constant 0 : index
    %246 = vector.load %arg12[%c0_145, %c0_146, %c0_147] : memref<2x128x32xf32, #tpu.memory_space<vmem>>, vector<1x128x32xf32>
    %247 = vector.shape_cast %246 : vector<1x128x32xf32> to vector<128x32xf32>
    %cst_148 = arith.constant dense<0.000000e+00> : vector<16x32xf32>
    %248 = tpu.matmul %245, %247, %cst_148 {dimension_numbers = #tpu.dot_dimension_numbers<[1], [0], [0], [1], [0, 0, 1, 1], [], []>} : vector<16x128xf32>, vector<128x32xf32>, vector<16x32xf32> -> vector<16x32xf32>
    %c0_149 = arith.constant 0 : index
    %c0_150 = arith.constant 0 : index
    %c0_151 = arith.constant 0 : index
    %249 = vector.load %arg13[%c0_149, %c0_150, %c0_151] : memref<2x1x32xf32, #tpu.memory_space<vmem>>, vector<1x1x32xf32>
    %250 = vector.shape_cast %249 : vector<1x1x32xf32> to vector<1x32xf32>
    %251 = vector.broadcast %250 : vector<1x32xf32> to vector<16x32xf32>
    %252 = arith.addf %248, %251 : vector<16x32xf32>
    %253 = arith.addf %252, %225 : vector<16x32xf32>
    %c0_152 = arith.constant 0 : index
    %c0_153 = arith.constant 0 : index
    %c0_154 = arith.constant 0 : index
    %254 = vector.load %arg14[%c0_152, %c0_153, %c0_154] : memref<2x1x32xf32, #tpu.memory_space<vmem>>, vector<1x1x32xf32>
    %255 = vector.shape_cast %254 : vector<1x1x32xf32> to vector<1x32xf32>
    %c0_155 = arith.constant 0 : index
    %c0_156 = arith.constant 0 : index
    %c0_157 = arith.constant 0 : index
    %256 = vector.load %arg15[%c0_155, %c0_156, %c0_157] : memref<2x1x32xf32, #tpu.memory_space<vmem>>, vector<1x1x32xf32>
    %257 = vector.shape_cast %256 : vector<1x1x32xf32> to vector<1x32xf32>
    %cst_158 = arith.constant dense<0.000000e+00> : vector<16xf32>
    %258 = vector.multi_reduction <add>, %253, %cst_158 [1] : vector<16x32xf32> to vector<16xf32>
    %259 = vector.shape_cast %258 : vector<16xf32> to vector<16x1xf32>
    %cst_159 = arith.constant 3.200000e+01 : f32
    %260 = vector.broadcast %cst_159 : f32 to vector<16x1xf32>
    %261 = arith.divf %259, %260 : vector<16x1xf32>
    %262 = vector.broadcast %261 : vector<16x1xf32> to vector<16x32xf32>
    %263 = arith.subf %253, %262 : vector<16x32xf32>
    %264 = arith.mulf %263, %263 : vector<16x32xf32>
    %cst_160 = arith.constant dense<0.000000e+00> : vector<16xf32>
    %265 = vector.multi_reduction <add>, %264, %cst_160 [1] : vector<16x32xf32> to vector<16xf32>
    %266 = vector.shape_cast %265 : vector<16xf32> to vector<16x1xf32>
    %cst_161 = arith.constant 3.200000e+01 : f32
    %267 = vector.broadcast %cst_161 : f32 to vector<16x1xf32>
    %268 = arith.divf %266, %267 : vector<16x1xf32>
    %cst_162 = arith.constant 9.99999974E-6 : f32
    %269 = vector.broadcast %cst_162 : f32 to vector<16x1xf32>
    %270 = arith.addf %268, %269 : vector<16x1xf32>
    %271 = math.rsqrt %270 : vector<16x1xf32>
    %272 = vector.broadcast %271 : vector<16x1xf32> to vector<16x32xf32>
    %273 = arith.mulf %263, %272 : vector<16x32xf32>
    %274 = vector.broadcast %255 : vector<1x32xf32> to vector<16x32xf32>
    %275 = arith.mulf %273, %274 : vector<16x32xf32>
    %276 = vector.broadcast %257 : vector<1x32xf32> to vector<16x32xf32>
    %277 = arith.addf %275, %276 : vector<16x32xf32>
    %c1_163 = arith.constant 1 : index
    %c0_164 = arith.constant 0 : index
    %c0_165 = arith.constant 0 : index
    %278 = vector.load %arg4[%c1_163, %c0_164, %c0_165] : memref<2x32x128xf32, #tpu.memory_space<vmem>>, vector<1x32x128xf32>
    %279 = vector.shape_cast %278 : vector<1x32x128xf32> to vector<32x128xf32>
    %cst_166 = arith.constant dense<0.000000e+00> : vector<16x128xf32>
    %280 = tpu.matmul %277, %279, %cst_166 {dimension_numbers = #tpu.dot_dimension_numbers<[1], [0], [0], [1], [0, 0, 1, 1], [], []>} : vector<16x32xf32>, vector<32x128xf32>, vector<16x128xf32> -> vector<16x128xf32>
    %c1_167 = arith.constant 1 : index
    %c0_168 = arith.constant 0 : index
    %c0_169 = arith.constant 0 : index
    %281 = vector.load %arg5[%c1_167, %c0_168, %c0_169] : memref<2x1x128xf32, #tpu.memory_space<vmem>>, vector<1x1x128xf32>
    %282 = vector.shape_cast %281 : vector<1x1x128xf32> to vector<1x128xf32>
    %283 = vector.broadcast %282 : vector<1x128xf32> to vector<16x128xf32>
    %284 = arith.addf %280, %283 : vector<16x128xf32>
    %c0_170 = arith.constant 0 : index
    %c0_171 = arith.constant 0 : index
    %285 = vector.load %arg21[%c0_170, %c0_171] : memref<16x128xf32, #tpu.memory_space<vmem>>, vector<16x128xf32>
    tpu.vector_store %arg21[%c0_170, %c0_171], %284 {strides = array<i32>} : memref<16x128xf32, #tpu.memory_space<vmem>>, vector<16x128xf32>,
    %c0_172 = arith.constant 0 : index
    %c0_173 = arith.constant 0 : index
    %286 = vector.load %arg1[%c0_172, %c0_173] : memref<2x8xf32, #tpu.memory_space<vmem>>, vector<1x8xf32>
    %c0_174 = arith.constant 0 : index
    %c0_175 = arith.constant 0 : index
    %287 = vector.load %arg21[%c0_174, %c0_175] : memref<16x128xf32, #tpu.memory_space<vmem>>, vector<8x8xf32>
    %c0_176 = arith.constant 0 : index
    %c32_177 = arith.constant 32 : index
    %288 = vector.load %arg21[%c0_176, %c32_177] : memref<16x128xf32, #tpu.memory_space<vmem>>, vector<8x8xf32>
    %c0_178 = arith.constant 0 : index
    %c64_179 = arith.constant 64 : index
    %289 = vector.load %arg21[%c0_178, %c64_179] : memref<16x128xf32, #tpu.memory_space<vmem>>, vector<8x8xf32>
    "tpu.trace_start"() <{level = 10 : i32, message = "qd,kd->qk"}> : () -> ()
    %cst_180 = arith.constant dense<0.000000e+00> : vector<8x8xf32>
    %290 = tpu.matmul %287, %288, %cst_180 {dimension_numbers = #tpu.dot_dimension_numbers<[1], [1], [0], [0], [0, 0, 1, 0], [], []>} : vector<8x8xf32>, vector<8x8xf32>, vector<8x8xf32> -> vector<8x8xf32>
    "tpu.trace_stop"() : () -> ()
    %cst_181 = arith.constant 0.353553385 : f32
    %291 = vector.broadcast %cst_181 : f32 to vector<8x8xf32>
    %292 = arith.mulf %290, %291 : vector<8x8xf32>
    %293 = vector.broadcast %286 : vector<1x8xf32> to vector<8x8xf32>
    %294 = arith.addf %292, %293 : vector<8x8xf32>
    %cst_182 = arith.constant dense<0xFF800000> : vector<8xf32>
    %295 = vector.multi_reduction <maximumf>, %294, %cst_182 [1] : vector<8x8xf32> to vector<8xf32>
    %296 = vector.shape_cast %295 : vector<8xf32> to vector<8x1xf32>
    %297 = vector.broadcast %296 : vector<8x1xf32> to vector<8x8xf32>
    %298 = arith.subf %294, %297 : vector<8x8xf32>
    %299 = math.exp %298 : vector<8x8xf32>
    %cst_183 = arith.constant dense<0.000000e+00> : vector<8xf32>
    %300 = vector.multi_reduction <add>, %299, %cst_183 [1] : vector<8x8xf32> to vector<8xf32>
    %301 = vector.shape_cast %300 : vector<8xf32> to vector<8x1xf32>
    %302 = tpu.reciprocal %301 {approx = true} : vector<8x1xf32> -> vector<8x1xf32>
    %303 = vector.broadcast %302 : vector<8x1xf32> to vector<8x8xf32>
    %304 = arith.mulf %299, %303 : vector<8x8xf32>
    %cst_184 = arith.constant dense<0.000000e+00> : vector<8x8xf32>
    %305 = tpu.matmul %304, %289, %cst_184 {dimension_numbers = #tpu.dot_dimension_numbers<[1], [0], [0], [1], [0, 0, 1, 1], [], []>} : vector<8x8xf32>, vector<8x8xf32>, vector<8x8xf32> -> vector<8x8xf32>
    %c0_185 = arith.constant 0 : index
    %c0_186 = arith.constant 0 : index
    %306 = vector.load %arg22[%c0_185, %c0_186] : memref<16x32xf32, #tpu.memory_space<vmem>>, vector<8x8xf32>
    tpu.vector_store %arg22[%c0_185, %c0_186], %305 {strides = array<i32>} : memref<16x32xf32, #tpu.memory_space<vmem>>, vector<8x8xf32>,
    %c0_187 = arith.constant 0 : index
    %c8_188 = arith.constant 8 : index
    %307 = vector.load %arg21[%c0_187, %c8_188] : memref<16x128xf32, #tpu.memory_space<vmem>>, vector<8x8xf32>
    %c0_189 = arith.constant 0 : index
    %c40_190 = arith.constant 40 : index
    %308 = vector.load %arg21[%c0_189, %c40_190] : memref<16x128xf32, #tpu.memory_space<vmem>>, vector<8x8xf32>
    %c0_191 = arith.constant 0 : index
    %c72_192 = arith.constant 72 : index
    %309 = vector.load %arg21[%c0_191, %c72_192] : memref<16x128xf32, #tpu.memory_space<vmem>>, vector<8x8xf32>
    "tpu.trace_start"() <{level = 10 : i32, message = "qd,kd->qk"}> : () -> ()
    %cst_193 = arith.constant dense<0.000000e+00> : vector<8x8xf32>
    %310 = tpu.matmul %307, %308, %cst_193 {dimension_numbers = #tpu.dot_dimension_numbers<[1], [1], [0], [0], [0, 0, 1, 0], [], []>} : vector<8x8xf32>, vector<8x8xf32>, vector<8x8xf32> -> vector<8x8xf32>
    "tpu.trace_stop"() : () -> ()
    %cst_194 = arith.constant 0.353553385 : f32
    %311 = vector.broadcast %cst_194 : f32 to vector<8x8xf32>
    %312 = arith.mulf %310, %311 : vector<8x8xf32>
    %313 = vector.broadcast %286 : vector<1x8xf32> to vector<8x8xf32>
    %314 = arith.addf %312, %313 : vector<8x8xf32>
    %cst_195 = arith.constant dense<0xFF800000> : vector<8xf32>
    %315 = vector.multi_reduction <maximumf>, %314, %cst_195 [1] : vector<8x8xf32> to vector<8xf32>
    %316 = vector.shape_cast %315 : vector<8xf32> to vector<8x1xf32>
    %317 = vector.broadcast %316 : vector<8x1xf32> to vector<8x8xf32>
    %318 = arith.subf %314, %317 : vector<8x8xf32>
    %319 = math.exp %318 : vector<8x8xf32>
    %cst_196 = arith.constant dense<0.000000e+00> : vector<8xf32>
    %320 = vector.multi_reduction <add>, %319, %cst_196 [1] : vector<8x8xf32> to vector<8xf32>
    %321 = vector.shape_cast %320 : vector<8xf32> to vector<8x1xf32>
    %322 = tpu.reciprocal %321 {approx = true} : vector<8x1xf32> -> vector<8x1xf32>
    %323 = vector.broadcast %322 : vector<8x1xf32> to vector<8x8xf32>
    %324 = arith.mulf %319, %323 : vector<8x8xf32>
    %cst_197 = arith.constant dense<0.000000e+00> : vector<8x8xf32>
    %325 = tpu.matmul %324, %309, %cst_197 {dimension_numbers = #tpu.dot_dimension_numbers<[1], [0], [0], [1], [0, 0, 1, 1], [], []>} : vector<8x8xf32>, vector<8x8xf32>, vector<8x8xf32> -> vector<8x8xf32>
    %c0_198 = arith.constant 0 : index
    %c8_199 = arith.constant 8 : index
    %326 = vector.load %arg22[%c0_198, %c8_199] : memref<16x32xf32, #tpu.memory_space<vmem>>, vector<8x8xf32>
    tpu.vector_store %arg22[%c0_198, %c8_199], %325 {strides = array<i32>} : memref<16x32xf32, #tpu.memory_space<vmem>>, vector<8x8xf32>,
    %c0_200 = arith.constant 0 : index
    %c16_201 = arith.constant 16 : index
    %327 = vector.load %arg21[%c0_200, %c16_201] : memref<16x128xf32, #tpu.memory_space<vmem>>, vector<8x8xf32>
    %c0_202 = arith.constant 0 : index
    %c48_203 = arith.constant 48 : index
    %328 = vector.load %arg21[%c0_202, %c48_203] : memref<16x128xf32, #tpu.memory_space<vmem>>, vector<8x8xf32>
    %c0_204 = arith.constant 0 : index
    %c80_205 = arith.constant 80 : index
    %329 = vector.load %arg21[%c0_204, %c80_205] : memref<16x128xf32, #tpu.memory_space<vmem>>, vector<8x8xf32>
    "tpu.trace_start"() <{level = 10 : i32, message = "qd,kd->qk"}> : () -> ()
    %cst_206 = arith.constant dense<0.000000e+00> : vector<8x8xf32>
    %330 = tpu.matmul %327, %328, %cst_206 {dimension_numbers = #tpu.dot_dimension_numbers<[1], [1], [0], [0], [0, 0, 1, 0], [], []>} : vector<8x8xf32>, vector<8x8xf32>, vector<8x8xf32> -> vector<8x8xf32>
    "tpu.trace_stop"() : () -> ()
    %cst_207 = arith.constant 0.353553385 : f32
    %331 = vector.broadcast %cst_207 : f32 to vector<8x8xf32>
    %332 = arith.mulf %330, %331 : vector<8x8xf32>
    %333 = vector.broadcast %286 : vector<1x8xf32> to vector<8x8xf32>
    %334 = arith.addf %332, %333 : vector<8x8xf32>
    %cst_208 = arith.constant dense<0xFF800000> : vector<8xf32>
    %335 = vector.multi_reduction <maximumf>, %334, %cst_208 [1] : vector<8x8xf32> to vector<8xf32>
    %336 = vector.shape_cast %335 : vector<8xf32> to vector<8x1xf32>
    %337 = vector.broadcast %336 : vector<8x1xf32> to vector<8x8xf32>
    %338 = arith.subf %334, %337 : vector<8x8xf32>
    %339 = math.exp %338 : vector<8x8xf32>
    %cst_209 = arith.constant dense<0.000000e+00> : vector<8xf32>
    %340 = vector.multi_reduction <add>, %339, %cst_209 [1] : vector<8x8xf32> to vector<8xf32>
    %341 = vector.shape_cast %340 : vector<8xf32> to vector<8x1xf32>
    %342 = tpu.reciprocal %341 {approx = true} : vector<8x1xf32> -> vector<8x1xf32>
    %343 = vector.broadcast %342 : vector<8x1xf32> to vector<8x8xf32>
    %344 = arith.mulf %339, %343 : vector<8x8xf32>
    %cst_210 = arith.constant dense<0.000000e+00> : vector<8x8xf32>
    %345 = tpu.matmul %344, %329, %cst_210 {dimension_numbers = #tpu.dot_dimension_numbers<[1], [0], [0], [1], [0, 0, 1, 1], [], []>} : vector<8x8xf32>, vector<8x8xf32>, vector<8x8xf32> -> vector<8x8xf32>
    %c0_211 = arith.constant 0 : index
    %c16_212 = arith.constant 16 : index
    %346 = vector.load %arg22[%c0_211, %c16_212] : memref<16x32xf32, #tpu.memory_space<vmem>>, vector<8x8xf32>
    tpu.vector_store %arg22[%c0_211, %c16_212], %345 {strides = array<i32>} : memref<16x32xf32, #tpu.memory_space<vmem>>, vector<8x8xf32>,
    %c0_213 = arith.constant 0 : index
    %c24_214 = arith.constant 24 : index
    %347 = vector.load %arg21[%c0_213, %c24_214] : memref<16x128xf32, #tpu.memory_space<vmem>>, vector<8x8xf32>
    %c0_215 = arith.constant 0 : index
    %c56_216 = arith.constant 56 : index
    %348 = vector.load %arg21[%c0_215, %c56_216] : memref<16x128xf32, #tpu.memory_space<vmem>>, vector<8x8xf32>
    %c0_217 = arith.constant 0 : index
    %c88_218 = arith.constant 88 : index
    %349 = vector.load %arg21[%c0_217, %c88_218] : memref<16x128xf32, #tpu.memory_space<vmem>>, vector<8x8xf32>
    "tpu.trace_start"() <{level = 10 : i32, message = "qd,kd->qk"}> : () -> ()
    %cst_219 = arith.constant dense<0.000000e+00> : vector<8x8xf32>
    %350 = tpu.matmul %347, %348, %cst_219 {dimension_numbers = #tpu.dot_dimension_numbers<[1], [1], [0], [0], [0, 0, 1, 0], [], []>} : vector<8x8xf32>, vector<8x8xf32>, vector<8x8xf32> -> vector<8x8xf32>
    "tpu.trace_stop"() : () -> ()
    %cst_220 = arith.constant 0.353553385 : f32
    %351 = vector.broadcast %cst_220 : f32 to vector<8x8xf32>
    %352 = arith.mulf %350, %351 : vector<8x8xf32>
    %353 = vector.broadcast %286 : vector<1x8xf32> to vector<8x8xf32>
    %354 = arith.addf %352, %353 : vector<8x8xf32>
    %cst_221 = arith.constant dense<0xFF800000> : vector<8xf32>
    %355 = vector.multi_reduction <maximumf>, %354, %cst_221 [1] : vector<8x8xf32> to vector<8xf32>
    %356 = vector.shape_cast %355 : vector<8xf32> to vector<8x1xf32>
    %357 = vector.broadcast %356 : vector<8x1xf32> to vector<8x8xf32>
    %358 = arith.subf %354, %357 : vector<8x8xf32>
    %359 = math.exp %358 : vector<8x8xf32>
    %cst_222 = arith.constant dense<0.000000e+00> : vector<8xf32>
    %360 = vector.multi_reduction <add>, %359, %cst_222 [1] : vector<8x8xf32> to vector<8xf32>
    %361 = vector.shape_cast %360 : vector<8xf32> to vector<8x1xf32>
    %362 = tpu.reciprocal %361 {approx = true} : vector<8x1xf32> -> vector<8x1xf32>
    %363 = vector.broadcast %362 : vector<8x1xf32> to vector<8x8xf32>
    %364 = arith.mulf %359, %363 : vector<8x8xf32>
    %cst_223 = arith.constant dense<0.000000e+00> : vector<8x8xf32>
    %365 = tpu.matmul %364, %349, %cst_223 {dimension_numbers = #tpu.dot_dimension_numbers<[1], [0], [0], [1], [0, 0, 1, 1], [], []>} : vector<8x8xf32>, vector<8x8xf32>, vector<8x8xf32> -> vector<8x8xf32>
    %c0_224 = arith.constant 0 : index
    %c24_225 = arith.constant 24 : index
    %366 = vector.load %arg22[%c0_224, %c24_225] : memref<16x32xf32, #tpu.memory_space<vmem>>, vector<8x8xf32>
    tpu.vector_store %arg22[%c0_224, %c24_225], %365 {strides = array<i32>} : memref<16x32xf32, #tpu.memory_space<vmem>>, vector<8x8xf32>,
    %c1_226 = arith.constant 1 : index
    %c0_227 = arith.constant 0 : index
    %367 = vector.load %arg1[%c1_226, %c0_227] : memref<2x8xf32, #tpu.memory_space<vmem>>, vector<1x8xf32>
    %c8_228 = arith.constant 8 : index
    %c0_229 = arith.constant 0 : index
    %368 = vector.load %arg21[%c8_228, %c0_229] : memref<16x128xf32, #tpu.memory_space<vmem>>, vector<8x8xf32>
    %c8_230 = arith.constant 8 : index
    %c32_231 = arith.constant 32 : index
    %369 = vector.load %arg21[%c8_230, %c32_231] : memref<16x128xf32, #tpu.memory_space<vmem>>, vector<8x8xf32>
    %c8_232 = arith.constant 8 : index
    %c64_233 = arith.constant 64 : index
    %370 = vector.load %arg21[%c8_232, %c64_233] : memref<16x128xf32, #tpu.memory_space<vmem>>, vector<8x8xf32>
    "tpu.trace_start"() <{level = 10 : i32, message = "qd,kd->qk"}> : () -> ()
    %cst_234 = arith.constant dense<0.000000e+00> : vector<8x8xf32>
    %371 = tpu.matmul %368, %369, %cst_234 {dimension_numbers = #tpu.dot_dimension_numbers<[1], [1], [0], [0], [0, 0, 1, 0], [], []>} : vector<8x8xf32>, vector<8x8xf32>, vector<8x8xf32> -> vector<8x8xf32>
    "tpu.trace_stop"() : () -> ()
    %cst_235 = arith.constant 0.353553385 : f32
    %372 = vector.broadcast %cst_235 : f32 to vector<8x8xf32>
    %373 = arith.mulf %371, %372 : vector<8x8xf32>
    %374 = vector.broadcast %367 : vector<1x8xf32> to vector<8x8xf32>
    %375 = arith.addf %373, %374 : vector<8x8xf32>
    %cst_236 = arith.constant dense<0xFF800000> : vector<8xf32>
    %376 = vector.multi_reduction <maximumf>, %375, %cst_236 [1] : vector<8x8xf32> to vector<8xf32>
    %377 = vector.shape_cast %376 : vector<8xf32> to vector<8x1xf32>
    %378 = vector.broadcast %377 : vector<8x1xf32> to vector<8x8xf32>
    %379 = arith.subf %375, %378 : vector<8x8xf32>
    %380 = math.exp %379 : vector<8x8xf32>
    %cst_237 = arith.constant dense<0.000000e+00> : vector<8xf32>
    %381 = vector.multi_reduction <add>, %380, %cst_237 [1] : vector<8x8xf32> to vector<8xf32>
    %382 = vector.shape_cast %381 : vector<8xf32> to vector<8x1xf32>
    %383 = tpu.reciprocal %382 {approx = true} : vector<8x1xf32> -> vector<8x1xf32>
    %384 = vector.broadcast %383 : vector<8x1xf32> to vector<8x8xf32>
    %385 = arith.mulf %380, %384 : vector<8x8xf32>
    %cst_238 = arith.constant dense<0.000000e+00> : vector<8x8xf32>
    %386 = tpu.matmul %385, %370, %cst_238 {dimension_numbers = #tpu.dot_dimension_numbers<[1], [0], [0], [1], [0, 0, 1, 1], [], []>} : vector<8x8xf32>, vector<8x8xf32>, vector<8x8xf32> -> vector<8x8xf32>
    %c8_239 = arith.constant 8 : index
    %c0_240 = arith.constant 0 : index
    %387 = vector.load %arg22[%c8_239, %c0_240] : memref<16x32xf32, #tpu.memory_space<vmem>>, vector<8x8xf32>
    tpu.vector_store %arg22[%c8_239, %c0_240], %386 {strides = array<i32>} : memref<16x32xf32, #tpu.memory_space<vmem>>, vector<8x8xf32>,
    %c8_241 = arith.constant 8 : index
    %c8_242 = arith.constant 8 : index
    %388 = vector.load %arg21[%c8_241, %c8_242] : memref<16x128xf32, #tpu.memory_space<vmem>>, vector<8x8xf32>
    %c8_243 = arith.constant 8 : index
    %c40_244 = arith.constant 40 : index
    %389 = vector.load %arg21[%c8_243, %c40_244] : memref<16x128xf32, #tpu.memory_space<vmem>>, vector<8x8xf32>
    %c8_245 = arith.constant 8 : index
    %c72_246 = arith.constant 72 : index
    %390 = vector.load %arg21[%c8_245, %c72_246] : memref<16x128xf32, #tpu.memory_space<vmem>>, vector<8x8xf32>
    "tpu.trace_start"() <{level = 10 : i32, message = "qd,kd->qk"}> : () -> ()
    %cst_247 = arith.constant dense<0.000000e+00> : vector<8x8xf32>
    %391 = tpu.matmul %388, %389, %cst_247 {dimension_numbers = #tpu.dot_dimension_numbers<[1], [1], [0], [0], [0, 0, 1, 0], [], []>} : vector<8x8xf32>, vector<8x8xf32>, vector<8x8xf32> -> vector<8x8xf32>
    "tpu.trace_stop"() : () -> ()
    %cst_248 = arith.constant 0.353553385 : f32
    %392 = vector.broadcast %cst_248 : f32 to vector<8x8xf32>
    %393 = arith.mulf %391, %392 : vector<8x8xf32>
    %394 = vector.broadcast %367 : vector<1x8xf32> to vector<8x8xf32>
    %395 = arith.addf %393, %394 : vector<8x8xf32>
    %cst_249 = arith.constant dense<0xFF800000> : vector<8xf32>
    %396 = vector.multi_reduction <maximumf>, %395, %cst_249 [1] : vector<8x8xf32> to vector<8xf32>
    %397 = vector.shape_cast %396 : vector<8xf32> to vector<8x1xf32>
    %398 = vector.broadcast %397 : vector<8x1xf32> to vector<8x8xf32>
    %399 = arith.subf %395, %398 : vector<8x8xf32>
    %400 = math.exp %399 : vector<8x8xf32>
    %cst_250 = arith.constant dense<0.000000e+00> : vector<8xf32>
    %401 = vector.multi_reduction <add>, %400, %cst_250 [1] : vector<8x8xf32> to vector<8xf32>
    %402 = vector.shape_cast %401 : vector<8xf32> to vector<8x1xf32>
    %403 = tpu.reciprocal %402 {approx = true} : vector<8x1xf32> -> vector<8x1xf32>
    %404 = vector.broadcast %403 : vector<8x1xf32> to vector<8x8xf32>
    %405 = arith.mulf %400, %404 : vector<8x8xf32>
    %cst_251 = arith.constant dense<0.000000e+00> : vector<8x8xf32>
    %406 = tpu.matmul %405, %390, %cst_251 {dimension_numbers = #tpu.dot_dimension_numbers<[1], [0], [0], [1], [0, 0, 1, 1], [], []>} : vector<8x8xf32>, vector<8x8xf32>, vector<8x8xf32> -> vector<8x8xf32>
    %c8_252 = arith.constant 8 : index
    %c8_253 = arith.constant 8 : index
    %407 = vector.load %arg22[%c8_252, %c8_253] : memref<16x32xf32, #tpu.memory_space<vmem>>, vector<8x8xf32>
    tpu.vector_store %arg22[%c8_252, %c8_253], %406 {strides = array<i32>} : memref<16x32xf32, #tpu.memory_space<vmem>>, vector<8x8xf32>,
    %c8_254 = arith.constant 8 : index
    %c16_255 = arith.constant 16 : index
    %408 = vector.load %arg21[%c8_254, %c16_255] : memref<16x128xf32, #tpu.memory_space<vmem>>, vector<8x8xf32>
    %c8_256 = arith.constant 8 : index
    %c48_257 = arith.constant 48 : index
    %409 = vector.load %arg21[%c8_256, %c48_257] : memref<16x128xf32, #tpu.memory_space<vmem>>, vector<8x8xf32>
    %c8_258 = arith.constant 8 : index
    %c80_259 = arith.constant 80 : index
    %410 = vector.load %arg21[%c8_258, %c80_259] : memref<16x128xf32, #tpu.memory_space<vmem>>, vector<8x8xf32>
    "tpu.trace_start"() <{level = 10 : i32, message = "qd,kd->qk"}> : () -> ()
    %cst_260 = arith.constant dense<0.000000e+00> : vector<8x8xf32>
    %411 = tpu.matmul %408, %409, %cst_260 {dimension_numbers = #tpu.dot_dimension_numbers<[1], [1], [0], [0], [0, 0, 1, 0], [], []>} : vector<8x8xf32>, vector<8x8xf32>, vector<8x8xf32> -> vector<8x8xf32>
    "tpu.trace_stop"() : () -> ()
    %cst_261 = arith.constant 0.353553385 : f32
    %412 = vector.broadcast %cst_261 : f32 to vector<8x8xf32>
    %413 = arith.mulf %411, %412 : vector<8x8xf32>
    %414 = vector.broadcast %367 : vector<1x8xf32> to vector<8x8xf32>
    %415 = arith.addf %413, %414 : vector<8x8xf32>
    %cst_262 = arith.constant dense<0xFF800000> : vector<8xf32>
    %416 = vector.multi_reduction <maximumf>, %415, %cst_262 [1] : vector<8x8xf32> to vector<8xf32>
    %417 = vector.shape_cast %416 : vector<8xf32> to vector<8x1xf32>
    %418 = vector.broadcast %417 : vector<8x1xf32> to vector<8x8xf32>
    %419 = arith.subf %415, %418 : vector<8x8xf32>
    %420 = math.exp %419 : vector<8x8xf32>
    %cst_263 = arith.constant dense<0.000000e+00> : vector<8xf32>
    %421 = vector.multi_reduction <add>, %420, %cst_263 [1] : vector<8x8xf32> to vector<8xf32>
    %422 = vector.shape_cast %421 : vector<8xf32> to vector<8x1xf32>
    %423 = tpu.reciprocal %422 {approx = true} : vector<8x1xf32> -> vector<8x1xf32>
    %424 = vector.broadcast %423 : vector<8x1xf32> to vector<8x8xf32>
    %425 = arith.mulf %420, %424 : vector<8x8xf32>
    %cst_264 = arith.constant dense<0.000000e+00> : vector<8x8xf32>
    %426 = tpu.matmul %425, %410, %cst_264 {dimension_numbers = #tpu.dot_dimension_numbers<[1], [0], [0], [1], [0, 0, 1, 1], [], []>} : vector<8x8xf32>, vector<8x8xf32>, vector<8x8xf32> -> vector<8x8xf32>
    %c8_265 = arith.constant 8 : index
    %c16_266 = arith.constant 16 : index
    %427 = vector.load %arg22[%c8_265, %c16_266] : memref<16x32xf32, #tpu.memory_space<vmem>>, vector<8x8xf32>
    tpu.vector_store %arg22[%c8_265, %c16_266], %426 {strides = array<i32>} : memref<16x32xf32, #tpu.memory_space<vmem>>, vector<8x8xf32>,
    %c8_267 = arith.constant 8 : index
    %c24_268 = arith.constant 24 : index
    %428 = vector.load %arg21[%c8_267, %c24_268] : memref<16x128xf32, #tpu.memory_space<vmem>>, vector<8x8xf32>
    %c8_269 = arith.constant 8 : index
    %c56_270 = arith.constant 56 : index
    %429 = vector.load %arg21[%c8_269, %c56_270] : memref<16x128xf32, #tpu.memory_space<vmem>>, vector<8x8xf32>
    %c8_271 = arith.constant 8 : index
    %c88_272 = arith.constant 88 : index
    %430 = vector.load %arg21[%c8_271, %c88_272] : memref<16x128xf32, #tpu.memory_space<vmem>>, vector<8x8xf32>
    "tpu.trace_start"() <{level = 10 : i32, message = "qd,kd->qk"}> : () -> ()
    %cst_273 = arith.constant dense<0.000000e+00> : vector<8x8xf32>
    %431 = tpu.matmul %428, %429, %cst_273 {dimension_numbers = #tpu.dot_dimension_numbers<[1], [1], [0], [0], [0, 0, 1, 0], [], []>} : vector<8x8xf32>, vector<8x8xf32>, vector<8x8xf32> -> vector<8x8xf32>
    "tpu.trace_stop"() : () -> ()
    %cst_274 = arith.constant 0.353553385 : f32
    %432 = vector.broadcast %cst_274 : f32 to vector<8x8xf32>
    %433 = arith.mulf %431, %432 : vector<8x8xf32>
    %434 = vector.broadcast %367 : vector<1x8xf32> to vector<8x8xf32>
    %435 = arith.addf %433, %434 : vector<8x8xf32>
    %cst_275 = arith.constant dense<0xFF800000> : vector<8xf32>
    %436 = vector.multi_reduction <maximumf>, %435, %cst_275 [1] : vector<8x8xf32> to vector<8xf32>
    %437 = vector.shape_cast %436 : vector<8xf32> to vector<8x1xf32>
    %438 = vector.broadcast %437 : vector<8x1xf32> to vector<8x8xf32>
    %439 = arith.subf %435, %438 : vector<8x8xf32>
    %440 = math.exp %439 : vector<8x8xf32>
    %cst_276 = arith.constant dense<0.000000e+00> : vector<8xf32>
    %441 = vector.multi_reduction <add>, %440, %cst_276 [1] : vector<8x8xf32> to vector<8xf32>
    %442 = vector.shape_cast %441 : vector<8xf32> to vector<8x1xf32>
    %443 = tpu.reciprocal %442 {approx = true} : vector<8x1xf32> -> vector<8x1xf32>
    %444 = vector.broadcast %443 : vector<8x1xf32> to vector<8x8xf32>
    %445 = arith.mulf %440, %444 : vector<8x8xf32>
    %cst_277 = arith.constant dense<0.000000e+00> : vector<8x8xf32>
    %446 = tpu.matmul %445, %430, %cst_277 {dimension_numbers = #tpu.dot_dimension_numbers<[1], [0], [0], [1], [0, 0, 1, 1], [], []>} : vector<8x8xf32>, vector<8x8xf32>, vector<8x8xf32> -> vector<8x8xf32>
    %c8_278 = arith.constant 8 : index
    %c24_279 = arith.constant 24 : index
    %447 = vector.load %arg22[%c8_278, %c24_279] : memref<16x32xf32, #tpu.memory_space<vmem>>, vector<8x8xf32>
    tpu.vector_store %arg22[%c8_278, %c24_279], %446 {strides = array<i32>} : memref<16x32xf32, #tpu.memory_space<vmem>>, vector<8x8xf32>,
    %c0_280 = arith.constant 0 : index
    %c0_281 = arith.constant 0 : index
    %448 = vector.load %arg22[%c0_280, %c0_281] : memref<16x32xf32, #tpu.memory_space<vmem>>, vector<16x32xf32>
    %c1_282 = arith.constant 1 : index
    %c0_283 = arith.constant 0 : index
    %c0_284 = arith.constant 0 : index
    %449 = vector.load %arg6[%c1_282, %c0_283, %c0_284] : memref<2x32x32xf32, #tpu.memory_space<vmem>>, vector<1x32x32xf32>
    %450 = vector.shape_cast %449 : vector<1x32x32xf32> to vector<32x32xf32>
    %cst_285 = arith.constant dense<0.000000e+00> : vector<16x32xf32>
    %451 = tpu.matmul %448, %450, %cst_285 {dimension_numbers = #tpu.dot_dimension_numbers<[1], [0], [0], [1], [0, 0, 1, 1], [], []>} : vector<16x32xf32>, vector<32x32xf32>, vector<16x32xf32> -> vector<16x32xf32>
    %c1_286 = arith.constant 1 : index
    %c0_287 = arith.constant 0 : index
    %c0_288 = arith.constant 0 : index
    %452 = vector.load %arg7[%c1_286, %c0_287, %c0_288] : memref<2x1x32xf32, #tpu.memory_space<vmem>>, vector<1x1x32xf32>
    %453 = vector.shape_cast %452 : vector<1x1x32xf32> to vector<1x32xf32>
    %454 = vector.broadcast %453 : vector<1x32xf32> to vector<16x32xf32>
    %455 = arith.addf %451, %454 : vector<16x32xf32>
    %456 = arith.addf %455, %277 : vector<16x32xf32>
    %c1_289 = arith.constant 1 : index
    %c0_290 = arith.constant 0 : index
    %c0_291 = arith.constant 0 : index
    %457 = vector.load %arg8[%c1_289, %c0_290, %c0_291] : memref<2x1x32xf32, #tpu.memory_space<vmem>>, vector<1x1x32xf32>
    %458 = vector.shape_cast %457 : vector<1x1x32xf32> to vector<1x32xf32>
    %c1_292 = arith.constant 1 : index
    %c0_293 = arith.constant 0 : index
    %c0_294 = arith.constant 0 : index
    %459 = vector.load %arg9[%c1_292, %c0_293, %c0_294] : memref<2x1x32xf32, #tpu.memory_space<vmem>>, vector<1x1x32xf32>
    %460 = vector.shape_cast %459 : vector<1x1x32xf32> to vector<1x32xf32>
    %cst_295 = arith.constant dense<0.000000e+00> : vector<16xf32>
    %461 = vector.multi_reduction <add>, %456, %cst_295 [1] : vector<16x32xf32> to vector<16xf32>
    %462 = vector.shape_cast %461 : vector<16xf32> to vector<16x1xf32>
    %cst_296 = arith.constant 3.200000e+01 : f32
    %463 = vector.broadcast %cst_296 : f32 to vector<16x1xf32>
    %464 = arith.divf %462, %463 : vector<16x1xf32>
    %465 = vector.broadcast %464 : vector<16x1xf32> to vector<16x32xf32>
    %466 = arith.subf %456, %465 : vector<16x32xf32>
    %467 = arith.mulf %466, %466 : vector<16x32xf32>
    %cst_297 = arith.constant dense<0.000000e+00> : vector<16xf32>
    %468 = vector.multi_reduction <add>, %467, %cst_297 [1] : vector<16x32xf32> to vector<16xf32>
    %469 = vector.shape_cast %468 : vector<16xf32> to vector<16x1xf32>
    %cst_298 = arith.constant 3.200000e+01 : f32
    %470 = vector.broadcast %cst_298 : f32 to vector<16x1xf32>
    %471 = arith.divf %469, %470 : vector<16x1xf32>
    %cst_299 = arith.constant 9.99999974E-6 : f32
    %472 = vector.broadcast %cst_299 : f32 to vector<16x1xf32>
    %473 = arith.addf %471, %472 : vector<16x1xf32>
    %474 = math.rsqrt %473 : vector<16x1xf32>
    %475 = vector.broadcast %474 : vector<16x1xf32> to vector<16x32xf32>
    %476 = arith.mulf %466, %475 : vector<16x32xf32>
    %477 = vector.broadcast %458 : vector<1x32xf32> to vector<16x32xf32>
    %478 = arith.mulf %476, %477 : vector<16x32xf32>
    %479 = vector.broadcast %460 : vector<1x32xf32> to vector<16x32xf32>
    %480 = arith.addf %478, %479 : vector<16x32xf32>
    %c1_300 = arith.constant 1 : index
    %c0_301 = arith.constant 0 : index
    %c0_302 = arith.constant 0 : index
    %481 = vector.load %arg10[%c1_300, %c0_301, %c0_302] : memref<2x32x128xf32, #tpu.memory_space<vmem>>, vector<1x32x128xf32>
    %482 = vector.shape_cast %481 : vector<1x32x128xf32> to vector<32x128xf32>
    %cst_303 = arith.constant dense<0.000000e+00> : vector<16x128xf32>
    %483 = tpu.matmul %480, %482, %cst_303 {dimension_numbers = #tpu.dot_dimension_numbers<[1], [0], [0], [1], [0, 0, 1, 1], [], []>} : vector<16x32xf32>, vector<32x128xf32>, vector<16x128xf32> -> vector<16x128xf32>
    %c1_304 = arith.constant 1 : index
    %c0_305 = arith.constant 0 : index
    %c0_306 = arith.constant 0 : index
    %484 = vector.load %arg11[%c1_304, %c0_305, %c0_306] : memref<2x1x128xf32, #tpu.memory_space<vmem>>, vector<1x1x128xf32>
    %485 = vector.shape_cast %484 : vector<1x1x128xf32> to vector<1x128xf32>
    %486 = vector.broadcast %485 : vector<1x128xf32> to vector<16x128xf32>
    %487 = arith.addf %483, %486 : vector<16x128xf32>
    %cst_307 = arith.constant 5.000000e-01 : f32
    %488 = vector.broadcast %cst_307 : f32 to vector<16x128xf32>
    %489 = arith.mulf %488, %487 : vector<16x128xf32>
    %cst_308 = arith.constant 4.471500e-02 : f32
    %490 = vector.broadcast %cst_308 : f32 to vector<16x128xf32>
    %491 = arith.mulf %490, %487 : vector<16x128xf32>
    %492 = arith.mulf %491, %487 : vector<16x128xf32>
    %493 = arith.mulf %492, %487 : vector<16x128xf32>
    %494 = arith.addf %487, %493 : vector<16x128xf32>
    %cst_309 = arith.constant 0.797884583 : f32
    %495 = vector.broadcast %cst_309 : f32 to vector<16x128xf32>
    %496 = arith.mulf %495, %494 : vector<16x128xf32>
    %497 = math.tanh %496 : vector<16x128xf32>
    %cst_310 = arith.constant 1.000000e+00 : f32
    %498 = vector.broadcast %cst_310 : f32 to vector<16x128xf32>
    %499 = arith.addf %498, %497 : vector<16x128xf32>
    %500 = arith.mulf %489, %499 : vector<16x128xf32>
    %c1_311 = arith.constant 1 : index
    %c0_312 = arith.constant 0 : index
    %c0_313 = arith.constant 0 : index
    %501 = vector.load %arg12[%c1_311, %c0_312, %c0_313] : memref<2x128x32xf32, #tpu.memory_space<vmem>>, vector<1x128x32xf32>
    %502 = vector.shape_cast %501 : vector<1x128x32xf32> to vector<128x32xf32>
    %cst_314 = arith.constant dense<0.000000e+00> : vector<16x32xf32>
    %503 = tpu.matmul %500, %502, %cst_314 {dimension_numbers = #tpu.dot_dimension_numbers<[1], [0], [0], [1], [0, 0, 1, 1], [], []>} : vector<16x128xf32>, vector<128x32xf32>, vector<16x32xf32> -> vector<16x32xf32>
    %c1_315 = arith.constant 1 : index
    %c0_316 = arith.constant 0 : index
    %c0_317 = arith.constant 0 : index
    %504 = vector.load %arg13[%c1_315, %c0_316, %c0_317] : memref<2x1x32xf32, #tpu.memory_space<vmem>>, vector<1x1x32xf32>
    %505 = vector.shape_cast %504 : vector<1x1x32xf32> to vector<1x32xf32>
    %506 = vector.broadcast %505 : vector<1x32xf32> to vector<16x32xf32>
    %507 = arith.addf %503, %506 : vector<16x32xf32>
    %508 = arith.addf %507, %480 : vector<16x32xf32>
    %c1_318 = arith.constant 1 : index
    %c0_319 = arith.constant 0 : index
    %c0_320 = arith.constant 0 : index
    %509 = vector.load %arg14[%c1_318, %c0_319, %c0_320] : memref<2x1x32xf32, #tpu.memory_space<vmem>>, vector<1x1x32xf32>
    %510 = vector.shape_cast %509 : vector<1x1x32xf32> to vector<1x32xf32>
    %c1_321 = arith.constant 1 : index
    %c0_322 = arith.constant 0 : index
    %c0_323 = arith.constant 0 : index
    %511 = vector.load %arg15[%c1_321, %c0_322, %c0_323] : memref<2x1x32xf32, #tpu.memory_space<vmem>>, vector<1x1x32xf32>
    %512 = vector.shape_cast %511 : vector<1x1x32xf32> to vector<1x32xf32>
    %cst_324 = arith.constant dense<0.000000e+00> : vector<16xf32>
    %513 = vector.multi_reduction <add>, %508, %cst_324 [1] : vector<16x32xf32> to vector<16xf32>
    %514 = vector.shape_cast %513 : vector<16xf32> to vector<16x1xf32>
    %cst_325 = arith.constant 3.200000e+01 : f32
    %515 = vector.broadcast %cst_325 : f32 to vector<16x1xf32>
    %516 = arith.divf %514, %515 : vector<16x1xf32>
    %517 = vector.broadcast %516 : vector<16x1xf32> to vector<16x32xf32>
    %518 = arith.subf %508, %517 : vector<16x32xf32>
    %519 = arith.mulf %518, %518 : vector<16x32xf32>
    %cst_326 = arith.constant dense<0.000000e+00> : vector<16xf32>
    %520 = vector.multi_reduction <add>, %519, %cst_326 [1] : vector<16x32xf32> to vector<16xf32>
    %521 = vector.shape_cast %520 : vector<16xf32> to vector<16x1xf32>
    %cst_327 = arith.constant 3.200000e+01 : f32
    %522 = vector.broadcast %cst_327 : f32 to vector<16x1xf32>
    %523 = arith.divf %521, %522 : vector<16x1xf32>
    %cst_328 = arith.constant 9.99999974E-6 : f32
    %524 = vector.broadcast %cst_328 : f32 to vector<16x1xf32>
    %525 = arith.addf %523, %524 : vector<16x1xf32>
    %526 = math.rsqrt %525 : vector<16x1xf32>
    %527 = vector.broadcast %526 : vector<16x1xf32> to vector<16x32xf32>
    %528 = arith.mulf %518, %527 : vector<16x32xf32>
    %529 = vector.broadcast %510 : vector<1x32xf32> to vector<16x32xf32>
    %530 = arith.mulf %528, %529 : vector<16x32xf32>
    %531 = vector.broadcast %512 : vector<1x32xf32> to vector<16x32xf32>
    %532 = arith.addf %530, %531 : vector<16x32xf32>
    %c0_329 = arith.constant 0 : index
    %c0_330 = arith.constant 0 : index
    %533 = vector.load %arg22[%c0_329, %c0_330] : memref<16x32xf32, #tpu.memory_space<vmem>>, vector<16x32xf32>
    tpu.vector_store %arg22[%c0_329, %c0_330], %532 {strides = array<i32>} : memref<16x32xf32, #tpu.memory_space<vmem>>, vector<16x32xf32>,
    %c0_331 = arith.constant 0 : index
    %c0_332 = arith.constant 0 : index
    %534 = vector.load %arg22[%c0_331, %c0_332] : memref<16x32xf32, #tpu.memory_space<vmem>>, vector<1x32xf32>
    %c0_333 = arith.constant 0 : index
    %c0_334 = arith.constant 0 : index
    %535 = vector.load %arg16[%c0_333, %c0_334] : memref<32x32xf32, #tpu.memory_space<vmem>>, vector<32x32xf32>
    %cst_335 = arith.constant dense<0.000000e+00> : vector<1x32xf32>
    %536 = tpu.matmul %534, %535, %cst_335 {dimension_numbers = #tpu.dot_dimension_numbers<[1], [0], [0], [1], [0, 0, 1, 1], [], []>} : vector<1x32xf32>, vector<32x32xf32>, vector<1x32xf32> -> vector<1x32xf32>
    %c0_336 = arith.constant 0 : index
    %c0_337 = arith.constant 0 : index
    %537 = vector.load %arg17[%c0_336, %c0_337] : memref<1x32xf32, #tpu.memory_space<vmem>>, vector<1x32xf32>
    %538 = arith.addf %536, %537 : vector<1x32xf32>
    %539 = math.tanh %538 : vector<1x32xf32>
    %c0_338 = arith.constant 0 : index
    %c0_339 = arith.constant 0 : index
    %540 = vector.load %arg18[%c0_338, %c0_339] : memref<1x32xf32, #tpu.memory_space<vmem>>, vector<1x32xf32>
    %541 = arith.mulf %539, %540 : vector<1x32xf32>
    %cst_340 = arith.constant dense<0.000000e+00> : vector<1xf32>
    %542 = vector.multi_reduction <add>, %541, %cst_340 [1] : vector<1x32xf32> to vector<1xf32>
    %543 = vector.shape_cast %542 : vector<1xf32> to vector<1x1xf32>
    %c0_341 = arith.constant 0 : index
    %c0_342 = arith.constant 0 : index
    %544 = vector.load %arg19[%c0_341, %c0_342] : memref<1x1xf32, #tpu.memory_space<vmem>>, vector<1x1xf32>
    %545 = arith.addf %543, %544 : vector<1x1xf32>
    %546 = arith.negf %545 : vector<1x1xf32>
    %547 = math.exp %546 : vector<1x1xf32>
    %cst_343 = arith.constant 1.000000e+00 : f32
    %548 = vector.broadcast %cst_343 : f32 to vector<1x1xf32>
    %549 = arith.addf %548, %547 : vector<1x1xf32>
    %550 = arith.divf %548, %549 : vector<1x1xf32>
    %c0_344 = arith.constant 0 : index
    %c0_345 = arith.constant 0 : index
    %551 = vector.load %arg20[%c0_344, %c0_345] : memref<2x1xf32, #tpu.memory_space<vmem>>, vector<1x1xf32>
    tpu.vector_store %arg20[%c0_344, %c0_345], %550 {strides = array<i32>} : memref<2x1xf32, #tpu.memory_space<vmem>>, vector<1x1xf32>,
    %c8_346 = arith.constant 8 : index
    %c0_347 = arith.constant 0 : index
    %552 = vector.load %arg22[%c8_346, %c0_347] : memref<16x32xf32, #tpu.memory_space<vmem>>, vector<1x32xf32>
    %c0_348 = arith.constant 0 : index
    %c0_349 = arith.constant 0 : index
    %553 = vector.load %arg16[%c0_348, %c0_349] : memref<32x32xf32, #tpu.memory_space<vmem>>, vector<32x32xf32>
    %cst_350 = arith.constant dense<0.000000e+00> : vector<1x32xf32>
    %554 = tpu.matmul %552, %553, %cst_350 {dimension_numbers = #tpu.dot_dimension_numbers<[1], [0], [0], [1], [0, 0, 1, 1], [], []>} : vector<1x32xf32>, vector<32x32xf32>, vector<1x32xf32> -> vector<1x32xf32>
    %c0_351 = arith.constant 0 : index
    %c0_352 = arith.constant 0 : index
    %555 = vector.load %arg17[%c0_351, %c0_352] : memref<1x32xf32, #tpu.memory_space<vmem>>, vector<1x32xf32>
    %556 = arith.addf %554, %555 : vector<1x32xf32>
    %557 = math.tanh %556 : vector<1x32xf32>
    %c0_353 = arith.constant 0 : index
    %c0_354 = arith.constant 0 : index
    %558 = vector.load %arg18[%c0_353, %c0_354] : memref<1x32xf32, #tpu.memory_space<vmem>>, vector<1x32xf32>
    %559 = arith.mulf %557, %558 : vector<1x32xf32>
    %cst_355 = arith.constant dense<0.000000e+00> : vector<1xf32>
    %560 = vector.multi_reduction <add>, %559, %cst_355 [1] : vector<1x32xf32> to vector<1xf32>
    %561 = vector.shape_cast %560 : vector<1xf32> to vector<1x1xf32>
    %c0_356 = arith.constant 0 : index
    %c0_357 = arith.constant 0 : index
    %562 = vector.load %arg19[%c0_356, %c0_357] : memref<1x1xf32, #tpu.memory_space<vmem>>, vector<1x1xf32>
    %563 = arith.addf %561, %562 : vector<1x1xf32>
    %564 = arith.negf %563 : vector<1x1xf32>
    %565 = math.exp %564 : vector<1x1xf32>
    %cst_358 = arith.constant 1.000000e+00 : f32
    %566 = vector.broadcast %cst_358 : f32 to vector<1x1xf32>
    %567 = arith.addf %566, %565 : vector<1x1xf32>
    %568 = arith.divf %566, %567 : vector<1x1xf32>
    %c1_359 = arith.constant 1 : index
    %c0_360 = arith.constant 0 : index
    %569 = vector.load %arg20[%c1_359, %c0_360] : memref<2x1xf32, #tpu.memory_space<vmem>>, vector<1x1xf32>
    tpu.vector_store %arg20[%c1_359, %c0_360], %568 {strides = array<i32>} : memref<2x1xf32, #tpu.memory_space<vmem>>, vector<1x1xf32>,
    return
  }
}

</mosaic_0001>

<llo_original>
// kernel: roberta_xlm_forward.1
$region0: #{roberta_xlm_forward.1}
  #allocation0 [shape = 'u32[]', space=smem, size = 0x4, offset = 0x4, fixed_abs, tag = 'smem constant byte address 0x4 - core index']
  #allocation1 [shape = 'u32[144,128]{1,0:T(1,128)}', space=vmem, size = 0x12000, scoped, tag = 'internal scratch']
  #allocation2 [shape = 'f32[16,128]{1,0:T(8,128)}', space=vmem, size = 0x2000, scoped, tag = 'scratch operand']
  #allocation3 [shape = 'f32[16,32]{1,0:T(8,128)}', space=vmem, size = 0x2000, scoped, tag = 'scratch operand']
  #allocation4 [shape = 'f32[1,1]{1,0:T(1,128)S(1)}', space=vmem, size = 0x200, scoped, tag = 'scoped memory for roberta_xlm_forward.1']
  %s0 = inlined_call_operand.vmem [shape: f32[16,32], index: 0, kind: input, shape index: {}]
  %s1 = inlined_call_operand.vmem [shape: f32[2,8], index: 1, kind: input, shape index: {}]
  %s2 = inlined_call_operand.vmem [shape: f32[1,32], index: 2, kind: input, shape index: {}]
  %s3 = inlined_call_operand.vmem [shape: f32[1,32], index: 3, kind: input, shape index: {}]
  %s4 = inlined_call_operand.vmem [shape: f32[2,32,128], index: 4, kind: input, shape index: {}]
  %s5 = inlined_call_operand.vmem [shape: f32[2,1,128], index: 5, kind: input, shape index: {}]
  %s6 = inlined_call_operand.vmem [shape: f32[2,32,32], index: 6, kind: input, shape index: {}]
  %s7 = inlined_call_operand.vmem [shape: f32[2,1,32], index: 7, kind: input, shape index: {}]
  %s8 = inlined_call_operand.vmem [shape: f32[2,1,32], index: 8, kind: input, shape index: {}]
  %s9 = inlined_call_operand.vmem [shape: f32[2,1,32], index: 9, kind: input, shape index: {}]
  %s10 = inlined_call_operand.vmem [shape: f32[2,32,128], index: 10, kind: input, shape index: {}]
  %s11 = inlined_call_operand.vmem [shape: f32[2,1,128], index: 11, kind: input, shape index: {}]
  %s12 = inlined_call_operand.vmem [shape: f32[2,128,32], index: 12, kind: input, shape index: {}]
  %s13 = inlined_call_operand.vmem [shape: f32[2,1,32], index: 13, kind: input, shape index: {}]
  %s14 = inlined_call_operand.vmem [shape: f32[2,1,32], index: 14, kind: input, shape index: {}]
  %s15 = inlined_call_operand.vmem [shape: f32[2,1,32], index: 15, kind: input, shape index: {}]
  %s16 = inlined_call_operand.vmem [shape: f32[32,32], index: 16, kind: input, shape index: {}]
  %s17 = inlined_call_operand.vmem [shape: f32[1,32], index: 17, kind: input, shape index: {}]
  %s18 = inlined_call_operand.vmem [shape: f32[1,32], index: 18, kind: input, shape index: {}]
  %s19 = inlined_call_operand.<no memory space> [shape: f32[1,1], index: 19, kind: input, shape index: {}]
  %s20 = inlined_call_operand.vmem [shape: f32[2,1], index: 20, kind: output, shape index: {}]
  %s21 = sld [smem:[#allocation0]]
  $region90: #{roberta_xlm_forward.1} parent=0
    _
  %s23 = ssub.s32 1, %s21
  %s24 = scalar_select 0, %s23, %s21
  %v25 = vstv %s19
  %26 = vst [vmem:[#allocation4] sm:$0x1] %v25
  // Predicated region
  $region2: #{roberta_xlm_forward.1} parent=0 // pred_check
    _
  $region3: #{roberta_xlm_forward.1} parent=0 // pred_check_branch
    %28 = sbr.rel (0) target = $region5
  $region4: #{roberta_xlm_forward.1} parent=0 // pred_region
    _
  $region5: #{roberta_xlm_forward.1} parent=0 // pred_fallthru
    _
  // Predicated region
  $region6: #{roberta_xlm_forward.1} parent=0 // pred_check
    _
  $region7: #{roberta_xlm_forward.1} parent=0 // pred_check_branch
    %30 = sbr.rel (0) target = $region9
  $region8: #{roberta_xlm_forward.1} parent=0 // pred_region
    _
  $region9: #{roberta_xlm_forward.1} parent=0 // pred_fallthru
    _
  // Predicated region
  $region10: #{roberta_xlm_forward.1} parent=0 // pred_check
    _
  $region11: #{roberta_xlm_forward.1} parent=0 // pred_check_branch
    %32 = sbr.rel (0) target = $region13
  $region12: #{roberta_xlm_forward.1} parent=0 // pred_region
    _
  $region13: #{roberta_xlm_forward.1} parent=0 // pred_fallthru
    _
  // Predicated region
  $region14: #{roberta_xlm_forward.1} parent=0 // pred_check
    _
  $region15: #{roberta_xlm_forward.1} parent=0 // pred_check_branch
    %34 = sbr.rel (0) target = $region17
  $region16: #{roberta_xlm_forward.1} parent=0 // pred_region
    _
  $region17: #{roberta_xlm_forward.1} parent=0 // pred_fallthru
    _
  // Predicated region
  $region18: #{roberta_xlm_forward.1} parent=0 // pred_check
    _
  $region19: #{roberta_xlm_forward.1} parent=0 // pred_check_branch
    %36 = sbr.rel (0) target = $region21
  $region20: #{roberta_xlm_forward.1} parent=0 // pred_region
    _
  $region21: #{roberta_xlm_forward.1} parent=0 // pred_fallthru
    _
  // Predicated region
  $region22: #{roberta_xlm_forward.1} parent=0 // pred_check
    _
  $region23: #{roberta_xlm_forward.1} parent=0 // pred_check_branch
    %38 = sbr.rel (0) target = $region25
  $region24: #{roberta_xlm_forward.1} parent=0 // pred_region
    _
  $region25: #{roberta_xlm_forward.1} parent=0 // pred_fallthru
    _
  // Predicated region
  $region26: #{roberta_xlm_forward.1} parent=0 // pred_check
    _
  $region27: #{roberta_xlm_forward.1} parent=0 // pred_check_branch
    %40 = sbr.rel (0) target = $region29
  $region28: #{roberta_xlm_forward.1} parent=0 // pred_region
    _
  $region29: #{roberta_xlm_forward.1} parent=0 // pred_fallthru
    _
  // Predicated region
  $region30: #{roberta_xlm_forward.1} parent=0 // pred_check
    _
  $region31: #{roberta_xlm_forward.1} parent=0 // pred_check_branch
    %42 = sbr.rel (0) target = $region33
  $region32: #{roberta_xlm_forward.1} parent=0 // pred_region
    _
  $region33: #{roberta_xlm_forward.1} parent=0 // pred_fallthru
    _
  // Predicated region
  $region34: #{roberta_xlm_forward.1} parent=0 // pred_check
    _
  $region35: #{roberta_xlm_forward.1} parent=0 // pred_check_branch
    %44 = sbr.rel (0) target = $region37
  $region36: #{roberta_xlm_forward.1} parent=0 // pred_region
    _
  $region37: #{roberta_xlm_forward.1} parent=0 // pred_fallthru
    _
  // Predicated region
  $region38: #{roberta_xlm_forward.1} parent=0 // pred_check
    _
  $region39: #{roberta_xlm_forward.1} parent=0 // pred_check_branch
    %46 = sbr.rel (0) target = $region41
  $region40: #{roberta_xlm_forward.1} parent=0 // pred_region
    _
  $region41: #{roberta_xlm_forward.1} parent=0 // pred_fallthru
    _
  // Predicated region
  $region42: #{roberta_xlm_forward.1} parent=0 // pred_check
    _
  $region43: #{roberta_xlm_forward.1} parent=0 // pred_check_branch
    %48 = sbr.rel (0) target = $region45
  $region44: #{roberta_xlm_forward.1} parent=0 // pred_region
    _
  $region45: #{roberta_xlm_forward.1} parent=0 // pred_fallthru
    _
  // Predicated region
  $region46: #{roberta_xlm_forward.1} parent=0 // pred_check
    _
  $region47: #{roberta_xlm_forward.1} parent=0 // pred_check_branch
    %50 = sbr.rel (0) target = $region49
  $region48: #{roberta_xlm_forward.1} parent=0 // pred_region
    _
  $region49: #{roberta_xlm_forward.1} parent=0 // pred_fallthru
    _
  // Predicated region
  $region50: #{roberta_xlm_forward.1} parent=0 // pred_check
    _
  $region51: #{roberta_xlm_forward.1} parent=0 // pred_check_branch
    %52 = sbr.rel (0) target = $region53
  $region52: #{roberta_xlm_forward.1} parent=0 // pred_region
    _
  $region53: #{roberta_xlm_forward.1} parent=0 // pred_fallthru
    _
  // Predicated region
  $region54: #{roberta_xlm_forward.1} parent=0 // pred_check
    _
  $region55: #{roberta_xlm_forward.1} parent=0 // pred_check_branch
    %54 = sbr.rel (0) target = $region57
  $region56: #{roberta_xlm_forward.1} parent=0 // pred_region
    _
  $region57: #{roberta_xlm_forward.1} parent=0 // pred_fallthru
    _
  // Predicated region
  $region58: #{roberta_xlm_forward.1} parent=0 // pred_check
    _
  $region59: #{roberta_xlm_forward.1} parent=0 // pred_check_branch
    %56 = sbr.rel (0) target = $region61
  $region60: #{roberta_xlm_forward.1} parent=0 // pred_region
    _
  $region61: #{roberta_xlm_forward.1} parent=0 // pred_fallthru
    _
  // Predicated region
  $region62: #{roberta_xlm_forward.1} parent=0 // pred_check
    _
  $region63: #{roberta_xlm_forward.1} parent=0 // pred_check_branch
    %58 = sbr.rel (0) target = $region65
  $region64: #{roberta_xlm_forward.1} parent=0 // pred_region
    _
  $region65: #{roberta_xlm_forward.1} parent=0 // pred_fallthru
    _
  // Predicated region
  $region66: #{roberta_xlm_forward.1} parent=0 // pred_check
    _
  $region67: #{roberta_xlm_forward.1} parent=0 // pred_check_branch
    %60 = sbr.rel (0) target = $region69
  $region68: #{roberta_xlm_forward.1} parent=0 // pred_region
    _
  $region69: #{roberta_xlm_forward.1} parent=0 // pred_fallthru
    _
  // Predicated region
  $region70: #{roberta_xlm_forward.1} parent=0 // pred_check
    _
  $region71: #{roberta_xlm_forward.1} parent=0 // pred_check_branch
    %62 = sbr.rel (0) target = $region73
  $region72: #{roberta_xlm_forward.1} parent=0 // pred_region
    _
  $region73: #{roberta_xlm_forward.1} parent=0 // pred_fallthru
    _
  // Predicated region
  $region74: #{roberta_xlm_forward.1} parent=0 // pred_check
    _
  $region75: #{roberta_xlm_forward.1} parent=0 // pred_check_branch
    %64 = sbr.rel (0) target = $region77
  $region76: #{roberta_xlm_forward.1} parent=0 // pred_region
    _
  $region77: #{roberta_xlm_forward.1} parent=0 // pred_fallthru
    _
  // Predicated region
  $region78: #{roberta_xlm_forward.1} parent=0 // pred_check
    _
  $region79: #{roberta_xlm_forward.1} parent=0 // pred_check_branch
    %66 = sbr.rel (0) target = $region81
  $region80: #{roberta_xlm_forward.1} parent=0 // pred_region
    _
  $region81: #{roberta_xlm_forward.1} parent=0 // pred_fallthru
    _
  %v67 = vld [vmem:[%s0] sm:$0xff]
  %v68 = vld [vmem:[%s0 + $0x8] sm:$0xff]
  %v69 = vld [vmem:[%s2] sm:$0x1]
  %v70 = vld [vmem:[%s3] sm:$0x1]
  %vm71 = vcmask 261120
  %v72 = vsel %vm71, %v67, 0.0
  %73 = vadd.xlane.f32.xlu0 %v72
  %v74 = vpop.xlane.xlu0 %73
  %v75 = vsel %vm71, %v68, 0.0
  %76 = vadd.xlane.f32.xlu0 %v75
  %v77 = vpop.xlane.xlu0 %76
  %v78 = vrcp.pop 32.0
  %v79 = vmul.f32 %v74, %v78
  %v80 = vmul.f32 %v77, %v78
  %v81 = vsub.f32 %v67, %v79
  %v82 = vsub.f32 %v68, %v80
  %v83 = vmul.f32 %v81, %v81
  %v84 = vmul.f32 %v82, %v82
  %v85 = vsel %vm71, %v83, 0.0
  %86 = vadd.xlane.f32.xlu0 %v85
  %v87 = vpop.xlane.xlu0 %86
  %v88 = vsel %vm71, %v84, 0.0
  %89 = vadd.xlane.f32.xlu0 %v88
  %v90 = vpop.xlane.xlu0 %89
  %v91 = vmul.f32 %v87, %v78
  %v92 = vmul.f32 %v90, %v78
  %v93 = vadd.f32 %v91, 1e-05
  %v94 = vadd.f32 %v92, 1e-05
  %v95 = vrsqrt.pop %v93
  %v96 = vrsqrt.pop %v94
  %v97 = vmul.f32 %v81, %v95
  %v98 = vmul.f32 %v82, %v96
  %v100 = vlaneseq
  %v101 = vshrl.u32 %v100, 7
  %v102 = vsub.s32 0, %v101
  %v103 = vrot.slane %v69, %v102
  %v105 = vmul.f32 %v97, %v103
  %v106 = vmul.f32 %v98, %v103
  %v108 = vlaneseq
  %v109 = vshrl.u32 %v108, 7
  %v110 = vsub.s32 0, %v109
  %v111 = vrot.slane %v70, %v110
  %v113 = vadd.f32 %v105, %v111
  %v114 = vadd.f32 %v106, %v111
  %v115 = vld [vmem:[%s4] sm:$0xff]
  %v116 = vld [vmem:[%s4 + $0x8] sm:$0xff]
  %v117 = vld [vmem:[%s4 + $0x10] sm:$0xff]
  %v118 = vld [vmem:[%s4 + $0x18] sm:$0xff]
  %v119 = vld [vmem:[%s5] sm:$0x1]
  %v121 = vlaneseq
  %v122 = vshrl.u32 %v121, 7
  %v123 = vsub.s32 0, %v122
  %v124 = vrot.slane %v119, %v123
  %v127 = vsel %vm71, %v113, 0
  %v130 = vsel %vm71, %v114, 0
  %132 = vmatprep.subr.mxu0 0.0
  %133 = vmatpush1.msra.mxu0 0.0
  %134 = vmatprep.subr.mxu0 0.0
  %135 = vmatpush1.msra.mxu0 0.0
  %136 = vmatprep.subr.mxu0 0.0
  %137 = vmatpush1.msra.mxu0 0.0
  %138 = vmatprep.subr.mxu0 0.0
  %139 = vmatpush1.msra.mxu0 0.0
  %140 = vmatprep.subr.mxu0 0.0
  %141 = vmatpush1.msra.mxu0 0.0
  %142 = vmatprep.subr.mxu0 0.0
  %143 = vmatpush1.msra.mxu0 0.0
  %144 = vmatprep.subr.mxu0 0.0
  %145 = vmatpush1.msra.mxu0 0.0
  %146 = vmatprep.subr.mxu0 0.0
  %147 = vmatpush1.msra.mxu0 0.0
  %148 = vmatprep.subr.mxu0 0.0
  %149 = vmatpush1.msra.mxu0 0.0
  %150 = vmatprep.subr.mxu0 0.0
  %151 = vmatpush1.msra.mxu0 0.0
  %152 = vmatprep.subr.mxu0 0.0
  %153 = vmatpush1.msra.mxu0 0.0
  %154 = vmatprep.subr.mxu0 0.0
  %155 = vmatpush1.msra.mxu0 0.0
  %156 = vmatprep.subr.mxu0 0.0
  %157 = vmatpush1.msra.mxu0 %v118
  %158 = vmatprep.subr.mxu0 0.0
  %159 = vmatpush1.msra.mxu0 %v117
  %160 = vmatprep.subr.mxu0 0.0
  %161 = vmatpush1.msra.mxu0 %v116
  %162 = vmatprep.subr.mxu0 0.0
  %163 = vmatpush1.msra.mxu0 %v115
  %164 = vmatprep.subr.mxu0 0.0
  %165 = vmatpush2.msra.mxu0 0.0
  %166 = vmatprep.subr.mxu0 0.0
  %167 = vmatpush2.msra.mxu0 0.0
  %168 = vmatprep.subr.mxu0 0.0
  %169 = vmatpush2.msra.mxu0 0.0
  %170 = vmatprep.subr.mxu0 0.0
  %171 = vmatpush2.msra.mxu0 0.0
  %172 = vmatprep.subr.mxu0 0.0
  %173 = vmatpush2.msra.mxu0 0.0
  %174 = vmatprep.subr.mxu0 0.0
  %175 = vmatpush2.msra.mxu0 0.0
  %176 = vmatprep.subr.mxu0 0.0
  %177 = vmatpush2.msra.mxu0 0.0
  %178 = vmatprep.subr.mxu0 0.0
  %179 = vmatpush2.msra.mxu0 0.0
  %180 = vmatprep.subr.mxu0 0.0
  %181 = vmatpush2.msra.mxu0 0.0
  %182 = vmatprep.subr.mxu0 0.0
  %183 = vmatpush2.msra.mxu0 0.0
  %184 = vmatprep.subr.mxu0 0.0
  %185 = vmatpush2.msra.mxu0 0.0
  %186 = vmatprep.subr.mxu0 0.0
  %187 = vmatpush2.msra.mxu0 0.0
  %188 = vmatprep.subr.mxu0 0.0
  %189 = vmatpush2.msra.mxu0 0.0
  %190 = vmatprep.subr.mxu0 0.0
  %191 = vmatpush2.msra.mxu0 0.0
  %192 = vmatprep.subr.mxu0 0.0
  %193 = vmatpush2.msra.mxu0 0.0
  %194 = vmatprep.subr.mxu0 0.0
  %195 = vmatpush2.msra.mxu0 0.0
  %196 = vmatprep.mubr.f32.mxu0 0.0
  %197 = vmatmul.mubr.f32.gmra.mxu0 %v127
  %v198 = vpop.f32.mrf.mxu0
  %v199 = vadd.f32 %v124, %v198
  %v200 = vpop.f32.mrf.mxu0
  %201 = vmatprep.mubr.f32.mxu0 0.0
  %202 = vmatmul.mubr.f32.gmra.mxu0 %v130
  %v203 = vpop.f32.mrf.mxu0
  %v204 = vadd.f32 %v124, %v203
  %v205 = vpop.f32.mrf.mxu0
  %206 = vdwg.mxu0
  %207 = vst [vmem:[#allocation2] sm:$0xff] %v199
  %208 = vst [vmem:[#allocation2 + $0x8] sm:$0xff] %v204
  %v209 = vld [vmem:[%s1] sm:$0x1]
  %v210 = vld [vmem:[#allocation2] sm:$0xff]
  %212 = vrot.lane.b32.xlu0 %v210, 96
  %v213 = vpop.permute.xlu0 %212
  %vm214 = vcmask 64512
  %v215 = vsel %vm214, %v210, 0
  %v217 = vsel %vm214, %v213, 0
  %219 = vmatprep.subr.mxu0 0.0
  %220 = vmatpush1.xpose.msra.mxu0 0.0
  %221 = vmatprep.subr.mxu0 0.0
  %222 = vmatpush1.xpose.msra.mxu0 0.0
  %223 = vmatprep.subr.mxu0 0.0
  %224 = vmatpush1.xpose.msra.mxu0 0.0
  %225 = vmatprep.subr.mxu0 0.0
  %226 = vmatpush1.xpose.msra.mxu0 0.0
  %227 = vmatprep.subr.mxu0 0.0
  %228 = vmatpush1.xpose.msra.mxu0 0.0
  %229 = vmatprep.subr.mxu0 0.0
  %230 = vmatpush1.xpose.msra.mxu0 0.0
  %231 = vmatprep.subr.mxu0 0.0
  %232 = vmatpush1.xpose.msra.mxu0 0.0
  %233 = vmatprep.subr.mxu0 0.0
  %234 = vmatpush1.xpose.msra.mxu0 0.0
  %235 = vmatprep.subr.mxu0 0.0
  %236 = vmatpush1.xpose.msra.mxu0 0.0
  %237 = vmatprep.subr.mxu0 0.0
  %238 = vmatpush1.xpose.msra.mxu0 0.0
  %239 = vmatprep.subr.mxu0 0.0
  %240 = vmatpush1.xpose.msra.mxu0 0.0
  %241 = vmatprep.subr.mxu0 0.0
  %242 = vmatpush1.xpose.msra.mxu0 0.0
  %243 = vmatprep.subr.mxu0 0.0
  %244 = vmatpush1.xpose.msra.mxu0 0.0
  %245 = vmatprep.subr.mxu0 0.0
  %246 = vmatpush1.xpose.msra.mxu0 0.0
  %247 = vmatprep.subr.mxu0 0.0
  %248 = vmatpush1.xpose.msra.mxu0 0.0
  %249 = vmatprep.subr.mxu0 0.0
  %250 = vmatpush1.xpose.msra.mxu0 %v217
  %251 = vmatprep.subr.mxu0 0.0
  %252 = vmatpush2.xpose.msra.mxu0 0.0
  %253 = vmatprep.subr.mxu0 0.0
  %254 = vmatpush2.xpose.msra.mxu0 0.0
  %255 = vmatprep.subr.mxu0 0.0
  %256 = vmatpush2.xpose.msra.mxu0 0.0
  %257 = vmatprep.subr.mxu0 0.0
  %258 = vmatpush2.xpose.msra.mxu0 0.0
  %259 = vmatprep.subr.mxu0 0.0
  %260 = vmatpush2.xpose.msra.mxu0 0.0
  %261 = vmatprep.subr.mxu0 0.0
  %262 = vmatpush2.xpose.msra.mxu0 0.0
  %263 = vmatprep.subr.mxu0 0.0
  %264 = vmatpush2.xpose.msra.mxu0 0.0
  %265 = vmatprep.subr.mxu0 0.0
  %266 = vmatpush2.xpose.msra.mxu0 0.0
  %267 = vmatprep.subr.mxu0 0.0
  %268 = vmatpush2.xpose.msra.mxu0 0.0
  %269 = vmatprep.subr.mxu0 0.0
  %270 = vmatpush2.xpose.msra.mxu0 0.0
  %271 = vmatprep.subr.mxu0 0.0
  %272 = vmatpush2.xpose.msra.mxu0 0.0
  %273 = vmatprep.subr.mxu0 0.0
  %274 = vmatpush2.xpose.msra.mxu0 0.0
  %275 = vmatprep.subr.mxu0 0.0
  %276 = vmatpush2.xpose.msra.mxu0 0.0
  %277 = vmatprep.subr.mxu0 0.0
  %278 = vmatpush2.xpose.msra.mxu0 0.0
  %279 = vmatprep.subr.mxu0 0.0
  %280 = vmatpush2.xpose.msra.mxu0 0.0
  %281 = vmatprep.subr.mxu0 0.0
  %282 = vmatpush2.xpose.msra.mxu0 0.0
  %283 = vmatprep.mubr.f32.mxu0 0.0
  %284 = vmatmul.mubr.f32.gmra.mxu0 %v215
  %v285 = vpop.f32.mrf.mxu0
  %v286 = vadd.f32 0.0, %v285
  %v287 = vpop.f32.mrf.mxu0
  %288 = vdwg.mxu0
  %v289 = vmul.f32 %v286, 0.35355338
  %v290 = vlaneseq
  %v291 = vshrl.u32 %v290, 7
  %v292 = vsub.s32 0, %v291
  %v293 = vrot.slane %v209, %v292
  %v294 = vadd.f32 %v289, %v293
  %v295 = vsel %vm214, %v294, -inf
  %296 = vmax.xlane.f32.xlu0 %v295
  %v297 = vpop.xlane.xlu0 %296
  %v298 = vsub.f32 %v294, %v297
  %v299 = vmul.f32 %v298, 1.442695
  %v300 = vpow.pop %v299
  %v301 = vsel %vm214, %v300, 0.0
  %302 = vadd.xlane.f32.xlu0 %v301
  %v303 = vpop.xlane.xlu0 %302
  %v304 = vrcp.pop %v303
  %v305 = vmul.f32 %v300, %v304
  %306 = vrot.lane.b32.xlu0 %v210, 64
  %v307 = vpop.permute.xlu0 %306
  %v310 = vsel %vm214, %v305, 0
  %312 = vmatprep.subr.mxu0 0.0
  %313 = vmatpush1.msra.mxu0 0.0
  %314 = vmatprep.subr.mxu0 0.0
  %315 = vmatpush1.msra.mxu0 0.0
  %316 = vmatprep.subr.mxu0 0.0
  %317 = vmatpush1.msra.mxu0 0.0
  %318 = vmatprep.subr.mxu0 0.0
  %319 = vmatpush1.msra.mxu0 0.0
  %320 = vmatprep.subr.mxu0 0.0
  %321 = vmatpush1.msra.mxu0 0.0
  %322 = vmatprep.subr.mxu0 0.0
  %323 = vmatpush1.msra.mxu0 0.0
  %324 = vmatprep.subr.mxu0 0.0
  %325 = vmatpush1.msra.mxu0 0.0
  %326 = vmatprep.subr.mxu0 0.0
  %327 = vmatpush1.msra.mxu0 0.0
  %328 = vmatprep.subr.mxu0 0.0
  %329 = vmatpush1.msra.mxu0 0.0
  %330 = vmatprep.subr.mxu0 0.0
  %331 = vmatpush1.msra.mxu0 0.0
  %332 = vmatprep.subr.mxu0 0.0
  %333 = vmatpush1.msra.mxu0 0.0
  %334 = vmatprep.subr.mxu0 0.0
  %335 = vmatpush1.msra.mxu0 0.0
  %336 = vmatprep.subr.mxu0 0.0
  %337 = vmatpush1.msra.mxu0 0.0
  %338 = vmatprep.subr.mxu0 0.0
  %339 = vmatpush1.msra.mxu0 0.0
  %340 = vmatprep.subr.mxu0 0.0
  %341 = vmatpush1.msra.mxu0 0.0
  %342 = vmatprep.subr.mxu0 0.0
  %343 = vmatpush1.msra.mxu0 %v307
  %344 = vmatprep.subr.mxu0 0.0
  %345 = vmatpush2.msra.mxu0 0.0
  %346 = vmatprep.subr.mxu0 0.0
  %347 = vmatpush2.msra.mxu0 0.0
  %348 = vmatprep.subr.mxu0 0.0
  %349 = vmatpush2.msra.mxu0 0.0
  %350 = vmatprep.subr.mxu0 0.0
  %351 = vmatpush2.msra.mxu0 0.0
  %352 = vmatprep.subr.mxu0 0.0
  %353 = vmatpush2.msra.mxu0 0.0
  %354 = vmatprep.subr.mxu0 0.0
  %355 = vmatpush2.msra.mxu0 0.0
  %356 = vmatprep.subr.mxu0 0.0
  %357 = vmatpush2.msra.mxu0 0.0
  %358 = vmatprep.subr.mxu0 0.0
  %359 = vmatpush2.msra.mxu0 0.0
  %360 = vmatprep.subr.mxu0 0.0
  %361 = vmatpush2.msra.mxu0 0.0
  %362 = vmatprep.subr.mxu0 0.0
  %363 = vmatpush2.msra.mxu0 0.0
  %364 = vmatprep.subr.mxu0 0.0
  %365 = vmatpush2.msra.mxu0 0.0
  %366 = vmatprep.subr.mxu0 0.0
  %367 = vmatpush2.msra.mxu0 0.0
  %368 = vmatprep.subr.mxu0 0.0
  %369 = vmatpush2.msra.mxu0 0.0
  %370 = vmatprep.subr.mxu0 0.0
  %371 = vmatpush2.msra.mxu0 0.0
  %372 = vmatprep.subr.mxu0 0.0
  %373 = vmatpush2.msra.mxu0 0.0
  %374 = vmatprep.subr.mxu0 0.0
  %375 = vmatpush2.msra.mxu0 0.0
  %376 = vmatprep.mubr.f32.mxu0 0.0
  %377 = vmatmul.mubr.f32.gmra.mxu0 %v310
  %v378 = vpop.f32.mrf.mxu0
  %v379 = vadd.f32 0.0, %v378
  %v380 = vpop.f32.mrf.mxu0
  %381 = vdwg.mxu0
  %382 = vst.msk [vmem:[#allocation3] sm:$0xff] %vm214, %v379
  %v383 = vld [vmem:[#allocation2] sm:$0xff]
  %385 = vrot.lane.b32.xlu0 %v383, 120
  %v386 = vpop.permute.xlu0 %385
  %387 = vrot.lane.b32.xlu0 %v383, 88
  %v388 = vpop.permute.xlu0 %387
  %v389 = vsel %vm214, %v386, 0
  %v391 = vsel %vm214, %v388, 0
  %393 = vmatprep.subr.mxu0 0.0
  %394 = vmatpush1.xpose.msra.mxu0 0.0
  %395 = vmatprep.subr.mxu0 0.0
  %396 = vmatpush1.xpose.msra.mxu0 0.0
  %397 = vmatprep.subr.mxu0 0.0
  %398 = vmatpush1.xpose.msra.mxu0 0.0
  %399 = vmatprep.subr.mxu0 0.0
  %400 = vmatpush1.xpose.msra.mxu0 0.0
  %401 = vmatprep.subr.mxu0 0.0
  %402 = vmatpush1.xpose.msra.mxu0 0.0
  %403 = vmatprep.subr.mxu0 0.0
  %404 = vmatpush1.xpose.msra.mxu0 0.0
  %405 = vmatprep.subr.mxu0 0.0
  %406 = vmatpush1.xpose.msra.mxu0 0.0
  %407 = vmatprep.subr.mxu0 0.0
  %408 = vmatpush1.xpose.msra.mxu0 0.0
  %409 = vmatprep.subr.mxu0 0.0
  %410 = vmatpush1.xpose.msra.mxu0 0.0
  %411 = vmatprep.subr.mxu0 0.0
  %412 = vmatpush1.xpose.msra.mxu0 0.0
  %413 = vmatprep.subr.mxu0 0.0
  %414 = vmatpush1.xpose.msra.mxu0 0.0
  %415 = vmatprep.subr.mxu0 0.0
  %416 = vmatpush1.xpose.msra.mxu0 0.0
  %417 = vmatprep.subr.mxu0 0.0
  %418 = vmatpush1.xpose.msra.mxu0 0.0
  %419 = vmatprep.subr.mxu0 0.0
  %420 = vmatpush1.xpose.msra.mxu0 0.0
  %421 = vmatprep.subr.mxu0 0.0
  %422 = vmatpush1.xpose.msra.mxu0 0.0
  %423 = vmatprep.subr.mxu0 0.0
  %424 = vmatpush1.xpose.msra.mxu0 %v391
  %425 = vmatprep.subr.mxu0 0.0
  %426 = vmatpush2.xpose.msra.mxu0 0.0
  %427 = vmatprep.subr.mxu0 0.0
  %428 = vmatpush2.xpose.msra.mxu0 0.0
  %429 = vmatprep.subr.mxu0 0.0
  %430 = vmatpush2.xpose.msra.mxu0 0.0
  %431 = vmatprep.subr.mxu0 0.0
  %432 = vmatpush2.xpose.msra.mxu0 0.0
  %433 = vmatprep.subr.mxu0 0.0
  %434 = vmatpush2.xpose.msra.mxu0 0.0
  %435 = vmatprep.subr.mxu0 0.0
  %436 = vmatpush2.xpose.msra.mxu0 0.0
  %437 = vmatprep.subr.mxu0 0.0
  %438 = vmatpush2.xpose.msra.mxu0 0.0
  %439 = vmatprep.subr.mxu0 0.0
  %440 = vmatpush2.xpose.msra.mxu0 0.0
  %441 = vmatprep.subr.mxu0 0.0
  %442 = vmatpush2.xpose.msra.mxu0 0.0
  %443 = vmatprep.subr.mxu0 0.0
  %444 = vmatpush2.xpose.msra.mxu0 0.0
  %445 = vmatprep.subr.mxu0 0.0
  %446 = vmatpush2.xpose.msra.mxu0 0.0
  %447 = vmatprep.subr.mxu0 0.0
  %448 = vmatpush2.xpose.msra.mxu0 0.0
  %449 = vmatprep.subr.mxu0 0.0
  %450 = vmatpush2.xpose.msra.mxu0 0.0
  %451 = vmatprep.subr.mxu0 0.0
  %452 = vmatpush2.xpose.msra.mxu0 0.0
  %453 = vmatprep.subr.mxu0 0.0
  %454 = vmatpush2.xpose.msra.mxu0 0.0
  %455 = vmatprep.subr.mxu0 0.0
  %456 = vmatpush2.xpose.msra.mxu0 0.0
  %457 = vmatprep.mubr.f32.mxu0 0.0
  %458 = vmatmul.mubr.f32.gmra.mxu0 %v389
  %v459 = vpop.f32.mrf.mxu0
  %v460 = vadd.f32 0.0, %v459
  %v461 = vpop.f32.mrf.mxu0
  %462 = vdwg.mxu0
  %v463 = vmul.f32 %v460, 0.35355338
  %v464 = vadd.f32 %v463, %v293
  %v465 = vsel %vm214, %v464, -inf
  %466 = vmax.xlane.f32.xlu0 %v465
  %v467 = vpop.xlane.xlu0 %466
  %v468 = vsub.f32 %v464, %v467
  %v469 = vmul.f32 %v468, 1.442695
  %v470 = vpow.pop %v469
  %v471 = vsel %vm214, %v470, 0.0
  %472 = vadd.xlane.f32.xlu0 %v471
  %v473 = vpop.xlane.xlu0 %472
  %v474 = vrcp.pop %v473
  %v475 = vmul.f32 %v470, %v474
  %476 = vrot.lane.b32.xlu0 %v383, 56
  %v477 = vpop.permute.xlu0 %476
  %v480 = vsel %vm214, %v475, 0
  %482 = vmatprep.subr.mxu0 0.0
  %483 = vmatpush1.msra.mxu0 0.0
  %484 = vmatprep.subr.mxu0 0.0
  %485 = vmatpush1.msra.mxu0 0.0
  %486 = vmatprep.subr.mxu0 0.0
  %487 = vmatpush1.msra.mxu0 0.0
  %488 = vmatprep.subr.mxu0 0.0
  %489 = vmatpush1.msra.mxu0 0.0
  %490 = vmatprep.subr.mxu0 0.0
  %491 = vmatpush1.msra.mxu0 0.0
  %492 = vmatprep.subr.mxu0 0.0
  %493 = vmatpush1.msra.mxu0 0.0
  %494 = vmatprep.subr.mxu0 0.0
  %495 = vmatpush1.msra.mxu0 0.0
  %496 = vmatprep.subr.mxu0 0.0
  %497 = vmatpush1.msra.mxu0 0.0
  %498 = vmatprep.subr.mxu0 0.0
  %499 = vmatpush1.msra.mxu0 0.0
  %500 = vmatprep.subr.mxu0 0.0
  %501 = vmatpush1.msra.mxu0 0.0
  %502 = vmatprep.subr.mxu0 0.0
  %503 = vmatpush1.msra.mxu0 0.0
  %504 = vmatprep.subr.mxu0 0.0
  %505 = vmatpush1.msra.mxu0 0.0
  %506 = vmatprep.subr.mxu0 0.0
  %507 = vmatpush1.msra.mxu0 0.0
  %508 = vmatprep.subr.mxu0 0.0
  %509 = vmatpush1.msra.mxu0 0.0
  %510 = vmatprep.subr.mxu0 0.0
  %511 = vmatpush1.msra.mxu0 0.0
  %512 = vmatprep.subr.mxu0 0.0
  %513 = vmatpush1.msra.mxu0 %v477
  %514 = vmatprep.subr.mxu0 0.0
  %515 = vmatpush2.msra.mxu0 0.0
  %516 = vmatprep.subr.mxu0 0.0
  %517 = vmatpush2.msra.mxu0 0.0
  %518 = vmatprep.subr.mxu0 0.0
  %519 = vmatpush2.msra.mxu0 0.0
  %520 = vmatprep.subr.mxu0 0.0
  %521 = vmatpush2.msra.mxu0 0.0
  %522 = vmatprep.subr.mxu0 0.0
  %523 = vmatpush2.msra.mxu0 0.0
  %524 = vmatprep.subr.mxu0 0.0
  %525 = vmatpush2.msra.mxu0 0.0
  %526 = vmatprep.subr.mxu0 0.0
  %527 = vmatpush2.msra.mxu0 0.0
  %528 = vmatprep.subr.mxu0 0.0
  %529 = vmatpush2.msra.mxu0 0.0
  %530 = vmatprep.subr.mxu0 0.0
  %531 = vmatpush2.msra.mxu0 0.0
  %532 = vmatprep.subr.mxu0 0.0
  %533 = vmatpush2.msra.mxu0 0.0
  %534 = vmatprep.subr.mxu0 0.0
  %535 = vmatpush2.msra.mxu0 0.0
  %536 = vmatprep.subr.mxu0 0.0
  %537 = vmatpush2.msra.mxu0 0.0
  %538 = vmatprep.subr.mxu0 0.0
  %539 = vmatpush2.msra.mxu0 0.0
  %540 = vmatprep.subr.mxu0 0.0
  %541 = vmatpush2.msra.mxu0 0.0
  %542 = vmatprep.subr.mxu0 0.0
  %543 = vmatpush2.msra.mxu0 0.0
  %544 = vmatprep.subr.mxu0 0.0
  %545 = vmatpush2.msra.mxu0 0.0
  %546 = vmatprep.mubr.f32.mxu0 0.0
  %547 = vmatmul.mubr.f32.gmra.mxu0 %v480
  %v548 = vpop.f32.mrf.mxu0
  %v549 = vadd.f32 0.0, %v548
  %v550 = vpop.f32.mrf.mxu0
  %551 = vdwg.mxu0
  %553 = vrot.lane.b32.xlu0 %v549, 8
  %v554 = vpop.permute.xlu0 %553
  %vm556 = vcmask 130112
  %557 = vst.msk [vmem:[#allocation3] sm:$0xff] %vm556, %v554
  %v558 = vld [vmem:[#allocation2] sm:$0xff]
  %560 = vrot.lane.b32.xlu0 %v558, 112
  %v561 = vpop.permute.xlu0 %560
  %562 = vrot.lane.b32.xlu0 %v558, 80
  %v563 = vpop.permute.xlu0 %562
  %v564 = vsel %vm214, %v561, 0
  %v566 = vsel %vm214, %v563, 0
  %568 = vmatprep.subr.mxu0 0.0
  %569 = vmatpush1.xpose.msra.mxu0 0.0
  %570 = vmatprep.subr.mxu0 0.0
  %571 = vmatpush1.xpose.msra.mxu0 0.0
  %572 = vmatprep.subr.mxu0 0.0
  %573 = vmatpush1.xpose.msra.mxu0 0.0
  %574 = vmatprep.subr.mxu0 0.0
  %575 = vmatpush1.xpose.msra.mxu0 0.0
  %576 = vmatprep.subr.mxu0 0.0
  %577 = vmatpush1.xpose.msra.mxu0 0.0
  %578 = vmatprep.subr.mxu0 0.0
  %579 = vmatpush1.xpose.msra.mxu0 0.0
  %580 = vmatprep.subr.mxu0 0.0
  %581 = vmatpush1.xpose.msra.mxu0 0.0
  %582 = vmatprep.subr.mxu0 0.0
  %583 = vmatpush1.xpose.msra.mxu0 0.0
  %584 = vmatprep.subr.mxu0 0.0
  %585 = vmatpush1.xpose.msra.mxu0 0.0
  %586 = vmatprep.subr.mxu0 0.0
  %587 = vmatpush1.xpose.msra.mxu0 0.0
  %588 = vmatprep.subr.mxu0 0.0
  %589 = vmatpush1.xpose.msra.mxu0 0.0
  %590 = vmatprep.subr.mxu0 0.0
  %591 = vmatpush1.xpose.msra.mxu0 0.0
  %592 = vmatprep.subr.mxu0 0.0
  %593 = vmatpush1.xpose.msra.mxu0 0.0
  %594 = vmatprep.subr.mxu0 0.0
  %595 = vmatpush1.xpose.msra.mxu0 0.0
  %596 = vmatprep.subr.mxu0 0.0
  %597 = vmatpush1.xpose.msra.mxu0 0.0
  %598 = vmatprep.subr.mxu0 0.0
  %599 = vmatpush1.xpose.msra.mxu0 %v566
  %600 = vmatprep.subr.mxu0 0.0
  %601 = vmatpush2.xpose.msra.mxu0 0.0
  %602 = vmatprep.subr.mxu0 0.0
  %603 = vmatpush2.xpose.msra.mxu0 0.0
  %604 = vmatprep.subr.mxu0 0.0
  %605 = vmatpush2.xpose.msra.mxu0 0.0
  %606 = vmatprep.subr.mxu0 0.0
  %607 = vmatpush2.xpose.msra.mxu0 0.0
  %608 = vmatprep.subr.mxu0 0.0
  %609 = vmatpush2.xpose.msra.mxu0 0.0
  %610 = vmatprep.subr.mxu0 0.0
  %611 = vmatpush2.xpose.msra.mxu0 0.0
  %612 = vmatprep.subr.mxu0 0.0
  %613 = vmatpush2.xpose.msra.mxu0 0.0
  %614 = vmatprep.subr.mxu0 0.0
  %615 = vmatpush2.xpose.msra.mxu0 0.0
  %616 = vmatprep.subr.mxu0 0.0
  %617 = vmatpush2.xpose.msra.mxu0 0.0
  %618 = vmatprep.subr.mxu0 0.0
  %619 = vmatpush2.xpose.msra.mxu0 0.0
  %620 = vmatprep.subr.mxu0 0.0
  %621 = vmatpush2.xpose.msra.mxu0 0.0
  %622 = vmatprep.subr.mxu0 0.0
  %623 = vmatpush2.xpose.msra.mxu0 0.0
  %624 = vmatprep.subr.mxu0 0.0
  %625 = vmatpush2.xpose.msra.mxu0 0.0
  %626 = vmatprep.subr.mxu0 0.0
  %627 = vmatpush2.xpose.msra.mxu0 0.0
  %628 = vmatprep.subr.mxu0 0.0
  %629 = vmatpush2.xpose.msra.mxu0 0.0
  %630 = vmatprep.subr.mxu0 0.0
  %631 = vmatpush2.xpose.msra.mxu0 0.0
  %632 = vmatprep.mubr.f32.mxu0 0.0
  %633 = vmatmul.mubr.f32.gmra.mxu0 %v564
  %v634 = vpop.f32.mrf.mxu0
  %v635 = vadd.f32 0.0, %v634
  %v636 = vpop.f32.mrf.mxu0
  %637 = vdwg.mxu0
  %v638 = vmul.f32 %v635, 0.35355338
  %v639 = vadd.f32 %v638, %v293
  %v640 = vsel %vm214, %v639, -inf
  %641 = vmax.xlane.f32.xlu0 %v640
  %v642 = vpop.xlane.xlu0 %641
  %v643 = vsub.f32 %v639, %v642
  %v644 = vmul.f32 %v643, 1.442695
  %v645 = vpow.pop %v644
  %v646 = vsel %vm214, %v645, 0.0
  %647 = vadd.xlane.f32.xlu0 %v646
  %v648 = vpop.xlane.xlu0 %647
  %v649 = vrcp.pop %v648
  %v650 = vmul.f32 %v645, %v649
  %651 = vrot.lane.b32.xlu0 %v558, 48
  %v652 = vpop.permute.xlu0 %651
  %v655 = vsel %vm214, %v650, 0
  %657 = vmatprep.subr.mxu0 0.0
  %658 = vmatpush1.msra.mxu0 0.0
  %659 = vmatprep.subr.mxu0 0.0
  %660 = vmatpush1.msra.mxu0 0.0
  %661 = vmatprep.subr.mxu0 0.0
  %662 = vmatpush1.msra.mxu0 0.0
  %663 = vmatprep.subr.mxu0 0.0
  %664 = vmatpush1.msra.mxu0 0.0
  %665 = vmatprep.subr.mxu0 0.0
  %666 = vmatpush1.msra.mxu0 0.0
  %667 = vmatprep.subr.mxu0 0.0
  %668 = vmatpush1.msra.mxu0 0.0
  %669 = vmatprep.subr.mxu0 0.0
  %670 = vmatpush1.msra.mxu0 0.0
  %671 = vmatprep.subr.mxu0 0.0
  %672 = vmatpush1.msra.mxu0 0.0
  %673 = vmatprep.subr.mxu0 0.0
  %674 = vmatpush1.msra.mxu0 0.0
  %675 = vmatprep.subr.mxu0 0.0
  %676 = vmatpush1.msra.mxu0 0.0
  %677 = vmatprep.subr.mxu0 0.0
  %678 = vmatpush1.msra.mxu0 0.0
  %679 = vmatprep.subr.mxu0 0.0
  %680 = vmatpush1.msra.mxu0 0.0
  %681 = vmatprep.subr.mxu0 0.0
  %682 = vmatpush1.msra.mxu0 0.0
  %683 = vmatprep.subr.mxu0 0.0
  %684 = vmatpush1.msra.mxu0 0.0
  %685 = vmatprep.subr.mxu0 0.0
  %686 = vmatpush1.msra.mxu0 0.0
  %687 = vmatprep.subr.mxu0 0.0
  %688 = vmatpush1.msra.mxu0 %v652
  %689 = vmatprep.subr.mxu0 0.0
  %690 = vmatpush2.msra.mxu0 0.0
  %691 = vmatprep.subr.mxu0 0.0
  %692 = vmatpush2.msra.mxu0 0.0
  %693 = vmatprep.subr.mxu0 0.0
  %694 = vmatpush2.msra.mxu0 0.0
  %695 = vmatprep.subr.mxu0 0.0
  %696 = vmatpush2.msra.mxu0 0.0
  %697 = vmatprep.subr.mxu0 0.0
  %698 = vmatpush2.msra.mxu0 0.0
  %699 = vmatprep.subr.mxu0 0.0
  %700 = vmatpush2.msra.mxu0 0.0
  %701 = vmatprep.subr.mxu0 0.0
  %702 = vmatpush2.msra.mxu0 0.0
  %703 = vmatprep.subr.mxu0 0.0
  %704 = vmatpush2.msra.mxu0 0.0
  %705 = vmatprep.subr.mxu0 0.0
  %706 = vmatpush2.msra.mxu0 0.0
  %707 = vmatprep.subr.mxu0 0.0
  %708 = vmatpush2.msra.mxu0 0.0
  %709 = vmatprep.subr.mxu0 0.0
  %710 = vmatpush2.msra.mxu0 0.0
  %711 = vmatprep.subr.mxu0 0.0
  %712 = vmatpush2.msra.mxu0 0.0
  %713 = vmatprep.subr.mxu0 0.0
  %714 = vmatpush2.msra.mxu0 0.0
  %715 = vmatprep.subr.mxu0 0.0
  %716 = vmatpush2.msra.mxu0 0.0
  %717 = vmatprep.subr.mxu0 0.0
  %718 = vmatpush2.msra.mxu0 0.0
  %719 = vmatprep.subr.mxu0 0.0
  %720 = vmatpush2.msra.mxu0 0.0
  %721 = vmatprep.mubr.f32.mxu0 0.0
  %722 = vmatmul.mubr.f32.gmra.mxu0 %v655
  %v723 = vpop.f32.mrf.mxu0
  %v724 = vadd.f32 0.0, %v723
  %v725 = vpop.f32.mrf.mxu0
  %726 = vdwg.mxu0
  %728 = vrot.lane.b32.xlu0 %v724, 16
  %v729 = vpop.permute.xlu0 %728
  %vm731 = vcmask 195712
  %732 = vst.msk [vmem:[#allocation3] sm:$0xff] %vm731, %v729
  %v733 = vld [vmem:[#allocation2] sm:$0xff]
  %735 = vrot.lane.b32.xlu0 %v733, 104
  %v736 = vpop.permute.xlu0 %735
  %737 = vrot.lane.b32.xlu0 %v733, 72
  %v738 = vpop.permute.xlu0 %737
  %v739 = vsel %vm214, %v736, 0
  %v741 = vsel %vm214, %v738, 0
  %743 = vmatprep.subr.mxu0 0.0
  %744 = vmatpush1.xpose.msra.mxu0 0.0
  %745 = vmatprep.subr.mxu0 0.0
  %746 = vmatpush1.xpose.msra.mxu0 0.0
  %747 = vmatprep.subr.mxu0 0.0
  %748 = vmatpush1.xpose.msra.mxu0 0.0
  %749 = vmatprep.subr.mxu0 0.0
  %750 = vmatpush1.xpose.msra.mxu0 0.0
  %751 = vmatprep.subr.mxu0 0.0
  %752 = vmatpush1.xpose.msra.mxu0 0.0
  %753 = vmatprep.subr.mxu0 0.0
  %754 = vmatpush1.xpose.msra.mxu0 0.0
  %755 = vmatprep.subr.mxu0 0.0
  %756 = vmatpush1.xpose.msra.mxu0 0.0
  %757 = vmatprep.subr.mxu0 0.0
  %758 = vmatpush1.xpose.msra.mxu0 0.0
  %759 = vmatprep.subr.mxu0 0.0
  %760 = vmatpush1.xpose.msra.mxu0 0.0
  %761 = vmatprep.subr.mxu0 0.0
  %762 = vmatpush1.xpose.msra.mxu0 0.0
  %763 = vmatprep.subr.mxu0 0.0
  %764 = vmatpush1.xpose.msra.mxu0 0.0
  %765 = vmatprep.subr.mxu0 0.0
  %766 = vmatpush1.xpose.msra.mxu0 0.0
  %767 = vmatprep.subr.mxu0 0.0
  %768 = vmatpush1.xpose.msra.mxu0 0.0
  %769 = vmatprep.subr.mxu0 0.0
  %770 = vmatpush1.xpose.msra.mxu0 0.0
  %771 = vmatprep.subr.mxu0 0.0
  %772 = vmatpush1.xpose.msra.mxu0 0.0
  %773 = vmatprep.subr.mxu0 0.0
  %774 = vmatpush1.xpose.msra.mxu0 %v741
  %775 = vmatprep.subr.mxu0 0.0
  %776 = vmatpush2.xpose.msra.mxu0 0.0
  %777 = vmatprep.subr.mxu0 0.0
  %778 = vmatpush2.xpose.msra.mxu0 0.0
  %779 = vmatprep.subr.mxu0 0.0
  %780 = vmatpush2.xpose.msra.mxu0 0.0
  %781 = vmatprep.subr.mxu0 0.0
  %782 = vmatpush2.xpose.msra.mxu0 0.0
  %783 = vmatprep.subr.mxu0 0.0
  %784 = vmatpush2.xpose.msra.mxu0 0.0
  %785 = vmatprep.subr.mxu0 0.0
  %786 = vmatpush2.xpose.msra.mxu0 0.0
  %787 = vmatprep.subr.mxu0 0.0
  %788 = vmatpush2.xpose.msra.mxu0 0.0
  %789 = vmatprep.subr.mxu0 0.0
  %790 = vmatpush2.xpose.msra.mxu0 0.0
  %791 = vmatprep.subr.mxu0 0.0
  %792 = vmatpush2.xpose.msra.mxu0 0.0
  %793 = vmatprep.subr.mxu0 0.0
  %794 = vmatpush2.xpose.msra.mxu0 0.0
  %795 = vmatprep.subr.mxu0 0.0
  %796 = vmatpush2.xpose.msra.mxu0 0.0
  %797 = vmatprep.subr.mxu0 0.0
  %798 = vmatpush2.xpose.msra.mxu0 0.0
  %799 = vmatprep.subr.mxu0 0.0
  %800 = vmatpush2.xpose.msra.mxu0 0.0
  %801 = vmatprep.subr.mxu0 0.0
  %802 = vmatpush2.xpose.msra.mxu0 0.0
  %803 = vmatprep.subr.mxu0 0.0
  %804 = vmatpush2.xpose.msra.mxu0 0.0
  %805 = vmatprep.subr.mxu0 0.0
  %806 = vmatpush2.xpose.msra.mxu0 0.0
  %807 = vmatprep.mubr.f32.mxu0 0.0
  %808 = vmatmul.mubr.f32.gmra.mxu0 %v739
  %v809 = vpop.f32.mrf.mxu0
  %v810 = vadd.f32 0.0, %v809
  %v811 = vpop.f32.mrf.mxu0
  %812 = vdwg.mxu0
  %v813 = vmul.f32 %v810, 0.35355338
  %v814 = vadd.f32 %v813, %v293
  %v815 = vsel %vm214, %v814, -inf
  %816 = vmax.xlane.f32.xlu0 %v815
  %v817 = vpop.xlane.xlu0 %816
  %v818 = vsub.f32 %v814, %v817
  %v819 = vmul.f32 %v818, 1.442695
  %v820 = vpow.pop %v819
  %v821 = vsel %vm214, %v820, 0.0
  %822 = vadd.xlane.f32.xlu0 %v821
  %v823 = vpop.xlane.xlu0 %822
  %v824 = vrcp.pop %v823
  %v825 = vmul.f32 %v820, %v824
  %826 = vrot.lane.b32.xlu0 %v733, 40
  %v827 = vpop.permute.xlu0 %826
  %v830 = vsel %vm214, %v825, 0
  %832 = vmatprep.subr.mxu0 0.0
  %833 = vmatpush1.msra.mxu0 0.0
  %834 = vmatprep.subr.mxu0 0.0
  %835 = vmatpush1.msra.mxu0 0.0
  %836 = vmatprep.subr.mxu0 0.0
  %837 = vmatpush1.msra.mxu0 0.0
  %838 = vmatprep.subr.mxu0 0.0
  %839 = vmatpush1.msra.mxu0 0.0
  %840 = vmatprep.subr.mxu0 0.0
  %841 = vmatpush1.msra.mxu0 0.0
  %842 = vmatprep.subr.mxu0 0.0
  %843 = vmatpush1.msra.mxu0 0.0
  %844 = vmatprep.subr.mxu0 0.0
  %845 = vmatpush1.msra.mxu0 0.0
  %846 = vmatprep.subr.mxu0 0.0
  %847 = vmatpush1.msra.mxu0 0.0
  %848 = vmatprep.subr.mxu0 0.0
  %849 = vmatpush1.msra.mxu0 0.0
  %850 = vmatprep.subr.mxu0 0.0
  %851 = vmatpush1.msra.mxu0 0.0
  %852 = vmatprep.subr.mxu0 0.0
  %853 = vmatpush1.msra.mxu0 0.0
  %854 = vmatprep.subr.mxu0 0.0
  %855 = vmatpush1.msra.mxu0 0.0
  %856 = vmatprep.subr.mxu0 0.0
  %857 = vmatpush1.msra.mxu0 0.0
  %858 = vmatprep.subr.mxu0 0.0
  %859 = vmatpush1.msra.mxu0 0.0
  %860 = vmatprep.subr.mxu0 0.0
  %861 = vmatpush1.msra.mxu0 0.0
  %862 = vmatprep.subr.mxu0 0.0
  %863 = vmatpush1.msra.mxu0 %v827
  %864 = vmatprep.subr.mxu0 0.0
  %865 = vmatpush2.msra.mxu0 0.0
  %866 = vmatprep.subr.mxu0 0.0
  %867 = vmatpush2.msra.mxu0 0.0
  %868 = vmatprep.subr.mxu0 0.0
  %869 = vmatpush2.msra.mxu0 0.0
  %870 = vmatprep.subr.mxu0 0.0
  %871 = vmatpush2.msra.mxu0 0.0
  %872 = vmatprep.subr.mxu0 0.0
  %873 = vmatpush2.msra.mxu0 0.0
  %874 = vmatprep.subr.mxu0 0.0
  %875 = vmatpush2.msra.mxu0 0.0
  %876 = vmatprep.subr.mxu0 0.0
  %877 = vmatpush2.msra.mxu0 0.0
  %878 = vmatprep.subr.mxu0 0.0
  %879 = vmatpush2.msra.mxu0 0.0
  %880 = vmatprep.subr.mxu0 0.0
  %881 = vmatpush2.msra.mxu0 0.0
  %882 = vmatprep.subr.mxu0 0.0
  %883 = vmatpush2.msra.mxu0 0.0
  %884 = vmatprep.subr.mxu0 0.0
  %885 = vmatpush2.msra.mxu0 0.0
  %886 = vmatprep.subr.mxu0 0.0
  %887 = vmatpush2.msra.mxu0 0.0
  %888 = vmatprep.subr.mxu0 0.0
  %889 = vmatpush2.msra.mxu0 0.0
  %890 = vmatprep.subr.mxu0 0.0
  %891 = vmatpush2.msra.mxu0 0.0
  %892 = vmatprep.subr.mxu0 0.0
  %893 = vmatpush2.msra.mxu0 0.0
  %894 = vmatprep.subr.mxu0 0.0
  %895 = vmatpush2.msra.mxu0 0.0
  %896 = vmatprep.mubr.f32.mxu0 0.0
  %897 = vmatmul.mubr.f32.gmra.mxu0 %v830
  %v898 = vpop.f32.mrf.mxu0
  %v899 = vadd.f32 0.0, %v898
  %v900 = vpop.f32.mrf.mxu0
  %901 = vdwg.mxu0
  %903 = vrot.lane.b32.xlu0 %v899, 24
  %v904 = vpop.permute.xlu0 %903
  %vm906 = vcmask 261312
  %907 = vst.msk [vmem:[#allocation3] sm:$0xff] %vm906, %v904
  %v908 = vld [vmem:[%s1 + $0x1] sm:$0x1]
  %v909 = vld [vmem:[#allocation2 + $0x8] sm:$0xff]
  %911 = vrot.lane.b32.xlu0 %v909, 96
  %v912 = vpop.permute.xlu0 %911
  %v913 = vsel %vm214, %v909, 0
  %v915 = vsel %vm214, %v912, 0
  %917 = vmatprep.subr.mxu0 0.0
  %918 = vmatpush1.xpose.msra.mxu0 0.0
  %919 = vmatprep.subr.mxu0 0.0
  %920 = vmatpush1.xpose.msra.mxu0 0.0
  %921 = vmatprep.subr.mxu0 0.0
  %922 = vmatpush1.xpose.msra.mxu0 0.0
  %923 = vmatprep.subr.mxu0 0.0
  %924 = vmatpush1.xpose.msra.mxu0 0.0
  %925 = vmatprep.subr.mxu0 0.0
  %926 = vmatpush1.xpose.msra.mxu0 0.0
  %927 = vmatprep.subr.mxu0 0.0
  %928 = vmatpush1.xpose.msra.mxu0 0.0
  %929 = vmatprep.subr.mxu0 0.0
  %930 = vmatpush1.xpose.msra.mxu0 0.0
  %931 = vmatprep.subr.mxu0 0.0
  %932 = vmatpush1.xpose.msra.mxu0 0.0
  %933 = vmatprep.subr.mxu0 0.0
  %934 = vmatpush1.xpose.msra.mxu0 0.0
  %935 = vmatprep.subr.mxu0 0.0
  %936 = vmatpush1.xpose.msra.mxu0 0.0
  %937 = vmatprep.subr.mxu0 0.0
  %938 = vmatpush1.xpose.msra.mxu0 0.0
  %939 = vmatprep.subr.mxu0 0.0
  %940 = vmatpush1.xpose.msra.mxu0 0.0
  %941 = vmatprep.subr.mxu0 0.0
  %942 = vmatpush1.xpose.msra.mxu0 0.0
  %943 = vmatprep.subr.mxu0 0.0
  %944 = vmatpush1.xpose.msra.mxu0 0.0
  %945 = vmatprep.subr.mxu0 0.0
  %946 = vmatpush1.xpose.msra.mxu0 0.0
  %947 = vmatprep.subr.mxu0 0.0
  %948 = vmatpush1.xpose.msra.mxu0 %v915
  %949 = vmatprep.subr.mxu0 0.0
  %950 = vmatpush2.xpose.msra.mxu0 0.0
  %951 = vmatprep.subr.mxu0 0.0
  %952 = vmatpush2.xpose.msra.mxu0 0.0
  %953 = vmatprep.subr.mxu0 0.0
  %954 = vmatpush2.xpose.msra.mxu0 0.0
  %955 = vmatprep.subr.mxu0 0.0
  %956 = vmatpush2.xpose.msra.mxu0 0.0
  %957 = vmatprep.subr.mxu0 0.0
  %958 = vmatpush2.xpose.msra.mxu0 0.0
  %959 = vmatprep.subr.mxu0 0.0
  %960 = vmatpush2.xpose.msra.mxu0 0.0
  %961 = vmatprep.subr.mxu0 0.0
  %962 = vmatpush2.xpose.msra.mxu0 0.0
  %963 = vmatprep.subr.mxu0 0.0
  %964 = vmatpush2.xpose.msra.mxu0 0.0
  %965 = vmatprep.subr.mxu0 0.0
  %966 = vmatpush2.xpose.msra.mxu0 0.0
  %967 = vmatprep.subr.mxu0 0.0
  %968 = vmatpush2.xpose.msra.mxu0 0.0
  %969 = vmatprep.subr.mxu0 0.0
  %970 = vmatpush2.xpose.msra.mxu0 0.0
  %971 = vmatprep.subr.mxu0 0.0
  %972 = vmatpush2.xpose.msra.mxu0 0.0
  %973 = vmatprep.subr.mxu0 0.0
  %974 = vmatpush2.xpose.msra.mxu0 0.0
  %975 = vmatprep.subr.mxu0 0.0
  %976 = vmatpush2.xpose.msra.mxu0 0.0
  %977 = vmatprep.subr.mxu0 0.0
  %978 = vmatpush2.xpose.msra.mxu0 0.0
  %979 = vmatprep.subr.mxu0 0.0
  %980 = vmatpush2.xpose.msra.mxu0 0.0
  %981 = vmatprep.mubr.f32.mxu0 0.0
  %982 = vmatmul.mubr.f32.gmra.mxu0 %v913
  %v983 = vpop.f32.mrf.mxu0
  %v984 = vadd.f32 0.0, %v983
  %v985 = vpop.f32.mrf.mxu0
  %986 = vdwg.mxu0
  %v987 = vmul.f32 %v984, 0.35355338
  %v988 = vlaneseq
  %v989 = vshrl.u32 %v988, 7
  %v990 = vsub.s32 0, %v989
  %v991 = vrot.slane %v908, %v990
  %v992 = vadd.f32 %v987, %v991
  %v993 = vsel %vm214, %v992, -inf
  %994 = vmax.xlane.f32.xlu0 %v993
  %v995 = vpop.xlane.xlu0 %994
  %v996 = vsub.f32 %v992, %v995
  %v997 = vmul.f32 %v996, 1.442695
  %v998 = vpow.pop %v997
  %v999 = vsel %vm214, %v998, 0.0
  %1000 = vadd.xlane.f32.xlu0 %v999
  %v1001 = vpop.xlane.xlu0 %1000
  %v1002 = vrcp.pop %v1001
  %v1003 = vmul.f32 %v998, %v1002
  %1004 = vrot.lane.b32.xlu0 %v909, 64
  %v1005 = vpop.permute.xlu0 %1004
  %v1008 = vsel %vm214, %v1003, 0
  %1010 = vmatprep.subr.mxu0 0.0
  %1011 = vmatpush1.msra.mxu0 0.0
  %1012 = vmatprep.subr.mxu0 0.0
  %1013 = vmatpush1.msra.mxu0 0.0
  %1014 = vmatprep.subr.mxu0 0.0
  %1015 = vmatpush1.msra.mxu0 0.0
  %1016 = vmatprep.subr.mxu0 0.0
  %1017 = vmatpush1.msra.mxu0 0.0
  %1018 = vmatprep.subr.mxu0 0.0
  %1019 = vmatpush1.msra.mxu0 0.0
  %1020 = vmatprep.subr.mxu0 0.0
  %1021 = vmatpush1.msra.mxu0 0.0
  %1022 = vmatprep.subr.mxu0 0.0
  %1023 = vmatpush1.msra.mxu0 0.0
  %1024 = vmatprep.subr.mxu0 0.0
  %1025 = vmatpush1.msra.mxu0 0.0
  %1026 = vmatprep.subr.mxu0 0.0
  %1027 = vmatpush1.msra.mxu0 0.0
  %1028 = vmatprep.subr.mxu0 0.0
  %1029 = vmatpush1.msra.mxu0 0.0
  %1030 = vmatprep.subr.mxu0 0.0
  %1031 = vmatpush1.msra.mxu0 0.0
  %1032 = vmatprep.subr.mxu0 0.0
  %1033 = vmatpush1.msra.mxu0 0.0
  %1034 = vmatprep.subr.mxu0 0.0
  %1035 = vmatpush1.msra.mxu0 0.0
  %1036 = vmatprep.subr.mxu0 0.0
  %1037 = vmatpush1.msra.mxu0 0.0
  %1038 = vmatprep.subr.mxu0 0.0
  %1039 = vmatpush1.msra.mxu0 0.0
  %1040 = vmatprep.subr.mxu0 0.0
  %1041 = vmatpush1.msra.mxu0 %v1005
  %1042 = vmatprep.subr.mxu0 0.0
  %1043 = vmatpush2.msra.mxu0 0.0
  %1044 = vmatprep.subr.mxu0 0.0
  %1045 = vmatpush2.msra.mxu0 0.0
  %1046 = vmatprep.subr.mxu0 0.0
  %1047 = vmatpush2.msra.mxu0 0.0
  %1048 = vmatprep.subr.mxu0 0.0
  %1049 = vmatpush2.msra.mxu0 0.0
  %1050 = vmatprep.subr.mxu0 0.0
  %1051 = vmatpush2.msra.mxu0 0.0
  %1052 = vmatprep.subr.mxu0 0.0
  %1053 = vmatpush2.msra.mxu0 0.0
  %1054 = vmatprep.subr.mxu0 0.0
  %1055 = vmatpush2.msra.mxu0 0.0
  %1056 = vmatprep.subr.mxu0 0.0
  %1057 = vmatpush2.msra.mxu0 0.0
  %1058 = vmatprep.subr.mxu0 0.0
  %1059 = vmatpush2.msra.mxu0 0.0
  %1060 = vmatprep.subr.mxu0 0.0
  %1061 = vmatpush2.msra.mxu0 0.0
  %1062 = vmatprep.subr.mxu0 0.0
  %1063 = vmatpush2.msra.mxu0 0.0
  %1064 = vmatprep.subr.mxu0 0.0
  %1065 = vmatpush2.msra.mxu0 0.0
  %1066 = vmatprep.subr.mxu0 0.0
  %1067 = vmatpush2.msra.mxu0 0.0
  %1068 = vmatprep.subr.mxu0 0.0
  %1069 = vmatpush2.msra.mxu0 0.0
  %1070 = vmatprep.subr.mxu0 0.0
  %1071 = vmatpush2.msra.mxu0 0.0
  %1072 = vmatprep.subr.mxu0 0.0
  %1073 = vmatpush2.msra.mxu0 0.0
  %1074 = vmatprep.mubr.f32.mxu0 0.0
  %1075 = vmatmul.mubr.f32.gmra.mxu0 %v1008
  %v1076 = vpop.f32.mrf.mxu0
  %v1077 = vadd.f32 0.0, %v1076
  %v1078 = vpop.f32.mrf.mxu0
  %1079 = vdwg.mxu0
  %1080 = vst.msk [vmem:[#allocation3 + $0x8] sm:$0xff] %vm214, %v1077
  %v1081 = vld [vmem:[#allocation2 + $0x8] sm:$0xff]
  %1083 = vrot.lane.b32.xlu0 %v1081, 120
  %v1084 = vpop.permute.xlu0 %1083
  %1085 = vrot.lane.b32.xlu0 %v1081, 88
  %v1086 = vpop.permute.xlu0 %1085
  %v1087 = vsel %vm214, %v1084, 0
  %v1089 = vsel %vm214, %v1086, 0
  %1091 = vmatprep.subr.mxu0 0.0
  %1092 = vmatpush1.xpose.msra.mxu0 0.0
  %1093 = vmatprep.subr.mxu0 0.0
  %1094 = vmatpush1.xpose.msra.mxu0 0.0
  %1095 = vmatprep.subr.mxu0 0.0
  %1096 = vmatpush1.xpose.msra.mxu0 0.0
  %1097 = vmatprep.subr.mxu0 0.0
  %1098 = vmatpush1.xpose.msra.mxu0 0.0
  %1099 = vmatprep.subr.mxu0 0.0
  %1100 = vmatpush1.xpose.msra.mxu0 0.0
  %1101 = vmatprep.subr.mxu0 0.0
  %1102 = vmatpush1.xpose.msra.mxu0 0.0
  %1103 = vmatprep.subr.mxu0 0.0
  %1104 = vmatpush1.xpose.msra.mxu0 0.0
  %1105 = vmatprep.subr.mxu0 0.0
  %1106 = vmatpush1.xpose.msra.mxu0 0.0
  %1107 = vmatprep.subr.mxu0 0.0
  %1108 = vmatpush1.xpose.msra.mxu0 0.0
  %1109 = vmatprep.subr.mxu0 0.0
  %1110 = vmatpush1.xpose.msra.mxu0 0.0
  %1111 = vmatprep.subr.mxu0 0.0
  %1112 = vmatpush1.xpose.msra.mxu0 0.0
  %1113 = vmatprep.subr.mxu0 0.0
  %1114 = vmatpush1.xpose.msra.mxu0 0.0
  %1115 = vmatprep.subr.mxu0 0.0
  %1116 = vmatpush1.xpose.msra.mxu0 0.0
  %1117 = vmatprep.subr.mxu0 0.0
  %1118 = vmatpush1.xpose.msra.mxu0 0.0
  %1119 = vmatprep.subr.mxu0 0.0
  %1120 = vmatpush1.xpose.msra.mxu0 0.0
  %1121 = vmatprep.subr.mxu0 0.0
  %1122 = vmatpush1.xpose.msra.mxu0 %v1089
  %1123 = vmatprep.subr.mxu0 0.0
  %1124 = vmatpush2.xpose.msra.mxu0 0.0
  %1125 = vmatprep.subr.mxu0 0.0
  %1126 = vmatpush2.xpose.msra.mxu0 0.0
  %1127 = vmatprep.subr.mxu0 0.0
  %1128 = vmatpush2.xpose.msra.mxu0 0.0
  %1129 = vmatprep.subr.mxu0 0.0
  %1130 = vmatpush2.xpose.msra.mxu0 0.0
  %1131 = vmatprep.subr.mxu0 0.0
  %1132 = vmatpush2.xpose.msra.mxu0 0.0
  %1133 = vmatprep.subr.mxu0 0.0
  %1134 = vmatpush2.xpose.msra.mxu0 0.0
  %1135 = vmatprep.subr.mxu0 0.0
  %1136 = vmatpush2.xpose.msra.mxu0 0.0
  %1137 = vmatprep.subr.mxu0 0.0
  %1138 = vmatpush2.xpose.msra.mxu0 0.0
  %1139 = vmatprep.subr.mxu0 0.0
  %1140 = vmatpush2.xpose.msra.mxu0 0.0
  %1141 = vmatprep.subr.mxu0 0.0
  %1142 = vmatpush2.xpose.msra.mxu0 0.0
  %1143 = vmatprep.subr.mxu0 0.0
  %1144 = vmatpush2.xpose.msra.mxu0 0.0
  %1145 = vmatprep.subr.mxu0 0.0
  %1146 = vmatpush2.xpose.msra.mxu0 0.0
  %1147 = vmatprep.subr.mxu0 0.0
  %1148 = vmatpush2.xpose.msra.mxu0 0.0
  %1149 = vmatprep.subr.mxu0 0.0
  %1150 = vmatpush2.xpose.msra.mxu0 0.0
  %1151 = vmatprep.subr.mxu0 0.0
  %1152 = vmatpush2.xpose.msra.mxu0 0.0
  %1153 = vmatprep.subr.mxu0 0.0
  %1154 = vmatpush2.xpose.msra.mxu0 0.0
  %1155 = vmatprep.mubr.f32.mxu0 0.0
  %1156 = vmatmul.mubr.f32.gmra.mxu0 %v1087
  %v1157 = vpop.f32.mrf.mxu0
  %v1158 = vadd.f32 0.0, %v1157
  %v1159 = vpop.f32.mrf.mxu0
  %1160 = vdwg.mxu0
  %v1161 = vmul.f32 %v1158, 0.35355338
  %v1162 = vadd.f32 %v1161, %v991
  %v1163 = vsel %vm214, %v1162, -inf
  %1164 = vmax.xlane.f32.xlu0 %v1163
  %v1165 = vpop.xlane.xlu0 %1164
  %v1166 = vsub.f32 %v1162, %v1165
  %v1167 = vmul.f32 %v1166, 1.442695
  %v1168 = vpow.pop %v1167
  %v1169 = vsel %vm214, %v1168, 0.0
  %1170 = vadd.xlane.f32.xlu0 %v1169
  %v1171 = vpop.xlane.xlu0 %1170
  %v1172 = vrcp.pop %v1171
  %v1173 = vmul.f32 %v1168, %v1172
  %1174 = vrot.lane.b32.xlu0 %v1081, 56
  %v1175 = vpop.permute.xlu0 %1174
  %v1178 = vsel %vm214, %v1173, 0
  %1180 = vmatprep.subr.mxu0 0.0
  %1181 = vmatpush1.msra.mxu0 0.0
  %1182 = vmatprep.subr.mxu0 0.0
  %1183 = vmatpush1.msra.mxu0 0.0
  %1184 = vmatprep.subr.mxu0 0.0
  %1185 = vmatpush1.msra.mxu0 0.0
  %1186 = vmatprep.subr.mxu0 0.0
  %1187 = vmatpush1.msra.mxu0 0.0
  %1188 = vmatprep.subr.mxu0 0.0
  %1189 = vmatpush1.msra.mxu0 0.0
  %1190 = vmatprep.subr.mxu0 0.0
  %1191 = vmatpush1.msra.mxu0 0.0
  %1192 = vmatprep.subr.mxu0 0.0
  %1193 = vmatpush1.msra.mxu0 0.0
  %1194 = vmatprep.subr.mxu0 0.0
  %1195 = vmatpush1.msra.mxu0 0.0
  %1196 = vmatprep.subr.mxu0 0.0
  %1197 = vmatpush1.msra.mxu0 0.0
  %1198 = vmatprep.subr.mxu0 0.0
  %1199 = vmatpush1.msra.mxu0 0.0
  %1200 = vmatprep.subr.mxu0 0.0
  %1201 = vmatpush1.msra.mxu0 0.0
  %1202 = vmatprep.subr.mxu0 0.0
  %1203 = vmatpush1.msra.mxu0 0.0
  %1204 = vmatprep.subr.mxu0 0.0
  %1205 = vmatpush1.msra.mxu0 0.0
  %1206 = vmatprep.subr.mxu0 0.0
  %1207 = vmatpush1.msra.mxu0 0.0
  %1208 = vmatprep.subr.mxu0 0.0
  %1209 = vmatpush1.msra.mxu0 0.0
  %1210 = vmatprep.subr.mxu0 0.0
  %1211 = vmatpush1.msra.mxu0 %v1175
  %1212 = vmatprep.subr.mxu0 0.0
  %1213 = vmatpush2.msra.mxu0 0.0
  %1214 = vmatprep.subr.mxu0 0.0
  %1215 = vmatpush2.msra.mxu0 0.0
  %1216 = vmatprep.subr.mxu0 0.0
  %1217 = vmatpush2.msra.mxu0 0.0
  %1218 = vmatprep.subr.mxu0 0.0
  %1219 = vmatpush2.msra.mxu0 0.0
  %1220 = vmatprep.subr.mxu0 0.0
  %1221 = vmatpush2.msra.mxu0 0.0
  %1222 = vmatprep.subr.mxu0 0.0
  %1223 = vmatpush2.msra.mxu0 0.0
  %1224 = vmatprep.subr.mxu0 0.0
  %1225 = vmatpush2.msra.mxu0 0.0
  %1226 = vmatprep.subr.mxu0 0.0
  %1227 = vmatpush2.msra.mxu0 0.0
  %1228 = vmatprep.subr.mxu0 0.0
  %1229 = vmatpush2.msra.mxu0 0.0
  %1230 = vmatprep.subr.mxu0 0.0
  %1231 = vmatpush2.msra.mxu0 0.0
  %1232 = vmatprep.subr.mxu0 0.0
  %1233 = vmatpush2.msra.mxu0 0.0
  %1234 = vmatprep.subr.mxu0 0.0
  %1235 = vmatpush2.msra.mxu0 0.0
  %1236 = vmatprep.subr.mxu0 0.0
  %1237 = vmatpush2.msra.mxu0 0.0
  %1238 = vmatprep.subr.mxu0 0.0
  %1239 = vmatpush2.msra.mxu0 0.0
  %1240 = vmatprep.subr.mxu0 0.0
  %1241 = vmatpush2.msra.mxu0 0.0
  %1242 = vmatprep.subr.mxu0 0.0
  %1243 = vmatpush2.msra.mxu0 0.0
  %1244 = vmatprep.mubr.f32.mxu0 0.0
  %1245 = vmatmul.mubr.f32.gmra.mxu0 %v1178
  %v1246 = vpop.f32.mrf.mxu0
  %v1247 = vadd.f32 0.0, %v1246
  %v1248 = vpop.f32.mrf.mxu0
  %1249 = vdwg.mxu0
  %1251 = vrot.lane.b32.xlu0 %v1247, 8
  %v1252 = vpop.permute.xlu0 %1251
  %1254 = vst.msk [vmem:[#allocation3 + $0x8] sm:$0xff] %vm556, %v1252
  %v1255 = vld [vmem:[#allocation2 + $0x8] sm:$0xff]
  %1257 = vrot.lane.b32.xlu0 %v1255, 112
  %v1258 = vpop.permute.xlu0 %1257
  %1259 = vrot.lane.b32.xlu0 %v1255, 80
  %v1260 = vpop.permute.xlu0 %1259
  %v1261 = vsel %vm214, %v1258, 0
  %v1263 = vsel %vm214, %v1260, 0
  %1265 = vmatprep.subr.mxu0 0.0
  %1266 = vmatpush1.xpose.msra.mxu0 0.0
  %1267 = vmatprep.subr.mxu0 0.0
  %1268 = vmatpush1.xpose.msra.mxu0 0.0
  %1269 = vmatprep.subr.mxu0 0.0
  %1270 = vmatpush1.xpose.msra.mxu0 0.0
  %1271 = vmatprep.subr.mxu0 0.0
  %1272 = vmatpush1.xpose.msra.mxu0 0.0
  %1273 = vmatprep.subr.mxu0 0.0
  %1274 = vmatpush1.xpose.msra.mxu0 0.0
  %1275 = vmatprep.subr.mxu0 0.0
  %1276 = vmatpush1.xpose.msra.mxu0 0.0
  %1277 = vmatprep.subr.mxu0 0.0
  %1278 = vmatpush1.xpose.msra.mxu0 0.0
  %1279 = vmatprep.subr.mxu0 0.0
  %1280 = vmatpush1.xpose.msra.mxu0 0.0
  %1281 = vmatprep.subr.mxu0 0.0
  %1282 = vmatpush1.xpose.msra.mxu0 0.0
  %1283 = vmatprep.subr.mxu0 0.0
  %1284 = vmatpush1.xpose.msra.mxu0 0.0
  %1285 = vmatprep.subr.mxu0 0.0
  %1286 = vmatpush1.xpose.msra.mxu0 0.0
  %1287 = vmatprep.subr.mxu0 0.0
  %1288 = vmatpush1.xpose.msra.mxu0 0.0
  %1289 = vmatprep.subr.mxu0 0.0
  %1290 = vmatpush1.xpose.msra.mxu0 0.0
  %1291 = vmatprep.subr.mxu0 0.0
  %1292 = vmatpush1.xpose.msra.mxu0 0.0
  %1293 = vmatprep.subr.mxu0 0.0
  %1294 = vmatpush1.xpose.msra.mxu0 0.0
  %1295 = vmatprep.subr.mxu0 0.0
  %1296 = vmatpush1.xpose.msra.mxu0 %v1263
  %1297 = vmatprep.subr.mxu0 0.0
  %1298 = vmatpush2.xpose.msra.mxu0 0.0
  %1299 = vmatprep.subr.mxu0 0.0
  %1300 = vmatpush2.xpose.msra.mxu0 0.0
  %1301 = vmatprep.subr.mxu0 0.0
  %1302 = vmatpush2.xpose.msra.mxu0 0.0
  %1303 = vmatprep.subr.mxu0 0.0
  %1304 = vmatpush2.xpose.msra.mxu0 0.0
  %1305 = vmatprep.subr.mxu0 0.0
  %1306 = vmatpush2.xpose.msra.mxu0 0.0
  %1307 = vmatprep.subr.mxu0 0.0
  %1308 = vmatpush2.xpose.msra.mxu0 0.0
  %1309 = vmatprep.subr.mxu0 0.0
  %1310 = vmatpush2.xpose.msra.mxu0 0.0
  %1311 = vmatprep.subr.mxu0 0.0
  %1312 = vmatpush2.xpose.msra.mxu0 0.0
  %1313 = vmatprep.subr.mxu0 0.0
  %1314 = vmatpush2.xpose.msra.mxu0 0.0
  %1315 = vmatprep.subr.mxu0 0.0
  %1316 = vmatpush2.xpose.msra.mxu0 0.0
  %1317 = vmatprep.subr.mxu0 0.0
  %1318 = vmatpush2.xpose.msra.mxu0 0.0
  %1319 = vmatprep.subr.mxu0 0.0
  %1320 = vmatpush2.xpose.msra.mxu0 0.0
  %1321 = vmatprep.subr.mxu0 0.0
  %1322 = vmatpush2.xpose.msra.mxu0 0.0
  %1323 = vmatprep.subr.mxu0 0.0
  %1324 = vmatpush2.xpose.msra.mxu0 0.0
  %1325 = vmatprep.subr.mxu0 0.0
  %1326 = vmatpush2.xpose.msra.mxu0 0.0
  %1327 = vmatprep.subr.mxu0 0.0
  %1328 = vmatpush2.xpose.msra.mxu0 0.0
  %1329 = vmatprep.mubr.f32.mxu0 0.0
  %1330 = vmatmul.mubr.f32.gmra.mxu0 %v1261
  %v1331 = vpop.f32.mrf.mxu0
  %v1332 = vadd.f32 0.0, %v1331
  %v1333 = vpop.f32.mrf.mxu0
  %1334 = vdwg.mxu0
  %v1335 = vmul.f32 %v1332, 0.35355338
  %v1336 = vadd.f32 %v1335, %v991
  %v1337 = vsel %vm214, %v1336, -inf
  %1338 = vmax.xlane.f32.xlu0 %v1337
  %v1339 = vpop.xlane.xlu0 %1338
  %v1340 = vsub.f32 %v1336, %v1339
  %v1341 = vmul.f32 %v1340, 1.442695
  %v1342 = vpow.pop %v1341
  %v1343 = vsel %vm214, %v1342, 0.0
  %1344 = vadd.xlane.f32.xlu0 %v1343
  %v1345 = vpop.xlane.xlu0 %1344
  %v1346 = vrcp.pop %v1345
  %v1347 = vmul.f32 %v1342, %v1346
  %1348 = vrot.lane.b32.xlu0 %v1255, 48
  %v1349 = vpop.permute.xlu0 %1348
  %v1352 = vsel %vm214, %v1347, 0
  %1354 = vmatprep.subr.mxu0 0.0
  %1355 = vmatpush1.msra.mxu0 0.0
  %1356 = vmatprep.subr.mxu0 0.0
  %1357 = vmatpush1.msra.mxu0 0.0
  %1358 = vmatprep.subr.mxu0 0.0
  %1359 = vmatpush1.msra.mxu0 0.0
  %1360 = vmatprep.subr.mxu0 0.0
  %1361 = vmatpush1.msra.mxu0 0.0
  %1362 = vmatprep.subr.mxu0 0.0
  %1363 = vmatpush1.msra.mxu0 0.0
  %1364 = vmatprep.subr.mxu0 0.0
  %1365 = vmatpush1.msra.mxu0 0.0
  %1366 = vmatprep.subr.mxu0 0.0
  %1367 = vmatpush1.msra.mxu0 0.0
  %1368 = vmatprep.subr.mxu0 0.0
  %1369 = vmatpush1.msra.mxu0 0.0
  %1370 = vmatprep.subr.mxu0 0.0
  %1371 = vmatpush1.msra.mxu0 0.0
  %1372 = vmatprep.subr.mxu0 0.0
  %1373 = vmatpush1.msra.mxu0 0.0
  %1374 = vmatprep.subr.mxu0 0.0
  %1375 = vmatpush1.msra.mxu0 0.0
  %1376 = vmatprep.subr.mxu0 0.0
  %1377 = vmatpush1.msra.mxu0 0.0
  %1378 = vmatprep.subr.mxu0 0.0
  %1379 = vmatpush1.msra.mxu0 0.0
  %1380 = vmatprep.subr.mxu0 0.0
  %1381 = vmatpush1.msra.mxu0 0.0
  %1382 = vmatprep.subr.mxu0 0.0
  %1383 = vmatpush1.msra.mxu0 0.0
  %1384 = vmatprep.subr.mxu0 0.0
  %1385 = vmatpush1.msra.mxu0 %v1349
  %1386 = vmatprep.subr.mxu0 0.0
  %1387 = vmatpush2.msra.mxu0 0.0
  %1388 = vmatprep.subr.mxu0 0.0
  %1389 = vmatpush2.msra.mxu0 0.0
  %1390 = vmatprep.subr.mxu0 0.0
  %1391 = vmatpush2.msra.mxu0 0.0
  %1392 = vmatprep.subr.mxu0 0.0
  %1393 = vmatpush2.msra.mxu0 0.0
  %1394 = vmatprep.subr.mxu0 0.0
  %1395 = vmatpush2.msra.mxu0 0.0
  %1396 = vmatprep.subr.mxu0 0.0
  %1397 = vmatpush2.msra.mxu0 0.0
  %1398 = vmatprep.subr.mxu0 0.0
  %1399 = vmatpush2.msra.mxu0 0.0
  %1400 = vmatprep.subr.mxu0 0.0
  %1401 = vmatpush2.msra.mxu0 0.0
  %1402 = vmatprep.subr.mxu0 0.0
  %1403 = vmatpush2.msra.mxu0 0.0
  %1404 = vmatprep.subr.mxu0 0.0
  %1405 = vmatpush2.msra.mxu0 0.0
  %1406 = vmatprep.subr.mxu0 0.0
  %1407 = vmatpush2.msra.mxu0 0.0
  %1408 = vmatprep.subr.mxu0 0.0
  %1409 = vmatpush2.msra.mxu0 0.0
  %1410 = vmatprep.subr.mxu0 0.0
  %1411 = vmatpush2.msra.mxu0 0.0
  %1412 = vmatprep.subr.mxu0 0.0
  %1413 = vmatpush2.msra.mxu0 0.0
  %1414 = vmatprep.subr.mxu0 0.0
  %1415 = vmatpush2.msra.mxu0 0.0
  %1416 = vmatprep.subr.mxu0 0.0
  %1417 = vmatpush2.msra.mxu0 0.0
  %1418 = vmatprep.mubr.f32.mxu0 0.0
  %1419 = vmatmul.mubr.f32.gmra.mxu0 %v1352
  %v1420 = vpop.f32.mrf.mxu0
  %v1421 = vadd.f32 0.0, %v1420
  %v1422 = vpop.f32.mrf.mxu0
  %1423 = vdwg.mxu0
  %1425 = vrot.lane.b32.xlu0 %v1421, 16
  %v1426 = vpop.permute.xlu0 %1425
  %1428 = vst.msk [vmem:[#allocation3 + $0x8] sm:$0xff] %vm731, %v1426
  %v1429 = vld [vmem:[#allocation2 + $0x8] sm:$0xff]
  %1431 = vrot.lane.b32.xlu0 %v1429, 104
  %v1432 = vpop.permute.xlu0 %1431
  %1433 = vrot.lane.b32.xlu0 %v1429, 72
  %v1434 = vpop.permute.xlu0 %1433
  %v1435 = vsel %vm214, %v1432, 0
  %v1437 = vsel %vm214, %v1434, 0
  %1439 = vmatprep.subr.mxu0 0.0
  %1440 = vmatpush1.xpose.msra.mxu0 0.0
  %1441 = vmatprep.subr.mxu0 0.0
  %1442 = vmatpush1.xpose.msra.mxu0 0.0
  %1443 = vmatprep.subr.mxu0 0.0
  %1444 = vmatpush1.xpose.msra.mxu0 0.0
  %1445 = vmatprep.subr.mxu0 0.0
  %1446 = vmatpush1.xpose.msra.mxu0 0.0
  %1447 = vmatprep.subr.mxu0 0.0
  %1448 = vmatpush1.xpose.msra.mxu0 0.0
  %1449 = vmatprep.subr.mxu0 0.0
  %1450 = vmatpush1.xpose.msra.mxu0 0.0
  %1451 = vmatprep.subr.mxu0 0.0
  %1452 = vmatpush1.xpose.msra.mxu0 0.0
  %1453 = vmatprep.subr.mxu0 0.0
  %1454 = vmatpush1.xpose.msra.mxu0 0.0
  %1455 = vmatprep.subr.mxu0 0.0
  %1456 = vmatpush1.xpose.msra.mxu0 0.0
  %1457 = vmatprep.subr.mxu0 0.0
  %1458 = vmatpush1.xpose.msra.mxu0 0.0
  %1459 = vmatprep.subr.mxu0 0.0
  %1460 = vmatpush1.xpose.msra.mxu0 0.0
  %1461 = vmatprep.subr.mxu0 0.0
  %1462 = vmatpush1.xpose.msra.mxu0 0.0
  %1463 = vmatprep.subr.mxu0 0.0
  %1464 = vmatpush1.xpose.msra.mxu0 0.0
  %1465 = vmatprep.subr.mxu0 0.0
  %1466 = vmatpush1.xpose.msra.mxu0 0.0
  %1467 = vmatprep.subr.mxu0 0.0
  %1468 = vmatpush1.xpose.msra.mxu0 0.0
  %1469 = vmatprep.subr.mxu0 0.0
  %1470 = vmatpush1.xpose.msra.mxu0 %v1437
  %1471 = vmatprep.subr.mxu0 0.0
  %1472 = vmatpush2.xpose.msra.mxu0 0.0
  %1473 = vmatprep.subr.mxu0 0.0
  %1474 = vmatpush2.xpose.msra.mxu0 0.0
  %1475 = vmatprep.subr.mxu0 0.0
  %1476 = vmatpush2.xpose.msra.mxu0 0.0
  %1477 = vmatprep.subr.mxu0 0.0
  %1478 = vmatpush2.xpose.msra.mxu0 0.0
  %1479 = vmatprep.subr.mxu0 0.0
  %1480 = vmatpush2.xpose.msra.mxu0 0.0
  %1481 = vmatprep.subr.mxu0 0.0
  %1482 = vmatpush2.xpose.msra.mxu0 0.0
  %1483 = vmatprep.subr.mxu0 0.0
  %1484 = vmatpush2.xpose.msra.mxu0 0.0
  %1485 = vmatprep.subr.mxu0 0.0
  %1486 = vmatpush2.xpose.msra.mxu0 0.0
  %1487 = vmatprep.subr.mxu0 0.0
  %1488 = vmatpush2.xpose.msra.mxu0 0.0
  %1489 = vmatprep.subr.mxu0 0.0
  %1490 = vmatpush2.xpose.msra.mxu0 0.0
  %1491 = vmatprep.subr.mxu0 0.0
  %1492 = vmatpush2.xpose.msra.mxu0 0.0
  %1493 = vmatprep.subr.mxu0 0.0
  %1494 = vmatpush2.xpose.msra.mxu0 0.0
  %1495 = vmatprep.subr.mxu0 0.0
  %1496 = vmatpush2.xpose.msra.mxu0 0.0
  %1497 = vmatprep.subr.mxu0 0.0
  %1498 = vmatpush2.xpose.msra.mxu0 0.0
  %1499 = vmatprep.subr.mxu0 0.0
  %1500 = vmatpush2.xpose.msra.mxu0 0.0
  %1501 = vmatprep.subr.mxu0 0.0
  %1502 = vmatpush2.xpose.msra.mxu0 0.0
  %1503 = vmatprep.mubr.f32.mxu0 0.0
  %1504 = vmatmul.mubr.f32.gmra.mxu0 %v1435
  %v1505 = vpop.f32.mrf.mxu0
  %v1506 = vadd.f32 0.0, %v1505
  %v1507 = vpop.f32.mrf.mxu0
  %1508 = vdwg.mxu0
  %v1509 = vmul.f32 %v1506, 0.35355338
  %v1510 = vadd.f32 %v1509, %v991
  %v1511 = vsel %vm214, %v1510, -inf
  %1512 = vmax.xlane.f32.xlu0 %v1511
  %v1513 = vpop.xlane.xlu0 %1512
  %v1514 = vsub.f32 %v1510, %v1513
  %v1515 = vmul.f32 %v1514, 1.442695
  %v1516 = vpow.pop %v1515
  %v1517 = vsel %vm214, %v1516, 0.0
  %1518 = vadd.xlane.f32.xlu0 %v1517
  %v1519 = vpop.xlane.xlu0 %1518
  %v1520 = vrcp.pop %v1519
  %v1521 = vmul.f32 %v1516, %v1520
  %1522 = vrot.lane.b32.xlu0 %v1429, 40
  %v1523 = vpop.permute.xlu0 %1522
  %v1526 = vsel %vm214, %v1521, 0
  %1528 = vmatprep.subr.mxu0 0.0
  %1529 = vmatpush1.msra.mxu0 0.0
  %1530 = vmatprep.subr.mxu0 0.0
  %1531 = vmatpush1.msra.mxu0 0.0
  %1532 = vmatprep.subr.mxu0 0.0
  %1533 = vmatpush1.msra.mxu0 0.0
  %1534 = vmatprep.subr.mxu0 0.0
  %1535 = vmatpush1.msra.mxu0 0.0
  %1536 = vmatprep.subr.mxu0 0.0
  %1537 = vmatpush1.msra.mxu0 0.0
  %1538 = vmatprep.subr.mxu0 0.0
  %1539 = vmatpush1.msra.mxu0 0.0
  %1540 = vmatprep.subr.mxu0 0.0
  %1541 = vmatpush1.msra.mxu0 0.0
  %1542 = vmatprep.subr.mxu0 0.0
  %1543 = vmatpush1.msra.mxu0 0.0
  %1544 = vmatprep.subr.mxu0 0.0
  %1545 = vmatpush1.msra.mxu0 0.0
  %1546 = vmatprep.subr.mxu0 0.0
  %1547 = vmatpush1.msra.mxu0 0.0
  %1548 = vmatprep.subr.mxu0 0.0
  %1549 = vmatpush1.msra.mxu0 0.0
  %1550 = vmatprep.subr.mxu0 0.0
  %1551 = vmatpush1.msra.mxu0 0.0
  %1552 = vmatprep.subr.mxu0 0.0
  %1553 = vmatpush1.msra.mxu0 0.0
  %1554 = vmatprep.subr.mxu0 0.0
  %1555 = vmatpush1.msra.mxu0 0.0
  %1556 = vmatprep.subr.mxu0 0.0
  %1557 = vmatpush1.msra.mxu0 0.0
  %1558 = vmatprep.subr.mxu0 0.0
  %1559 = vmatpush1.msra.mxu0 %v1523
  %1560 = vmatprep.subr.mxu0 0.0
  %1561 = vmatpush2.msra.mxu0 0.0
  %1562 = vmatprep.subr.mxu0 0.0
  %1563 = vmatpush2.msra.mxu0 0.0
  %1564 = vmatprep.subr.mxu0 0.0
  %1565 = vmatpush2.msra.mxu0 0.0
  %1566 = vmatprep.subr.mxu0 0.0
  %1567 = vmatpush2.msra.mxu0 0.0
  %1568 = vmatprep.subr.mxu0 0.0
  %1569 = vmatpush2.msra.mxu0 0.0
  %1570 = vmatprep.subr.mxu0 0.0
  %1571 = vmatpush2.msra.mxu0 0.0
  %1572 = vmatprep.subr.mxu0 0.0
  %1573 = vmatpush2.msra.mxu0 0.0
  %1574 = vmatprep.subr.mxu0 0.0
  %1575 = vmatpush2.msra.mxu0 0.0
  %1576 = vmatprep.subr.mxu0 0.0
  %1577 = vmatpush2.msra.mxu0 0.0
  %1578 = vmatprep.subr.mxu0 0.0
  %1579 = vmatpush2.msra.mxu0 0.0
  %1580 = vmatprep.subr.mxu0 0.0
  %1581 = vmatpush2.msra.mxu0 0.0
  %1582 = vmatprep.subr.mxu0 0.0
  %1583 = vmatpush2.msra.mxu0 0.0
  %1584 = vmatprep.subr.mxu0 0.0
  %1585 = vmatpush2.msra.mxu0 0.0
  %1586 = vmatprep.subr.mxu0 0.0
  %1587 = vmatpush2.msra.mxu0 0.0
  %1588 = vmatprep.subr.mxu0 0.0
  %1589 = vmatpush2.msra.mxu0 0.0
  %1590 = vmatprep.subr.mxu0 0.0
  %1591 = vmatpush2.msra.mxu0 0.0
  %1592 = vmatprep.mubr.f32.mxu0 0.0
  %1593 = vmatmul.mubr.f32.gmra.mxu0 %v1526
  %v1594 = vpop.f32.mrf.mxu0
  %v1595 = vadd.f32 0.0, %v1594
  %v1596 = vpop.f32.mrf.mxu0
  %1597 = vdwg.mxu0
  %1599 = vrot.lane.b32.xlu0 %v1595, 24
  %v1600 = vpop.permute.xlu0 %1599
  %1602 = vst.msk [vmem:[#allocation3 + $0x8] sm:$0xff] %vm906, %v1600
  %v1603 = vld [vmem:[#allocation3] sm:$0xff]
  %v1604 = vld [vmem:[#allocation3 + $0x8] sm:$0xff]
  %v1605 = vld [vmem:[%s6] sm:$0xff]
  %v1606 = vld [vmem:[%s6 + $0x8] sm:$0xff]
  %v1607 = vld [vmem:[%s6 + $0x10] sm:$0xff]
  %v1608 = vld [vmem:[%s6 + $0x18] sm:$0xff]
  %v1609 = vld [vmem:[%s7] sm:$0x1]
  %v1611 = vlaneseq
  %v1612 = vshrl.u32 %v1611, 7
  %v1613 = vsub.s32 0, %v1612
  %v1614 = vrot.slane %v1609, %v1613
  %v1617 = vsel %vm71, %v1603, 0
  %v1620 = vsel %vm71, %v1604, 0
  %1622 = vmatprep.subr.mxu0 0.0
  %1623 = vmatpush1.msra.mxu0 0.0
  %1624 = vmatprep.subr.mxu0 0.0
  %1625 = vmatpush1.msra.mxu0 0.0
  %1626 = vmatprep.subr.mxu0 0.0
  %1627 = vmatpush1.msra.mxu0 0.0
  %1628 = vmatprep.subr.mxu0 0.0
  %1629 = vmatpush1.msra.mxu0 0.0
  %1630 = vmatprep.subr.mxu0 0.0
  %1631 = vmatpush1.msra.mxu0 0.0
  %1632 = vmatprep.subr.mxu0 0.0
  %1633 = vmatpush1.msra.mxu0 0.0
  %1634 = vmatprep.subr.mxu0 0.0
  %1635 = vmatpush1.msra.mxu0 0.0
  %1636 = vmatprep.subr.mxu0 0.0
  %1637 = vmatpush1.msra.mxu0 0.0
  %1638 = vmatprep.subr.mxu0 0.0
  %1639 = vmatpush1.msra.mxu0 0.0
  %1640 = vmatprep.subr.mxu0 0.0
  %1641 = vmatpush1.msra.mxu0 0.0
  %1642 = vmatprep.subr.mxu0 0.0
  %1643 = vmatpush1.msra.mxu0 0.0
  %1644 = vmatprep.subr.mxu0 0.0
  %1645 = vmatpush1.msra.mxu0 0.0
  %1646 = vmatprep.subr.mxu0 0.0
  %1647 = vmatpush1.msra.mxu0 %v1608
  %1648 = vmatprep.subr.mxu0 0.0
  %1649 = vmatpush1.msra.mxu0 %v1607
  %1650 = vmatprep.subr.mxu0 0.0
  %1651 = vmatpush1.msra.mxu0 %v1606
  %1652 = vmatprep.subr.mxu0 0.0
  %1653 = vmatpush1.msra.mxu0 %v1605
  %1654 = vmatprep.subr.mxu0 0.0
  %1655 = vmatpush2.msra.mxu0 0.0
  %1656 = vmatprep.subr.mxu0 0.0
  %1657 = vmatpush2.msra.mxu0 0.0
  %1658 = vmatprep.subr.mxu0 0.0
  %1659 = vmatpush2.msra.mxu0 0.0
  %1660 = vmatprep.subr.mxu0 0.0
  %1661 = vmatpush2.msra.mxu0 0.0
  %1662 = vmatprep.subr.mxu0 0.0
  %1663 = vmatpush2.msra.mxu0 0.0
  %1664 = vmatprep.subr.mxu0 0.0
  %1665 = vmatpush2.msra.mxu0 0.0
  %1666 = vmatprep.subr.mxu0 0.0
  %1667 = vmatpush2.msra.mxu0 0.0
  %1668 = vmatprep.subr.mxu0 0.0
  %1669 = vmatpush2.msra.mxu0 0.0
  %1670 = vmatprep.subr.mxu0 0.0
  %1671 = vmatpush2.msra.mxu0 0.0
  %1672 = vmatprep.subr.mxu0 0.0
  %1673 = vmatpush2.msra.mxu0 0.0
  %1674 = vmatprep.subr.mxu0 0.0
  %1675 = vmatpush2.msra.mxu0 0.0
  %1676 = vmatprep.subr.mxu0 0.0
  %1677 = vmatpush2.msra.mxu0 0.0
  %1678 = vmatprep.subr.mxu0 0.0
  %1679 = vmatpush2.msra.mxu0 0.0
  %1680 = vmatprep.subr.mxu0 0.0
  %1681 = vmatpush2.msra.mxu0 0.0
  %1682 = vmatprep.subr.mxu0 0.0
  %1683 = vmatpush2.msra.mxu0 0.0
  %1684 = vmatprep.subr.mxu0 0.0
  %1685 = vmatpush2.msra.mxu0 0.0
  %1686 = vmatprep.mubr.f32.mxu0 0.0
  %1687 = vmatmul.mubr.f32.gmra.mxu0 %v1617
  %v1688 = vpop.f32.mrf.mxu0
  %v1689 = vadd.f32 %v1614, %v1688
  %v1690 = vpop.f32.mrf.mxu0
  %1691 = vmatprep.mubr.f32.mxu0 0.0
  %1692 = vmatmul.mubr.f32.gmra.mxu0 %v1620
  %v1693 = vpop.f32.mrf.mxu0
  %v1694 = vadd.f32 %v1614, %v1693
  %v1695 = vpop.f32.mrf.mxu0
  %1696 = vdwg.mxu0
  %v1697 = vadd.f32 %v1689, %v113
  %v1698 = vadd.f32 %v1694, %v114
  %v1699 = vld [vmem:[%s8] sm:$0x1]
  %v1700 = vld [vmem:[%s9] sm:$0x1]
  %v1701 = vsel %vm71, %v1697, 0.0
  %1702 = vadd.xlane.f32.xlu0 %v1701
  %v1703 = vpop.xlane.xlu0 %1702
  %v1704 = vsel %vm71, %v1698, 0.0
  %1705 = vadd.xlane.f32.xlu0 %v1704
  %v1706 = vpop.xlane.xlu0 %1705
  %v1707 = vmul.f32 %v1703, %v78
  %v1708 = vmul.f32 %v1706, %v78
  %v1709 = vsub.f32 %v1697, %v1707
  %v1710 = vsub.f32 %v1698, %v1708
  %v1711 = vmul.f32 %v1709, %v1709
  %v1712 = vmul.f32 %v1710, %v1710
  %v1713 = vsel %vm71, %v1711, 0.0
  %1714 = vadd.xlane.f32.xlu0 %v1713
  %v1715 = vpop.xlane.xlu0 %1714
  %v1716 = vsel %vm71, %v1712, 0.0
  %1717 = vadd.xlane.f32.xlu0 %v1716
  %v1718 = vpop.xlane.xlu0 %1717
  %v1719 = vmul.f32 %v1715, %v78
  %v1720 = vmul.f32 %v1718, %v78
  %v1721 = vadd.f32 %v1719, 1e-05
  %v1722 = vadd.f32 %v1720, 1e-05
  %v1723 = vrsqrt.pop %v1721
  %v1724 = vrsqrt.pop %v1722
  %v1725 = vmul.f32 %v1709, %v1723
  %v1726 = vmul.f32 %v1710, %v1724
  %v1728 = vlaneseq
  %v1729 = vshrl.u32 %v1728, 7
  %v1730 = vsub.s32 0, %v1729
  %v1731 = vrot.slane %v1699, %v1730
  %v1733 = vmul.f32 %v1725, %v1731
  %v1734 = vmul.f32 %v1726, %v1731
  %v1736 = vlaneseq
  %v1737 = vshrl.u32 %v1736, 7
  %v1738 = vsub.s32 0, %v1737
  %v1739 = vrot.slane %v1700, %v1738
  %v1741 = vadd.f32 %v1733, %v1739
  %v1742 = vadd.f32 %v1734, %v1739
  %v1743 = vld [vmem:[%s10] sm:$0xff]
  %v1744 = vld [vmem:[%s10 + $0x8] sm:$0xff]
  %v1745 = vld [vmem:[%s10 + $0x10] sm:$0xff]
  %v1746 = vld [vmem:[%s10 + $0x18] sm:$0xff]
  %v1747 = vld [vmem:[%s11] sm:$0x1]
  %v1749 = vlaneseq
  %v1750 = vshrl.u32 %v1749, 7
  %v1751 = vsub.s32 0, %v1750
  %v1752 = vrot.slane %v1747, %v1751
  %v1755 = vsel %vm71, %v1741, 0
  %v1758 = vsel %vm71, %v1742, 0
  %1760 = vmatprep.subr.mxu0 0.0
  %1761 = vmatpush1.msra.mxu0 0.0
  %1762 = vmatprep.subr.mxu0 0.0
  %1763 = vmatpush1.msra.mxu0 0.0
  %1764 = vmatprep.subr.mxu0 0.0
  %1765 = vmatpush1.msra.mxu0 0.0
  %1766 = vmatprep.subr.mxu0 0.0
  %1767 = vmatpush1.msra.mxu0 0.0
  %1768 = vmatprep.subr.mxu0 0.0
  %1769 = vmatpush1.msra.mxu0 0.0
  %1770 = vmatprep.subr.mxu0 0.0
  %1771 = vmatpush1.msra.mxu0 0.0
  %1772 = vmatprep.subr.mxu0 0.0
  %1773 = vmatpush1.msra.mxu0 0.0
  %1774 = vmatprep.subr.mxu0 0.0
  %1775 = vmatpush1.msra.mxu0 0.0
  %1776 = vmatprep.subr.mxu0 0.0
  %1777 = vmatpush1.msra.mxu0 0.0
  %1778 = vmatprep.subr.mxu0 0.0
  %1779 = vmatpush1.msra.mxu0 0.0
  %1780 = vmatprep.subr.mxu0 0.0
  %1781 = vmatpush1.msra.mxu0 0.0
  %1782 = vmatprep.subr.mxu0 0.0
  %1783 = vmatpush1.msra.mxu0 0.0
  %1784 = vmatprep.subr.mxu0 0.0
  %1785 = vmatpush1.msra.mxu0 %v1746
  %1786 = vmatprep.subr.mxu0 0.0
  %1787 = vmatpush1.msra.mxu0 %v1745
  %1788 = vmatprep.subr.mxu0 0.0
  %1789 = vmatpush1.msra.mxu0 %v1744
  %1790 = vmatprep.subr.mxu0 0.0
  %1791 = vmatpush1.msra.mxu0 %v1743
  %1792 = vmatprep.subr.mxu0 0.0
  %1793 = vmatpush2.msra.mxu0 0.0
  %1794 = vmatprep.subr.mxu0 0.0
  %1795 = vmatpush2.msra.mxu0 0.0
  %1796 = vmatprep.subr.mxu0 0.0
  %1797 = vmatpush2.msra.mxu0 0.0
  %1798 = vmatprep.subr.mxu0 0.0
  %1799 = vmatpush2.msra.mxu0 0.0
  %1800 = vmatprep.subr.mxu0 0.0
  %1801 = vmatpush2.msra.mxu0 0.0
  %1802 = vmatprep.subr.mxu0 0.0
  %1803 = vmatpush2.msra.mxu0 0.0
  %1804 = vmatprep.subr.mxu0 0.0
  %1805 = vmatpush2.msra.mxu0 0.0
  %1806 = vmatprep.subr.mxu0 0.0
  %1807 = vmatpush2.msra.mxu0 0.0
  %1808 = vmatprep.subr.mxu0 0.0
  %1809 = vmatpush2.msra.mxu0 0.0
  %1810 = vmatprep.subr.mxu0 0.0
  %1811 = vmatpush2.msra.mxu0 0.0
  %1812 = vmatprep.subr.mxu0 0.0
  %1813 = vmatpush2.msra.mxu0 0.0
  %1814 = vmatprep.subr.mxu0 0.0
  %1815 = vmatpush2.msra.mxu0 0.0
  %1816 = vmatprep.subr.mxu0 0.0
  %1817 = vmatpush2.msra.mxu0 0.0
  %1818 = vmatprep.subr.mxu0 0.0
  %1819 = vmatpush2.msra.mxu0 0.0
  %1820 = vmatprep.subr.mxu0 0.0
  %1821 = vmatpush2.msra.mxu0 0.0
  %1822 = vmatprep.subr.mxu0 0.0
  %1823 = vmatpush2.msra.mxu0 0.0
  %1824 = vmatprep.mubr.f32.mxu0 0.0
  %1825 = vmatmul.mubr.f32.gmra.mxu0 %v1755
  %v1826 = vpop.f32.mrf.mxu0
  %v1827 = vadd.f32 %v1752, %v1826
  %v1828 = vpop.f32.mrf.mxu0
  %1829 = vmatprep.mubr.f32.mxu0 0.0
  %1830 = vmatmul.mubr.f32.gmra.mxu0 %v1758
  %v1831 = vpop.f32.mrf.mxu0
  %v1832 = vadd.f32 %v1752, %v1831
  %v1833 = vpop.f32.mrf.mxu0
  %1834 = vdwg.mxu0
  %v1835 = vmul.f32 %v1827, 0.5
  %v1836 = vmul.f32 %v1832, 0.5
  %v1837 = vmul.f32 %v1827, 0.044715
  %v1838 = vmul.f32 %v1832, 0.044715
  %v1839 = vmul.f32 %v1837, %v1827
  %v1840 = vmul.f32 %v1838, %v1832
  %v1841 = vmul.f32 %v1839, %v1827
  %v1842 = vmul.f32 %v1840, %v1832
  %v1843 = vadd.f32 %v1827, %v1841
  %v1844 = vadd.f32 %v1832, %v1842
  %v1845 = vmul.f32 %v1843, 0.7978846
  %v1846 = vmul.f32 %v1844, 0.7978846
  %v1847 = vtanh.pop %v1845
  %v1848 = vtanh.pop %v1846
  %v1849 = vadd.f32 %v1847, 1.0
  %v1850 = vadd.f32 %v1848, 1.0
  %v1851 = vmul.f32 %v1835, %v1849
  %v1852 = vmul.f32 %v1836, %v1850
  %v1853 = vld [vmem:[%s12] sm:$0xff]
  %v1854 = vld [vmem:[%s12 + $0x8] sm:$0xff]
  %v1855 = vld [vmem:[%s12 + $0x10] sm:$0xff]
  %v1856 = vld [vmem:[%s12 + $0x18] sm:$0xff]
  %v1857 = vld [vmem:[%s12 + $0x20] sm:$0xff]
  %v1858 = vld [vmem:[%s12 + $0x28] sm:$0xff]
  %v1859 = vld [vmem:[%s12 + $0x30] sm:$0xff]
  %v1860 = vld [vmem:[%s12 + $0x38] sm:$0xff]
  %v1861 = vld [vmem:[%s12 + $0x40] sm:$0xff]
  %v1862 = vld [vmem:[%s12 + $0x48] sm:$0xff]
  %v1863 = vld [vmem:[%s12 + $0x50] sm:$0xff]
  %v1864 = vld [vmem:[%s12 + $0x58] sm:$0xff]
  %v1865 = vld [vmem:[%s12 + $0x60] sm:$0xff]
  %v1866 = vld [vmem:[%s12 + $0x68] sm:$0xff]
  %v1867 = vld [vmem:[%s12 + $0x70] sm:$0xff]
  %v1868 = vld [vmem:[%s12 + $0x78] sm:$0xff]
  %v1869 = vld [vmem:[%s13] sm:$0x1]
  %v1871 = vlaneseq
  %v1872 = vshrl.u32 %v1871, 7
  %v1873 = vsub.s32 0, %v1872
  %v1874 = vrot.slane %v1869, %v1873
  %1876 = vmatprep.subr.mxu0 0.0
  %1877 = vmatpush1.msra.mxu0 %v1868
  %1878 = vmatprep.subr.mxu0 0.0
  %1879 = vmatpush1.msra.mxu0 %v1867
  %1880 = vmatprep.subr.mxu0 0.0
  %1881 = vmatpush1.msra.mxu0 %v1866
  %1882 = vmatprep.subr.mxu0 0.0
  %1883 = vmatpush1.msra.mxu0 %v1865
  %1884 = vmatprep.subr.mxu0 0.0
  %1885 = vmatpush1.msra.mxu0 %v1864
  %1886 = vmatprep.subr.mxu0 0.0
  %1887 = vmatpush1.msra.mxu0 %v1863
  %1888 = vmatprep.subr.mxu0 0.0
  %1889 = vmatpush1.msra.mxu0 %v1862
  %1890 = vmatprep.subr.mxu0 0.0
  %1891 = vmatpush1.msra.mxu0 %v1861
  %1892 = vmatprep.subr.mxu0 0.0
  %1893 = vmatpush1.msra.mxu0 %v1860
  %1894 = vmatprep.subr.mxu0 0.0
  %1895 = vmatpush1.msra.mxu0 %v1859
  %1896 = vmatprep.subr.mxu0 0.0
  %1897 = vmatpush1.msra.mxu0 %v1858
  %1898 = vmatprep.subr.mxu0 0.0
  %1899 = vmatpush1.msra.mxu0 %v1857
  %1900 = vmatprep.subr.mxu0 0.0
  %1901 = vmatpush1.msra.mxu0 %v1856
  %1902 = vmatprep.subr.mxu0 0.0
  %1903 = vmatpush1.msra.mxu0 %v1855
  %1904 = vmatprep.subr.mxu0 0.0
  %1905 = vmatpush1.msra.mxu0 %v1854
  %1906 = vmatprep.subr.mxu0 0.0
  %1907 = vmatpush1.msra.mxu0 %v1853
  %1908 = vmatprep.subr.mxu0 0.0
  %1909 = vmatpush2.msra.mxu0 0.0
  %1910 = vmatprep.subr.mxu0 0.0
  %1911 = vmatpush2.msra.mxu0 0.0
  %1912 = vmatprep.subr.mxu0 0.0
  %1913 = vmatpush2.msra.mxu0 0.0
  %1914 = vmatprep.subr.mxu0 0.0
  %1915 = vmatpush2.msra.mxu0 0.0
  %1916 = vmatprep.subr.mxu0 0.0
  %1917 = vmatpush2.msra.mxu0 0.0
  %1918 = vmatprep.subr.mxu0 0.0
  %1919 = vmatpush2.msra.mxu0 0.0
  %1920 = vmatprep.subr.mxu0 0.0
  %1921 = vmatpush2.msra.mxu0 0.0
  %1922 = vmatprep.subr.mxu0 0.0
  %1923 = vmatpush2.msra.mxu0 0.0
  %1924 = vmatprep.subr.mxu0 0.0
  %1925 = vmatpush2.msra.mxu0 0.0
  %1926 = vmatprep.subr.mxu0 0.0
  %1927 = vmatpush2.msra.mxu0 0.0
  %1928 = vmatprep.subr.mxu0 0.0
  %1929 = vmatpush2.msra.mxu0 0.0
  %1930 = vmatprep.subr.mxu0 0.0
  %1931 = vmatpush2.msra.mxu0 0.0
  %1932 = vmatprep.subr.mxu0 0.0
  %1933 = vmatpush2.msra.mxu0 0.0
  %1934 = vmatprep.subr.mxu0 0.0
  %1935 = vmatpush2.msra.mxu0 0.0
  %1936 = vmatprep.subr.mxu0 0.0
  %1937 = vmatpush2.msra.mxu0 0.0
  %1938 = vmatprep.subr.mxu0 0.0
  %1939 = vmatpush2.msra.mxu0 0.0
  %1940 = vmatprep.mubr.f32.mxu0 0.0
  %1941 = vmatmul.mubr.f32.gmra.mxu0 %v1851
  %v1942 = vpop.f32.mrf.mxu0
  %v1943 = vadd.f32 %v1874, %v1942
  %v1944 = vpop.f32.mrf.mxu0
  %1945 = vmatprep.mubr.f32.mxu0 0.0
  %1946 = vmatmul.mubr.f32.gmra.mxu0 %v1852
  %v1947 = vpop.f32.mrf.mxu0
  %v1948 = vadd.f32 %v1874, %v1947
  %v1949 = vpop.f32.mrf.mxu0
  %1950 = vdwg.mxu0
  %v1951 = vadd.f32 %v1943, %v1741
  %v1952 = vadd.f32 %v1948, %v1742
  %v1953 = vld [vmem:[%s14] sm:$0x1]
  %v1954 = vld [vmem:[%s15] sm:$0x1]
  %v1955 = vsel %vm71, %v1951, 0.0
  %1956 = vadd.xlane.f32.xlu0 %v1955
  %v1957 = vpop.xlane.xlu0 %1956
  %v1958 = vsel %vm71, %v1952, 0.0
  %1959 = vadd.xlane.f32.xlu0 %v1958
  %v1960 = vpop.xlane.xlu0 %1959
  %v1961 = vmul.f32 %v1957, %v78
  %v1962 = vmul.f32 %v1960, %v78
  %v1963 = vsub.f32 %v1951, %v1961
  %v1964 = vsub.f32 %v1952, %v1962
  %v1965 = vmul.f32 %v1963, %v1963
  %v1966 = vmul.f32 %v1964, %v1964
  %v1967 = vsel %vm71, %v1965, 0.0
  %1968 = vadd.xlane.f32.xlu0 %v1967
  %v1969 = vpop.xlane.xlu0 %1968
  %v1970 = vsel %vm71, %v1966, 0.0
  %1971 = vadd.xlane.f32.xlu0 %v1970
  %v1972 = vpop.xlane.xlu0 %1971
  %v1973 = vmul.f32 %v1969, %v78
  %v1974 = vmul.f32 %v1972, %v78
  %v1975 = vadd.f32 %v1973, 1e-05
  %v1976 = vadd.f32 %v1974, 1e-05
  %v1977 = vrsqrt.pop %v1975
  %v1978 = vrsqrt.pop %v1976
  %v1979 = vmul.f32 %v1963, %v1977
  %v1980 = vmul.f32 %v1964, %v1978
  %v1982 = vlaneseq
  %v1983 = vshrl.u32 %v1982, 7
  %v1984 = vsub.s32 0, %v1983
  %v1985 = vrot.slane %v1953, %v1984
  %v1987 = vmul.f32 %v1979, %v1985
  %v1988 = vmul.f32 %v1980, %v1985
  %v1990 = vlaneseq
  %v1991 = vshrl.u32 %v1990, 7
  %v1992 = vsub.s32 0, %v1991
  %v1993 = vrot.slane %v1954, %v1992
  %v1995 = vadd.f32 %v1987, %v1993
  %v1996 = vadd.f32 %v1988, %v1993
  %s1997 = scalar_lea.vmem %s4, 32
  %v1998 = vld [vmem:[%s1997] sm:$0xff]
  %v1999 = vld [vmem:[%s1997 + $0x8] sm:$0xff]
  %v2000 = vld [vmem:[%s1997 + $0x10] sm:$0xff]
  %v2001 = vld [vmem:[%s1997 + $0x18] sm:$0xff]
  %s2002 = scalar_lea.vmem %s5, 1
  %v2003 = vld [vmem:[%s2002] sm:$0x1]
  %v2005 = vlaneseq
  %v2006 = vshrl.u32 %v2005, 7
  %v2007 = vsub.s32 0, %v2006
  %v2008 = vrot.slane %v2003, %v2007
  %v2011 = vsel %vm71, %v1995, 0
  %v2014 = vsel %vm71, %v1996, 0
  %2016 = vmatprep.subr.mxu0 0.0
  %2017 = vmatpush1.msra.mxu0 0.0
  %2018 = vmatprep.subr.mxu0 0.0
  %2019 = vmatpush1.msra.mxu0 0.0
  %2020 = vmatprep.subr.mxu0 0.0
  %2021 = vmatpush1.msra.mxu0 0.0
  %2022 = vmatprep.subr.mxu0 0.0
  %2023 = vmatpush1.msra.mxu0 0.0
  %2024 = vmatprep.subr.mxu0 0.0
  %2025 = vmatpush1.msra.mxu0 0.0
  %2026 = vmatprep.subr.mxu0 0.0
  %2027 = vmatpush1.msra.mxu0 0.0
  %2028 = vmatprep.subr.mxu0 0.0
  %2029 = vmatpush1.msra.mxu0 0.0
  %2030 = vmatprep.subr.mxu0 0.0
  %2031 = vmatpush1.msra.mxu0 0.0
  %2032 = vmatprep.subr.mxu0 0.0
  %2033 = vmatpush1.msra.mxu0 0.0
  %2034 = vmatprep.subr.mxu0 0.0
  %2035 = vmatpush1.msra.mxu0 0.0
  %2036 = vmatprep.subr.mxu0 0.0
  %2037 = vmatpush1.msra.mxu0 0.0
  %2038 = vmatprep.subr.mxu0 0.0
  %2039 = vmatpush1.msra.mxu0 0.0
  %2040 = vmatprep.subr.mxu0 0.0
  %2041 = vmatpush1.msra.mxu0 %v2001
  %2042 = vmatprep.subr.mxu0 0.0
  %2043 = vmatpush1.msra.mxu0 %v2000
  %2044 = vmatprep.subr.mxu0 0.0
  %2045 = vmatpush1.msra.mxu0 %v1999
  %2046 = vmatprep.subr.mxu0 0.0
  %2047 = vmatpush1.msra.mxu0 %v1998
  %2048 = vmatprep.subr.mxu0 0.0
  %2049 = vmatpush2.msra.mxu0 0.0
  %2050 = vmatprep.subr.mxu0 0.0
  %2051 = vmatpush2.msra.mxu0 0.0
  %2052 = vmatprep.subr.mxu0 0.0
  %2053 = vmatpush2.msra.mxu0 0.0
  %2054 = vmatprep.subr.mxu0 0.0
  %2055 = vmatpush2.msra.mxu0 0.0
  %2056 = vmatprep.subr.mxu0 0.0
  %2057 = vmatpush2.msra.mxu0 0.0
  %2058 = vmatprep.subr.mxu0 0.0
  %2059 = vmatpush2.msra.mxu0 0.0
  %2060 = vmatprep.subr.mxu0 0.0
  %2061 = vmatpush2.msra.mxu0 0.0
  %2062 = vmatprep.subr.mxu0 0.0
  %2063 = vmatpush2.msra.mxu0 0.0
  %2064 = vmatprep.subr.mxu0 0.0
  %2065 = vmatpush2.msra.mxu0 0.0
  %2066 = vmatprep.subr.mxu0 0.0
  %2067 = vmatpush2.msra.mxu0 0.0
  %2068 = vmatprep.subr.mxu0 0.0
  %2069 = vmatpush2.msra.mxu0 0.0
  %2070 = vmatprep.subr.mxu0 0.0
  %2071 = vmatpush2.msra.mxu0 0.0
  %2072 = vmatprep.subr.mxu0 0.0
  %2073 = vmatpush2.msra.mxu0 0.0
  %2074 = vmatprep.subr.mxu0 0.0
  %2075 = vmatpush2.msra.mxu0 0.0
  %2076 = vmatprep.subr.mxu0 0.0
  %2077 = vmatpush2.msra.mxu0 0.0
  %2078 = vmatprep.subr.mxu0 0.0
  %2079 = vmatpush2.msra.mxu0 0.0
  %2080 = vmatprep.mubr.f32.mxu0 0.0
  %2081 = vmatmul.mubr.f32.gmra.mxu0 %v2011
  %v2082 = vpop.f32.mrf.mxu0
  %v2083 = vadd.f32 %v2008, %v2082
  %v2084 = vpop.f32.mrf.mxu0
  %2085 = vmatprep.mubr.f32.mxu0 0.0
  %2086 = vmatmul.mubr.f32.gmra.mxu0 %v2014
  %v2087 = vpop.f32.mrf.mxu0
  %v2088 = vadd.f32 %v2008, %v2087
  %v2089 = vpop.f32.mrf.mxu0
  %2090 = vdwg.mxu0
  %2091 = vst [vmem:[#allocation2] sm:$0xff] %v2083
  %2092 = vst [vmem:[#allocation2 + $0x8] sm:$0xff] %v2088
  %v2093 = vld [vmem:[%s1] sm:$0x1]
  %v2094 = vld [vmem:[#allocation2] sm:$0xff]
  %2096 = vrot.lane.b32.xlu0 %v2094, 96
  %v2097 = vpop.permute.xlu0 %2096
  %v2098 = vsel %vm214, %v2094, 0
  %v2100 = vsel %vm214, %v2097, 0
  %2102 = vmatprep.subr.mxu0 0.0
  %2103 = vmatpush1.xpose.msra.mxu0 0.0
  %2104 = vmatprep.subr.mxu0 0.0
  %2105 = vmatpush1.xpose.msra.mxu0 0.0
  %2106 = vmatprep.subr.mxu0 0.0
  %2107 = vmatpush1.xpose.msra.mxu0 0.0
  %2108 = vmatprep.subr.mxu0 0.0
  %2109 = vmatpush1.xpose.msra.mxu0 0.0
  %2110 = vmatprep.subr.mxu0 0.0
  %2111 = vmatpush1.xpose.msra.mxu0 0.0
  %2112 = vmatprep.subr.mxu0 0.0
  %2113 = vmatpush1.xpose.msra.mxu0 0.0
  %2114 = vmatprep.subr.mxu0 0.0
  %2115 = vmatpush1.xpose.msra.mxu0 0.0
  %2116 = vmatprep.subr.mxu0 0.0
  %2117 = vmatpush1.xpose.msra.mxu0 0.0
  %2118 = vmatprep.subr.mxu0 0.0
  %2119 = vmatpush1.xpose.msra.mxu0 0.0
  %2120 = vmatprep.subr.mxu0 0.0
  %2121 = vmatpush1.xpose.msra.mxu0 0.0
  %2122 = vmatprep.subr.mxu0 0.0
  %2123 = vmatpush1.xpose.msra.mxu0 0.0
  %2124 = vmatprep.subr.mxu0 0.0
  %2125 = vmatpush1.xpose.msra.mxu0 0.0
  %2126 = vmatprep.subr.mxu0 0.0
  %2127 = vmatpush1.xpose.msra.mxu0 0.0
  %2128 = vmatprep.subr.mxu0 0.0
  %2129 = vmatpush1.xpose.msra.mxu0 0.0
  %2130 = vmatprep.subr.mxu0 0.0
  %2131 = vmatpush1.xpose.msra.mxu0 0.0
  %2132 = vmatprep.subr.mxu0 0.0
  %2133 = vmatpush1.xpose.msra.mxu0 %v2100
  %2134 = vmatprep.subr.mxu0 0.0
  %2135 = vmatpush2.xpose.msra.mxu0 0.0
  %2136 = vmatprep.subr.mxu0 0.0
  %2137 = vmatpush2.xpose.msra.mxu0 0.0
  %2138 = vmatprep.subr.mxu0 0.0
  %2139 = vmatpush2.xpose.msra.mxu0 0.0
  %2140 = vmatprep.subr.mxu0 0.0
  %2141 = vmatpush2.xpose.msra.mxu0 0.0
  %2142 = vmatprep.subr.mxu0 0.0
  %2143 = vmatpush2.xpose.msra.mxu0 0.0
  %2144 = vmatprep.subr.mxu0 0.0
  %2145 = vmatpush2.xpose.msra.mxu0 0.0
  %2146 = vmatprep.subr.mxu0 0.0
  %2147 = vmatpush2.xpose.msra.mxu0 0.0
  %2148 = vmatprep.subr.mxu0 0.0
  %2149 = vmatpush2.xpose.msra.mxu0 0.0
  %2150 = vmatprep.subr.mxu0 0.0
  %2151 = vmatpush2.xpose.msra.mxu0 0.0
  %2152 = vmatprep.subr.mxu0 0.0
  %2153 = vmatpush2.xpose.msra.mxu0 0.0
  %2154 = vmatprep.subr.mxu0 0.0
  %2155 = vmatpush2.xpose.msra.mxu0 0.0
  %2156 = vmatprep.subr.mxu0 0.0
  %2157 = vmatpush2.xpose.msra.mxu0 0.0
  %2158 = vmatprep.subr.mxu0 0.0
  %2159 = vmatpush2.xpose.msra.mxu0 0.0
  %2160 = vmatprep.subr.mxu0 0.0
  %2161 = vmatpush2.xpose.msra.mxu0 0.0
  %2162 = vmatprep.subr.mxu0 0.0
  %2163 = vmatpush2.xpose.msra.mxu0 0.0
  %2164 = vmatprep.subr.mxu0 0.0
  %2165 = vmatpush2.xpose.msra.mxu0 0.0
  %2166 = vmatprep.mubr.f32.mxu0 0.0
  %2167 = vmatmul.mubr.f32.gmra.mxu0 %v2098
  %v2168 = vpop.f32.mrf.mxu0
  %v2169 = vadd.f32 0.0, %v2168
  %v2170 = vpop.f32.mrf.mxu0
  %2171 = vdwg.mxu0
  %v2172 = vmul.f32 %v2169, 0.35355338
  %v2173 = vlaneseq
  %v2174 = vshrl.u32 %v2173, 7
  %v2175 = vsub.s32 0, %v2174
  %v2176 = vrot.slane %v2093, %v2175
  %v2177 = vadd.f32 %v2172, %v2176
  %v2178 = vsel %vm214, %v2177, -inf
  %2179 = vmax.xlane.f32.xlu0 %v2178
  %v2180 = vpop.xlane.xlu0 %2179
  %v2181 = vsub.f32 %v2177, %v2180
  %v2182 = vmul.f32 %v2181, 1.442695
  %v2183 = vpow.pop %v2182
  %v2184 = vsel %vm214, %v2183, 0.0
  %2185 = vadd.xlane.f32.xlu0 %v2184
  %v2186 = vpop.xlane.xlu0 %2185
  %v2187 = vrcp.pop %v2186
  %v2188 = vmul.f32 %v2183, %v2187
  %2189 = vrot.lane.b32.xlu0 %v2094, 64
  %v2190 = vpop.permute.xlu0 %2189
  %v2193 = vsel %vm214, %v2188, 0
  %2195 = vmatprep.subr.mxu0 0.0
  %2196 = vmatpush1.msra.mxu0 0.0
  %2197 = vmatprep.subr.mxu0 0.0
  %2198 = vmatpush1.msra.mxu0 0.0
  %2199 = vmatprep.subr.mxu0 0.0
  %2200 = vmatpush1.msra.mxu0 0.0
  %2201 = vmatprep.subr.mxu0 0.0
  %2202 = vmatpush1.msra.mxu0 0.0
  %2203 = vmatprep.subr.mxu0 0.0
  %2204 = vmatpush1.msra.mxu0 0.0
  %2205 = vmatprep.subr.mxu0 0.0
  %2206 = vmatpush1.msra.mxu0 0.0
  %2207 = vmatprep.subr.mxu0 0.0
  %2208 = vmatpush1.msra.mxu0 0.0
  %2209 = vmatprep.subr.mxu0 0.0
  %2210 = vmatpush1.msra.mxu0 0.0
  %2211 = vmatprep.subr.mxu0 0.0
  %2212 = vmatpush1.msra.mxu0 0.0
  %2213 = vmatprep.subr.mxu0 0.0
  %2214 = vmatpush1.msra.mxu0 0.0
  %2215 = vmatprep.subr.mxu0 0.0
  %2216 = vmatpush1.msra.mxu0 0.0
  %2217 = vmatprep.subr.mxu0 0.0
  %2218 = vmatpush1.msra.mxu0 0.0
  %2219 = vmatprep.subr.mxu0 0.0
  %2220 = vmatpush1.msra.mxu0 0.0
  %2221 = vmatprep.subr.mxu0 0.0
  %2222 = vmatpush1.msra.mxu0 0.0
  %2223 = vmatprep.subr.mxu0 0.0
  %2224 = vmatpush1.msra.mxu0 0.0
  %2225 = vmatprep.subr.mxu0 0.0
  %2226 = vmatpush1.msra.mxu0 %v2190
  %2227 = vmatprep.subr.mxu0 0.0
  %2228 = vmatpush2.msra.mxu0 0.0
  %2229 = vmatprep.subr.mxu0 0.0
  %2230 = vmatpush2.msra.mxu0 0.0
  %2231 = vmatprep.subr.mxu0 0.0
  %2232 = vmatpush2.msra.mxu0 0.0
  %2233 = vmatprep.subr.mxu0 0.0
  %2234 = vmatpush2.msra.mxu0 0.0
  %2235 = vmatprep.subr.mxu0 0.0
  %2236 = vmatpush2.msra.mxu0 0.0
  %2237 = vmatprep.subr.mxu0 0.0
  %2238 = vmatpush2.msra.mxu0 0.0
  %2239 = vmatprep.subr.mxu0 0.0
  %2240 = vmatpush2.msra.mxu0 0.0
  %2241 = vmatprep.subr.mxu0 0.0
  %2242 = vmatpush2.msra.mxu0 0.0
  %2243 = vmatprep.subr.mxu0 0.0
  %2244 = vmatpush2.msra.mxu0 0.0
  %2245 = vmatprep.subr.mxu0 0.0
  %2246 = vmatpush2.msra.mxu0 0.0
  %2247 = vmatprep.subr.mxu0 0.0
  %2248 = vmatpush2.msra.mxu0 0.0
  %2249 = vmatprep.subr.mxu0 0.0
  %2250 = vmatpush2.msra.mxu0 0.0
  %2251 = vmatprep.subr.mxu0 0.0
  %2252 = vmatpush2.msra.mxu0 0.0
  %2253 = vmatprep.subr.mxu0 0.0
  %2254 = vmatpush2.msra.mxu0 0.0
  %2255 = vmatprep.subr.mxu0 0.0
  %2256 = vmatpush2.msra.mxu0 0.0
  %2257 = vmatprep.subr.mxu0 0.0
  %2258 = vmatpush2.msra.mxu0 0.0
  %2259 = vmatprep.mubr.f32.mxu0 0.0
  %2260 = vmatmul.mubr.f32.gmra.mxu0 %v2193
  %v2261 = vpop.f32.mrf.mxu0
  %v2262 = vadd.f32 0.0, %v2261
  %v2263 = vpop.f32.mrf.mxu0
  %2264 = vdwg.mxu0
  %2265 = vst.msk [vmem:[#allocation3] sm:$0xff] %vm214, %v2262
  %v2266 = vld [vmem:[#allocation2] sm:$0xff]
  %2268 = vrot.lane.b32.xlu0 %v2266, 120
  %v2269 = vpop.permute.xlu0 %2268
  %2270 = vrot.lane.b32.xlu0 %v2266, 88
  %v2271 = vpop.permute.xlu0 %2270
  %v2272 = vsel %vm214, %v2269, 0
  %v2274 = vsel %vm214, %v2271, 0
  %2276 = vmatprep.subr.mxu0 0.0
  %2277 = vmatpush1.xpose.msra.mxu0 0.0
  %2278 = vmatprep.subr.mxu0 0.0
  %2279 = vmatpush1.xpose.msra.mxu0 0.0
  %2280 = vmatprep.subr.mxu0 0.0
  %2281 = vmatpush1.xpose.msra.mxu0 0.0
  %2282 = vmatprep.subr.mxu0 0.0
  %2283 = vmatpush1.xpose.msra.mxu0 0.0
  %2284 = vmatprep.subr.mxu0 0.0
  %2285 = vmatpush1.xpose.msra.mxu0 0.0
  %2286 = vmatprep.subr.mxu0 0.0
  %2287 = vmatpush1.xpose.msra.mxu0 0.0
  %2288 = vmatprep.subr.mxu0 0.0
  %2289 = vmatpush1.xpose.msra.mxu0 0.0
  %2290 = vmatprep.subr.mxu0 0.0
  %2291 = vmatpush1.xpose.msra.mxu0 0.0
  %2292 = vmatprep.subr.mxu0 0.0
  %2293 = vmatpush1.xpose.msra.mxu0 0.0
  %2294 = vmatprep.subr.mxu0 0.0
  %2295 = vmatpush1.xpose.msra.mxu0 0.0
  %2296 = vmatprep.subr.mxu0 0.0
  %2297 = vmatpush1.xpose.msra.mxu0 0.0
  %2298 = vmatprep.subr.mxu0 0.0
  %2299 = vmatpush1.xpose.msra.mxu0 0.0
  %2300 = vmatprep.subr.mxu0 0.0
  %2301 = vmatpush1.xpose.msra.mxu0 0.0
  %2302 = vmatprep.subr.mxu0 0.0
  %2303 = vmatpush1.xpose.msra.mxu0 0.0
  %2304 = vmatprep.subr.mxu0 0.0
  %2305 = vmatpush1.xpose.msra.mxu0 0.0
  %2306 = vmatprep.subr.mxu0 0.0
  %2307 = vmatpush1.xpose.msra.mxu0 %v2274
  %2308 = vmatprep.subr.mxu0 0.0
  %2309 = vmatpush2.xpose.msra.mxu0 0.0
  %2310 = vmatprep.subr.mxu0 0.0
  %2311 = vmatpush2.xpose.msra.mxu0 0.0
  %2312 = vmatprep.subr.mxu0 0.0
  %2313 = vmatpush2.xpose.msra.mxu0 0.0
  %2314 = vmatprep.subr.mxu0 0.0
  %2315 = vmatpush2.xpose.msra.mxu0 0.0
  %2316 = vmatprep.subr.mxu0 0.0
  %2317 = vmatpush2.xpose.msra.mxu0 0.0
  %2318 = vmatprep.subr.mxu0 0.0
  %2319 = vmatpush2.xpose.msra.mxu0 0.0
  %2320 = vmatprep.subr.mxu0 0.0
  %2321 = vmatpush2.xpose.msra.mxu0 0.0
  %2322 = vmatprep.subr.mxu0 0.0
  %2323 = vmatpush2.xpose.msra.mxu0 0.0
  %2324 = vmatprep.subr.mxu0 0.0
  %2325 = vmatpush2.xpose.msra.mxu0 0.0
  %2326 = vmatprep.subr.mxu0 0.0
  %2327 = vmatpush2.xpose.msra.mxu0 0.0
  %2328 = vmatprep.subr.mxu0 0.0
  %2329 = vmatpush2.xpose.msra.mxu0 0.0
  %2330 = vmatprep.subr.mxu0 0.0
  %2331 = vmatpush2.xpose.msra.mxu0 0.0
  %2332 = vmatprep.subr.mxu0 0.0
  %2333 = vmatpush2.xpose.msra.mxu0 0.0
  %2334 = vmatprep.subr.mxu0 0.0
  %2335 = vmatpush2.xpose.msra.mxu0 0.0
  %2336 = vmatprep.subr.mxu0 0.0
  %2337 = vmatpush2.xpose.msra.mxu0 0.0
  %2338 = vmatprep.subr.mxu0 0.0
  %2339 = vmatpush2.xpose.msra.mxu0 0.0
  %2340 = vmatprep.mubr.f32.mxu0 0.0
  %2341 = vmatmul.mubr.f32.gmra.mxu0 %v2272
  %v2342 = vpop.f32.mrf.mxu0
  %v2343 = vadd.f32 0.0, %v2342
  %v2344 = vpop.f32.mrf.mxu0
  %2345 = vdwg.mxu0
  %v2346 = vmul.f32 %v2343, 0.35355338
  %v2347 = vadd.f32 %v2346, %v2176
  %v2348 = vsel %vm214, %v2347, -inf
  %2349 = vmax.xlane.f32.xlu0 %v2348
  %v2350 = vpop.xlane.xlu0 %2349
  %v2351 = vsub.f32 %v2347, %v2350
  %v2352 = vmul.f32 %v2351, 1.442695
  %v2353 = vpow.pop %v2352
  %v2354 = vsel %vm214, %v2353, 0.0
  %2355 = vadd.xlane.f32.xlu0 %v2354
  %v2356 = vpop.xlane.xlu0 %2355
  %v2357 = vrcp.pop %v2356
  %v2358 = vmul.f32 %v2353, %v2357
  %2359 = vrot.lane.b32.xlu0 %v2266, 56
  %v2360 = vpop.permute.xlu0 %2359
  %v2363 = vsel %vm214, %v2358, 0
  %2365 = vmatprep.subr.mxu0 0.0
  %2366 = vmatpush1.msra.mxu0 0.0
  %2367 = vmatprep.subr.mxu0 0.0
  %2368 = vmatpush1.msra.mxu0 0.0
  %2369 = vmatprep.subr.mxu0 0.0
  %2370 = vmatpush1.msra.mxu0 0.0
  %2371 = vmatprep.subr.mxu0 0.0
  %2372 = vmatpush1.msra.mxu0 0.0
  %2373 = vmatprep.subr.mxu0 0.0
  %2374 = vmatpush1.msra.mxu0 0.0
  %2375 = vmatprep.subr.mxu0 0.0
  %2376 = vmatpush1.msra.mxu0 0.0
  %2377 = vmatprep.subr.mxu0 0.0
  %2378 = vmatpush1.msra.mxu0 0.0
  %2379 = vmatprep.subr.mxu0 0.0
  %2380 = vmatpush1.msra.mxu0 0.0
  %2381 = vmatprep.subr.mxu0 0.0
  %2382 = vmatpush1.msra.mxu0 0.0
  %2383 = vmatprep.subr.mxu0 0.0
  %2384 = vmatpush1.msra.mxu0 0.0
  %2385 = vmatprep.subr.mxu0 0.0
  %2386 = vmatpush1.msra.mxu0 0.0
  %2387 = vmatprep.subr.mxu0 0.0
  %2388 = vmatpush1.msra.mxu0 0.0
  %2389 = vmatprep.subr.mxu0 0.0
  %2390 = vmatpush1.msra.mxu0 0.0
  %2391 = vmatprep.subr.mxu0 0.0
  %2392 = vmatpush1.msra.mxu0 0.0
  %2393 = vmatprep.subr.mxu0 0.0
  %2394 = vmatpush1.msra.mxu0 0.0
  %2395 = vmatprep.subr.mxu0 0.0
  %2396 = vmatpush1.msra.mxu0 %v2360
  %2397 = vmatprep.subr.mxu0 0.0
  %2398 = vmatpush2.msra.mxu0 0.0
  %2399 = vmatprep.subr.mxu0 0.0
  %2400 = vmatpush2.msra.mxu0 0.0
  %2401 = vmatprep.subr.mxu0 0.0
  %2402 = vmatpush2.msra.mxu0 0.0
  %2403 = vmatprep.subr.mxu0 0.0
  %2404 = vmatpush2.msra.mxu0 0.0
  %2405 = vmatprep.subr.mxu0 0.0
  %2406 = vmatpush2.msra.mxu0 0.0
  %2407 = vmatprep.subr.mxu0 0.0
  %2408 = vmatpush2.msra.mxu0 0.0
  %2409 = vmatprep.subr.mxu0 0.0
  %2410 = vmatpush2.msra.mxu0 0.0
  %2411 = vmatprep.subr.mxu0 0.0
  %2412 = vmatpush2.msra.mxu0 0.0
  %2413 = vmatprep.subr.mxu0 0.0
  %2414 = vmatpush2.msra.mxu0 0.0
  %2415 = vmatprep.subr.mxu0 0.0
  %2416 = vmatpush2.msra.mxu0 0.0
  %2417 = vmatprep.subr.mxu0 0.0
  %2418 = vmatpush2.msra.mxu0 0.0
  %2419 = vmatprep.subr.mxu0 0.0
  %2420 = vmatpush2.msra.mxu0 0.0
  %2421 = vmatprep.subr.mxu0 0.0
  %2422 = vmatpush2.msra.mxu0 0.0
  %2423 = vmatprep.subr.mxu0 0.0
  %2424 = vmatpush2.msra.mxu0 0.0
  %2425 = vmatprep.subr.mxu0 0.0
  %2426 = vmatpush2.msra.mxu0 0.0
  %2427 = vmatprep.subr.mxu0 0.0
  %2428 = vmatpush2.msra.mxu0 0.0
  %2429 = vmatprep.mubr.f32.mxu0 0.0
  %2430 = vmatmul.mubr.f32.gmra.mxu0 %v2363
  %v2431 = vpop.f32.mrf.mxu0
  %v2432 = vadd.f32 0.0, %v2431
  %v2433 = vpop.f32.mrf.mxu0
  %2434 = vdwg.mxu0
  %2436 = vrot.lane.b32.xlu0 %v2432, 8
  %v2437 = vpop.permute.xlu0 %2436
  %2439 = vst.msk [vmem:[#allocation3] sm:$0xff] %vm556, %v2437
  %v2440 = vld [vmem:[#allocation2] sm:$0xff]
  %2442 = vrot.lane.b32.xlu0 %v2440, 112
  %v2443 = vpop.permute.xlu0 %2442
  %2444 = vrot.lane.b32.xlu0 %v2440, 80
  %v2445 = vpop.permute.xlu0 %2444
  %v2446 = vsel %vm214, %v2443, 0
  %v2448 = vsel %vm214, %v2445, 0
  %2450 = vmatprep.subr.mxu0 0.0
  %2451 = vmatpush1.xpose.msra.mxu0 0.0
  %2452 = vmatprep.subr.mxu0 0.0
  %2453 = vmatpush1.xpose.msra.mxu0 0.0
  %2454 = vmatprep.subr.mxu0 0.0
  %2455 = vmatpush1.xpose.msra.mxu0 0.0
  %2456 = vmatprep.subr.mxu0 0.0
  %2457 = vmatpush1.xpose.msra.mxu0 0.0
  %2458 = vmatprep.subr.mxu0 0.0
  %2459 = vmatpush1.xpose.msra.mxu0 0.0
  %2460 = vmatprep.subr.mxu0 0.0
  %2461 = vmatpush1.xpose.msra.mxu0 0.0
  %2462 = vmatprep.subr.mxu0 0.0
  %2463 = vmatpush1.xpose.msra.mxu0 0.0
  %2464 = vmatprep.subr.mxu0 0.0
  %2465 = vmatpush1.xpose.msra.mxu0 0.0
  %2466 = vmatprep.subr.mxu0 0.0
  %2467 = vmatpush1.xpose.msra.mxu0 0.0
  %2468 = vmatprep.subr.mxu0 0.0
  %2469 = vmatpush1.xpose.msra.mxu0 0.0
  %2470 = vmatprep.subr.mxu0 0.0
  %2471 = vmatpush1.xpose.msra.mxu0 0.0
  %2472 = vmatprep.subr.mxu0 0.0
  %2473 = vmatpush1.xpose.msra.mxu0 0.0
  %2474 = vmatprep.subr.mxu0 0.0
  %2475 = vmatpush1.xpose.msra.mxu0 0.0
  %2476 = vmatprep.subr.mxu0 0.0
  %2477 = vmatpush1.xpose.msra.mxu0 0.0
  %2478 = vmatprep.subr.mxu0 0.0
  %2479 = vmatpush1.xpose.msra.mxu0 0.0
  %2480 = vmatprep.subr.mxu0 0.0
  %2481 = vmatpush1.xpose.msra.mxu0 %v2448
  %2482 = vmatprep.subr.mxu0 0.0
  %2483 = vmatpush2.xpose.msra.mxu0 0.0
  %2484 = vmatprep.subr.mxu0 0.0
  %2485 = vmatpush2.xpose.msra.mxu0 0.0
  %2486 = vmatprep.subr.mxu0 0.0
  %2487 = vmatpush2.xpose.msra.mxu0 0.0
  %2488 = vmatprep.subr.mxu0 0.0
  %2489 = vmatpush2.xpose.msra.mxu0 0.0
  %2490 = vmatprep.subr.mxu0 0.0
  %2491 = vmatpush2.xpose.msra.mxu0 0.0
  %2492 = vmatprep.subr.mxu0 0.0
  %2493 = vmatpush2.xpose.msra.mxu0 0.0
  %2494 = vmatprep.subr.mxu0 0.0
  %2495 = vmatpush2.xpose.msra.mxu0 0.0
  %2496 = vmatprep.subr.mxu0 0.0
  %2497 = vmatpush2.xpose.msra.mxu0 0.0
  %2498 = vmatprep.subr.mxu0 0.0
  %2499 = vmatpush2.xpose.msra.mxu0 0.0
  %2500 = vmatprep.subr.mxu0 0.0
  %2501 = vmatpush2.xpose.msra.mxu0 0.0
  %2502 = vmatprep.subr.mxu0 0.0
  %2503 = vmatpush2.xpose.msra.mxu0 0.0
  %2504 = vmatprep.subr.mxu0 0.0
  %2505 = vmatpush2.xpose.msra.mxu0 0.0
  %2506 = vmatprep.subr.mxu0 0.0
  %2507 = vmatpush2.xpose.msra.mxu0 0.0
  %2508 = vmatprep.subr.mxu0 0.0
  %2509 = vmatpush2.xpose.msra.mxu0 0.0
  %2510 = vmatprep.subr.mxu0 0.0
  %2511 = vmatpush2.xpose.msra.mxu0 0.0
  %2512 = vmatprep.subr.mxu0 0.0
  %2513 = vmatpush2.xpose.msra.mxu0 0.0
  %2514 = vmatprep.mubr.f32.mxu0 0.0
  %2515 = vmatmul.mubr.f32.gmra.mxu0 %v2446
  %v2516 = vpop.f32.mrf.mxu0
  %v2517 = vadd.f32 0.0, %v2516
  %v2518 = vpop.f32.mrf.mxu0
  %2519 = vdwg.mxu0
  %v2520 = vmul.f32 %v2517, 0.35355338
  %v2521 = vadd.f32 %v2520, %v2176
  %v2522 = vsel %vm214, %v2521, -inf
  %2523 = vmax.xlane.f32.xlu0 %v2522
  %v2524 = vpop.xlane.xlu0 %2523
  %v2525 = vsub.f32 %v2521, %v2524
  %v2526 = vmul.f32 %v2525, 1.442695
  %v2527 = vpow.pop %v2526
  %v2528 = vsel %vm214, %v2527, 0.0
  %2529 = vadd.xlane.f32.xlu0 %v2528
  %v2530 = vpop.xlane.xlu0 %2529
  %v2531 = vrcp.pop %v2530
  %v2532 = vmul.f32 %v2527, %v2531
  %2533 = vrot.lane.b32.xlu0 %v2440, 48
  %v2534 = vpop.permute.xlu0 %2533
  %v2537 = vsel %vm214, %v2532, 0
  %2539 = vmatprep.subr.mxu0 0.0
  %2540 = vmatpush1.msra.mxu0 0.0
  %2541 = vmatprep.subr.mxu0 0.0
  %2542 = vmatpush1.msra.mxu0 0.0
  %2543 = vmatprep.subr.mxu0 0.0
  %2544 = vmatpush1.msra.mxu0 0.0
  %2545 = vmatprep.subr.mxu0 0.0
  %2546 = vmatpush1.msra.mxu0 0.0
  %2547 = vmatprep.subr.mxu0 0.0
  %2548 = vmatpush1.msra.mxu0 0.0
  %2549 = vmatprep.subr.mxu0 0.0
  %2550 = vmatpush1.msra.mxu0 0.0
  %2551 = vmatprep.subr.mxu0 0.0
  %2552 = vmatpush1.msra.mxu0 0.0
  %2553 = vmatprep.subr.mxu0 0.0
  %2554 = vmatpush1.msra.mxu0 0.0
  %2555 = vmatprep.subr.mxu0 0.0
  %2556 = vmatpush1.msra.mxu0 0.0
  %2557 = vmatprep.subr.mxu0 0.0
  %2558 = vmatpush1.msra.mxu0 0.0
  %2559 = vmatprep.subr.mxu0 0.0
  %2560 = vmatpush1.msra.mxu0 0.0
  %2561 = vmatprep.subr.mxu0 0.0
  %2562 = vmatpush1.msra.mxu0 0.0
  %2563 = vmatprep.subr.mxu0 0.0
  %2564 = vmatpush1.msra.mxu0 0.0
  %2565 = vmatprep.subr.mxu0 0.0
  %2566 = vmatpush1.msra.mxu0 0.0
  %2567 = vmatprep.subr.mxu0 0.0
  %2568 = vmatpush1.msra.mxu0 0.0
  %2569 = vmatprep.subr.mxu0 0.0
  %2570 = vmatpush1.msra.mxu0 %v2534
  %2571 = vmatprep.subr.mxu0 0.0
  %2572 = vmatpush2.msra.mxu0 0.0
  %2573 = vmatprep.subr.mxu0 0.0
  %2574 = vmatpush2.msra.mxu0 0.0
  %2575 = vmatprep.subr.mxu0 0.0
  %2576 = vmatpush2.msra.mxu0 0.0
  %2577 = vmatprep.subr.mxu0 0.0
  %2578 = vmatpush2.msra.mxu0 0.0
  %2579 = vmatprep.subr.mxu0 0.0
  %2580 = vmatpush2.msra.mxu0 0.0
  %2581 = vmatprep.subr.mxu0 0.0
  %2582 = vmatpush2.msra.mxu0 0.0
  %2583 = vmatprep.subr.mxu0 0.0
  %2584 = vmatpush2.msra.mxu0 0.0
  %2585 = vmatprep.subr.mxu0 0.0
  %2586 = vmatpush2.msra.mxu0 0.0
  %2587 = vmatprep.subr.mxu0 0.0
  %2588 = vmatpush2.msra.mxu0 0.0
  %2589 = vmatprep.subr.mxu0 0.0
  %2590 = vmatpush2.msra.mxu0 0.0
  %2591 = vmatprep.subr.mxu0 0.0
  %2592 = vmatpush2.msra.mxu0 0.0
  %2593 = vmatprep.subr.mxu0 0.0
  %2594 = vmatpush2.msra.mxu0 0.0
  %2595 = vmatprep.subr.mxu0 0.0
  %2596 = vmatpush2.msra.mxu0 0.0
  %2597 = vmatprep.subr.mxu0 0.0
  %2598 = vmatpush2.msra.mxu0 0.0
  %2599 = vmatprep.subr.mxu0 0.0
  %2600 = vmatpush2.msra.mxu0 0.0
  %2601 = vmatprep.subr.mxu0 0.0
  %2602 = vmatpush2.msra.mxu0 0.0
  %2603 = vmatprep.mubr.f32.mxu0 0.0
  %2604 = vmatmul.mubr.f32.gmra.mxu0 %v2537
  %v2605 = vpop.f32.mrf.mxu0
  %v2606 = vadd.f32 0.0, %v2605
  %v2607 = vpop.f32.mrf.mxu0
  %2608 = vdwg.mxu0
  %2610 = vrot.lane.b32.xlu0 %v2606, 16
  %v2611 = vpop.permute.xlu0 %2610
  %2613 = vst.msk [vmem:[#allocation3] sm:$0xff] %vm731, %v2611
  %v2614 = vld [vmem:[#allocation2] sm:$0xff]
  %2616 = vrot.lane.b32.xlu0 %v2614, 104
  %v2617 = vpop.permute.xlu0 %2616
  %2618 = vrot.lane.b32.xlu0 %v2614, 72
  %v2619 = vpop.permute.xlu0 %2618
  %v2620 = vsel %vm214, %v2617, 0
  %v2622 = vsel %vm214, %v2619, 0
  %2624 = vmatprep.subr.mxu0 0.0
  %2625 = vmatpush1.xpose.msra.mxu0 0.0
  %2626 = vmatprep.subr.mxu0 0.0
  %2627 = vmatpush1.xpose.msra.mxu0 0.0
  %2628 = vmatprep.subr.mxu0 0.0
  %2629 = vmatpush1.xpose.msra.mxu0 0.0
  %2630 = vmatprep.subr.mxu0 0.0
  %2631 = vmatpush1.xpose.msra.mxu0 0.0
  %2632 = vmatprep.subr.mxu0 0.0
  %2633 = vmatpush1.xpose.msra.mxu0 0.0
  %2634 = vmatprep.subr.mxu0 0.0
  %2635 = vmatpush1.xpose.msra.mxu0 0.0
  %2636 = vmatprep.subr.mxu0 0.0
  %2637 = vmatpush1.xpose.msra.mxu0 0.0
  %2638 = vmatprep.subr.mxu0 0.0
  %2639 = vmatpush1.xpose.msra.mxu0 0.0
  %2640 = vmatprep.subr.mxu0 0.0
  %2641 = vmatpush1.xpose.msra.mxu0 0.0
  %2642 = vmatprep.subr.mxu0 0.0
  %2643 = vmatpush1.xpose.msra.mxu0 0.0
  %2644 = vmatprep.subr.mxu0 0.0
  %2645 = vmatpush1.xpose.msra.mxu0 0.0
  %2646 = vmatprep.subr.mxu0 0.0
  %2647 = vmatpush1.xpose.msra.mxu0 0.0
  %2648 = vmatprep.subr.mxu0 0.0
  %2649 = vmatpush1.xpose.msra.mxu0 0.0
  %2650 = vmatprep.subr.mxu0 0.0
  %2651 = vmatpush1.xpose.msra.mxu0 0.0
  %2652 = vmatprep.subr.mxu0 0.0
  %2653 = vmatpush1.xpose.msra.mxu0 0.0
  %2654 = vmatprep.subr.mxu0 0.0
  %2655 = vmatpush1.xpose.msra.mxu0 %v2622
  %2656 = vmatprep.subr.mxu0 0.0
  %2657 = vmatpush2.xpose.msra.mxu0 0.0
  %2658 = vmatprep.subr.mxu0 0.0
  %2659 = vmatpush2.xpose.msra.mxu0 0.0
  %2660 = vmatprep.subr.mxu0 0.0
  %2661 = vmatpush2.xpose.msra.mxu0 0.0
  %2662 = vmatprep.subr.mxu0 0.0
  %2663 = vmatpush2.xpose.msra.mxu0 0.0
  %2664 = vmatprep.subr.mxu0 0.0
  %2665 = vmatpush2.xpose.msra.mxu0 0.0
  %2666 = vmatprep.subr.mxu0 0.0
  %2667 = vmatpush2.xpose.msra.mxu0 0.0
  %2668 = vmatprep.subr.mxu0 0.0
  %2669 = vmatpush2.xpose.msra.mxu0 0.0
  %2670 = vmatprep.subr.mxu0 0.0
  %2671 = vmatpush2.xpose.msra.mxu0 0.0
  %2672 = vmatprep.subr.mxu0 0.0
  %2673 = vmatpush2.xpose.msra.mxu0 0.0
  %2674 = vmatprep.subr.mxu0 0.0
  %2675 = vmatpush2.xpose.msra.mxu0 0.0
  %2676 = vmatprep.subr.mxu0 0.0
  %2677 = vmatpush2.xpose.msra.mxu0 0.0
  %2678 = vmatprep.subr.mxu0 0.0
  %2679 = vmatpush2.xpose.msra.mxu0 0.0
  %2680 = vmatprep.subr.mxu0 0.0
  %2681 = vmatpush2.xpose.msra.mxu0 0.0
  %2682 = vmatprep.subr.mxu0 0.0
  %2683 = vmatpush2.xpose.msra.mxu0 0.0
  %2684 = vmatprep.subr.mxu0 0.0
  %2685 = vmatpush2.xpose.msra.mxu0 0.0
  %2686 = vmatprep.subr.mxu0 0.0
  %2687 = vmatpush2.xpose.msra.mxu0 0.0
  %2688 = vmatprep.mubr.f32.mxu0 0.0
  %2689 = vmatmul.mubr.f32.gmra.mxu0 %v2620
  %v2690 = vpop.f32.mrf.mxu0
  %v2691 = vadd.f32 0.0, %v2690
  %v2692 = vpop.f32.mrf.mxu0
  %2693 = vdwg.mxu0
  %v2694 = vmul.f32 %v2691, 0.35355338
  %v2695 = vadd.f32 %v2694, %v2176
  %v2696 = vsel %vm214, %v2695, -inf
  %2697 = vmax.xlane.f32.xlu0 %v2696
  %v2698 = vpop.xlane.xlu0 %2697
  %v2699 = vsub.f32 %v2695, %v2698
  %v2700 = vmul.f32 %v2699, 1.442695
  %v2701 = vpow.pop %v2700
  %v2702 = vsel %vm214, %v2701, 0.0
  %2703 = vadd.xlane.f32.xlu0 %v2702
  %v2704 = vpop.xlane.xlu0 %2703
  %v2705 = vrcp.pop %v2704
  %v2706 = vmul.f32 %v2701, %v2705
  %2707 = vrot.lane.b32.xlu0 %v2614, 40
  %v2708 = vpop.permute.xlu0 %2707
  %v2711 = vsel %vm214, %v2706, 0
  %2713 = vmatprep.subr.mxu0 0.0
  %2714 = vmatpush1.msra.mxu0 0.0
  %2715 = vmatprep.subr.mxu0 0.0
  %2716 = vmatpush1.msra.mxu0 0.0
  %2717 = vmatprep.subr.mxu0 0.0
  %2718 = vmatpush1.msra.mxu0 0.0
  %2719 = vmatprep.subr.mxu0 0.0
  %2720 = vmatpush1.msra.mxu0 0.0
  %2721 = vmatprep.subr.mxu0 0.0
  %2722 = vmatpush1.msra.mxu0 0.0
  %2723 = vmatprep.subr.mxu0 0.0
  %2724 = vmatpush1.msra.mxu0 0.0
  %2725 = vmatprep.subr.mxu0 0.0
  %2726 = vmatpush1.msra.mxu0 0.0
  %2727 = vmatprep.subr.mxu0 0.0
  %2728 = vmatpush1.msra.mxu0 0.0
  %2729 = vmatprep.subr.mxu0 0.0
  %2730 = vmatpush1.msra.mxu0 0.0
  %2731 = vmatprep.subr.mxu0 0.0
  %2732 = vmatpush1.msra.mxu0 0.0
  %2733 = vmatprep.subr.mxu0 0.0
  %2734 = vmatpush1.msra.mxu0 0.0
  %2735 = vmatprep.subr.mxu0 0.0
  %2736 = vmatpush1.msra.mxu0 0.0
  %2737 = vmatprep.subr.mxu0 0.0
  %2738 = vmatpush1.msra.mxu0 0.0
  %2739 = vmatprep.subr.mxu0 0.0
  %2740 = vmatpush1.msra.mxu0 0.0
  %2741 = vmatprep.subr.mxu0 0.0
  %2742 = vmatpush1.msra.mxu0 0.0
  %2743 = vmatprep.subr.mxu0 0.0
  %2744 = vmatpush1.msra.mxu0 %v2708
  %2745 = vmatprep.subr.mxu0 0.0
  %2746 = vmatpush2.msra.mxu0 0.0
  %2747 = vmatprep.subr.mxu0 0.0
  %2748 = vmatpush2.msra.mxu0 0.0
  %2749 = vmatprep.subr.mxu0 0.0
  %2750 = vmatpush2.msra.mxu0 0.0
  %2751 = vmatprep.subr.mxu0 0.0
  %2752 = vmatpush2.msra.mxu0 0.0
  %2753 = vmatprep.subr.mxu0 0.0
  %2754 = vmatpush2.msra.mxu0 0.0
  %2755 = vmatprep.subr.mxu0 0.0
  %2756 = vmatpush2.msra.mxu0 0.0
  %2757 = vmatprep.subr.mxu0 0.0
  %2758 = vmatpush2.msra.mxu0 0.0
  %2759 = vmatprep.subr.mxu0 0.0
  %2760 = vmatpush2.msra.mxu0 0.0
  %2761 = vmatprep.subr.mxu0 0.0
  %2762 = vmatpush2.msra.mxu0 0.0
  %2763 = vmatprep.subr.mxu0 0.0
  %2764 = vmatpush2.msra.mxu0 0.0
  %2765 = vmatprep.subr.mxu0 0.0
  %2766 = vmatpush2.msra.mxu0 0.0
  %2767 = vmatprep.subr.mxu0 0.0
  %2768 = vmatpush2.msra.mxu0 0.0
  %2769 = vmatprep.subr.mxu0 0.0
  %2770 = vmatpush2.msra.mxu0 0.0
  %2771 = vmatprep.subr.mxu0 0.0
  %2772 = vmatpush2.msra.mxu0 0.0
  %2773 = vmatprep.subr.mxu0 0.0
  %2774 = vmatpush2.msra.mxu0 0.0
  %2775 = vmatprep.subr.mxu0 0.0
  %2776 = vmatpush2.msra.mxu0 0.0
  %2777 = vmatprep.mubr.f32.mxu0 0.0
  %2778 = vmatmul.mubr.f32.gmra.mxu0 %v2711
  %v2779 = vpop.f32.mrf.mxu0
  %v2780 = vadd.f32 0.0, %v2779
  %v2781 = vpop.f32.mrf.mxu0
  %2782 = vdwg.mxu0
  %2784 = vrot.lane.b32.xlu0 %v2780, 24
  %v2785 = vpop.permute.xlu0 %2784
  %2787 = vst.msk [vmem:[#allocation3] sm:$0xff] %vm906, %v2785
  %v2788 = vld [vmem:[%s1 + $0x1] sm:$0x1]
  %v2789 = vld [vmem:[#allocation2 + $0x8] sm:$0xff]
  %2791 = vrot.lane.b32.xlu0 %v2789, 96
  %v2792 = vpop.permute.xlu0 %2791
  %v2793 = vsel %vm214, %v2789, 0
  %v2795 = vsel %vm214, %v2792, 0
  %2797 = vmatprep.subr.mxu0 0.0
  %2798 = vmatpush1.xpose.msra.mxu0 0.0
  %2799 = vmatprep.subr.mxu0 0.0
  %2800 = vmatpush1.xpose.msra.mxu0 0.0
  %2801 = vmatprep.subr.mxu0 0.0
  %2802 = vmatpush1.xpose.msra.mxu0 0.0
  %2803 = vmatprep.subr.mxu0 0.0
  %2804 = vmatpush1.xpose.msra.mxu0 0.0
  %2805 = vmatprep.subr.mxu0 0.0
  %2806 = vmatpush1.xpose.msra.mxu0 0.0
  %2807 = vmatprep.subr.mxu0 0.0
  %2808 = vmatpush1.xpose.msra.mxu0 0.0
  %2809 = vmatprep.subr.mxu0 0.0
  %2810 = vmatpush1.xpose.msra.mxu0 0.0
  %2811 = vmatprep.subr.mxu0 0.0
  %2812 = vmatpush1.xpose.msra.mxu0 0.0
  %2813 = vmatprep.subr.mxu0 0.0
  %2814 = vmatpush1.xpose.msra.mxu0 0.0
  %2815 = vmatprep.subr.mxu0 0.0
  %2816 = vmatpush1.xpose.msra.mxu0 0.0
  %2817 = vmatprep.subr.mxu0 0.0
  %2818 = vmatpush1.xpose.msra.mxu0 0.0
  %2819 = vmatprep.subr.mxu0 0.0
  %2820 = vmatpush1.xpose.msra.mxu0 0.0
  %2821 = vmatprep.subr.mxu0 0.0
  %2822 = vmatpush1.xpose.msra.mxu0 0.0
  %2823 = vmatprep.subr.mxu0 0.0
  %2824 = vmatpush1.xpose.msra.mxu0 0.0
  %2825 = vmatprep.subr.mxu0 0.0
  %2826 = vmatpush1.xpose.msra.mxu0 0.0
  %2827 = vmatprep.subr.mxu0 0.0
  %2828 = vmatpush1.xpose.msra.mxu0 %v2795
  %2829 = vmatprep.subr.mxu0 0.0
  %2830 = vmatpush2.xpose.msra.mxu0 0.0
  %2831 = vmatprep.subr.mxu0 0.0
  %2832 = vmatpush2.xpose.msra.mxu0 0.0
  %2833 = vmatprep.subr.mxu0 0.0
  %2834 = vmatpush2.xpose.msra.mxu0 0.0
  %2835 = vmatprep.subr.mxu0 0.0
  %2836 = vmatpush2.xpose.msra.mxu0 0.0
  %2837 = vmatprep.subr.mxu0 0.0
  %2838 = vmatpush2.xpose.msra.mxu0 0.0
  %2839 = vmatprep.subr.mxu0 0.0
  %2840 = vmatpush2.xpose.msra.mxu0 0.0
  %2841 = vmatprep.subr.mxu0 0.0
  %2842 = vmatpush2.xpose.msra.mxu0 0.0
  %2843 = vmatprep.subr.mxu0 0.0
  %2844 = vmatpush2.xpose.msra.mxu0 0.0
  %2845 = vmatprep.subr.mxu0 0.0
  %2846 = vmatpush2.xpose.msra.mxu0 0.0
  %2847 = vmatprep.subr.mxu0 0.0
  %2848 = vmatpush2.xpose.msra.mxu0 0.0
  %2849 = vmatprep.subr.mxu0 0.0
  %2850 = vmatpush2.xpose.msra.mxu0 0.0
  %2851 = vmatprep.subr.mxu0 0.0
  %2852 = vmatpush2.xpose.msra.mxu0 0.0
  %2853 = vmatprep.subr.mxu0 0.0
  %2854 = vmatpush2.xpose.msra.mxu0 0.0
  %2855 = vmatprep.subr.mxu0 0.0
  %2856 = vmatpush2.xpose.msra.mxu0 0.0
  %2857 = vmatprep.subr.mxu0 0.0
  %2858 = vmatpush2.xpose.msra.mxu0 0.0
  %2859 = vmatprep.subr.mxu0 0.0
  %2860 = vmatpush2.xpose.msra.mxu0 0.0
  %2861 = vmatprep.mubr.f32.mxu0 0.0
  %2862 = vmatmul.mubr.f32.gmra.mxu0 %v2793
  %v2863 = vpop.f32.mrf.mxu0
  %v2864 = vadd.f32 0.0, %v2863
  %v2865 = vpop.f32.mrf.mxu0
  %2866 = vdwg.mxu0
  %v2867 = vmul.f32 %v2864, 0.35355338
  %v2868 = vlaneseq
  %v2869 = vshrl.u32 %v2868, 7
  %v2870 = vsub.s32 0, %v2869
  %v2871 = vrot.slane %v2788, %v2870
  %v2872 = vadd.f32 %v2867, %v2871
  %v2873 = vsel %vm214, %v2872, -inf
  %2874 = vmax.xlane.f32.xlu0 %v2873
  %v2875 = vpop.xlane.xlu0 %2874
  %v2876 = vsub.f32 %v2872, %v2875
  %v2877 = vmul.f32 %v2876, 1.442695
  %v2878 = vpow.pop %v2877
  %v2879 = vsel %vm214, %v2878, 0.0
  %2880 = vadd.xlane.f32.xlu0 %v2879
  %v2881 = vpop.xlane.xlu0 %2880
  %v2882 = vrcp.pop %v2881
  %v2883 = vmul.f32 %v2878, %v2882
  %2884 = vrot.lane.b32.xlu0 %v2789, 64
  %v2885 = vpop.permute.xlu0 %2884
  %v2888 = vsel %vm214, %v2883, 0
  %2890 = vmatprep.subr.mxu0 0.0
  %2891 = vmatpush1.msra.mxu0 0.0
  %2892 = vmatprep.subr.mxu0 0.0
  %2893 = vmatpush1.msra.mxu0 0.0
  %2894 = vmatprep.subr.mxu0 0.0
  %2895 = vmatpush1.msra.mxu0 0.0
  %2896 = vmatprep.subr.mxu0 0.0
  %2897 = vmatpush1.msra.mxu0 0.0
  %2898 = vmatprep.subr.mxu0 0.0
  %2899 = vmatpush1.msra.mxu0 0.0
  %2900 = vmatprep.subr.mxu0 0.0
  %2901 = vmatpush1.msra.mxu0 0.0
  %2902 = vmatprep.subr.mxu0 0.0
  %2903 = vmatpush1.msra.mxu0 0.0
  %2904 = vmatprep.subr.mxu0 0.0
  %2905 = vmatpush1.msra.mxu0 0.0
  %2906 = vmatprep.subr.mxu0 0.0
  %2907 = vmatpush1.msra.mxu0 0.0
  %2908 = vmatprep.subr.mxu0 0.0
  %2909 = vmatpush1.msra.mxu0 0.0
  %2910 = vmatprep.subr.mxu0 0.0
  %2911 = vmatpush1.msra.mxu0 0.0
  %2912 = vmatprep.subr.mxu0 0.0
  %2913 = vmatpush1.msra.mxu0 0.0
  %2914 = vmatprep.subr.mxu0 0.0
  %2915 = vmatpush1.msra.mxu0 0.0
  %2916 = vmatprep.subr.mxu0 0.0
  %2917 = vmatpush1.msra.mxu0 0.0
  %2918 = vmatprep.subr.mxu0 0.0
  %2919 = vmatpush1.msra.mxu0 0.0
  %2920 = vmatprep.subr.mxu0 0.0
  %2921 = vmatpush1.msra.mxu0 %v2885
  %2922 = vmatprep.subr.mxu0 0.0
  %2923 = vmatpush2.msra.mxu0 0.0
  %2924 = vmatprep.subr.mxu0 0.0
  %2925 = vmatpush2.msra.mxu0 0.0
  %2926 = vmatprep.subr.mxu0 0.0
  %2927 = vmatpush2.msra.mxu0 0.0
  %2928 = vmatprep.subr.mxu0 0.0
  %2929 = vmatpush2.msra.mxu0 0.0
  %2930 = vmatprep.subr.mxu0 0.0
  %2931 = vmatpush2.msra.mxu0 0.0
  %2932 = vmatprep.subr.mxu0 0.0
  %2933 = vmatpush2.msra.mxu0 0.0
  %2934 = vmatprep.subr.mxu0 0.0
  %2935 = vmatpush2.msra.mxu0 0.0
  %2936 = vmatprep.subr.mxu0 0.0
  %2937 = vmatpush2.msra.mxu0 0.0
  %2938 = vmatprep.subr.mxu0 0.0
  %2939 = vmatpush2.msra.mxu0 0.0
  %2940 = vmatprep.subr.mxu0 0.0
  %2941 = vmatpush2.msra.mxu0 0.0
  %2942 = vmatprep.subr.mxu0 0.0
  %2943 = vmatpush2.msra.mxu0 0.0
  %2944 = vmatprep.subr.mxu0 0.0
  %2945 = vmatpush2.msra.mxu0 0.0
  %2946 = vmatprep.subr.mxu0 0.0
  %2947 = vmatpush2.msra.mxu0 0.0
  %2948 = vmatprep.subr.mxu0 0.0
  %2949 = vmatpush2.msra.mxu0 0.0
  %2950 = vmatprep.subr.mxu0 0.0
  %2951 = vmatpush2.msra.mxu0 0.0
  %2952 = vmatprep.subr.mxu0 0.0
  %2953 = vmatpush2.msra.mxu0 0.0
  %2954 = vmatprep.mubr.f32.mxu0 0.0
  %2955 = vmatmul.mubr.f32.gmra.mxu0 %v2888
  %v2956 = vpop.f32.mrf.mxu0
  %v2957 = vadd.f32 0.0, %v2956
  %v2958 = vpop.f32.mrf.mxu0
  %2959 = vdwg.mxu0
  %2960 = vst.msk [vmem:[#allocation3 + $0x8] sm:$0xff] %vm214, %v2957
  %v2961 = vld [vmem:[#allocation2 + $0x8] sm:$0xff]
  %2963 = vrot.lane.b32.xlu0 %v2961, 120
  %v2964 = vpop.permute.xlu0 %2963
  %2965 = vrot.lane.b32.xlu0 %v2961, 88
  %v2966 = vpop.permute.xlu0 %2965
  %v2967 = vsel %vm214, %v2964, 0
  %v2969 = vsel %vm214, %v2966, 0
  %2971 = vmatprep.subr.mxu0 0.0
  %2972 = vmatpush1.xpose.msra.mxu0 0.0
  %2973 = vmatprep.subr.mxu0 0.0
  %2974 = vmatpush1.xpose.msra.mxu0 0.0
  %2975 = vmatprep.subr.mxu0 0.0
  %2976 = vmatpush1.xpose.msra.mxu0 0.0
  %2977 = vmatprep.subr.mxu0 0.0
  %2978 = vmatpush1.xpose.msra.mxu0 0.0
  %2979 = vmatprep.subr.mxu0 0.0
  %2980 = vmatpush1.xpose.msra.mxu0 0.0
  %2981 = vmatprep.subr.mxu0 0.0
  %2982 = vmatpush1.xpose.msra.mxu0 0.0
  %2983 = vmatprep.subr.mxu0 0.0
  %2984 = vmatpush1.xpose.msra.mxu0 0.0
  %2985 = vmatprep.subr.mxu0 0.0
  %2986 = vmatpush1.xpose.msra.mxu0 0.0
  %2987 = vmatprep.subr.mxu0 0.0
  %2988 = vmatpush1.xpose.msra.mxu0 0.0
  %2989 = vmatprep.subr.mxu0 0.0
  %2990 = vmatpush1.xpose.msra.mxu0 0.0
  %2991 = vmatprep.subr.mxu0 0.0
  %2992 = vmatpush1.xpose.msra.mxu0 0.0
  %2993 = vmatprep.subr.mxu0 0.0
  %2994 = vmatpush1.xpose.msra.mxu0 0.0
  %2995 = vmatprep.subr.mxu0 0.0
  %2996 = vmatpush1.xpose.msra.mxu0 0.0
  %2997 = vmatprep.subr.mxu0 0.0
  %2998 = vmatpush1.xpose.msra.mxu0 0.0
  %2999 = vmatprep.subr.mxu0 0.0
  %3000 = vmatpush1.xpose.msra.mxu0 0.0
  %3001 = vmatprep.subr.mxu0 0.0
  %3002 = vmatpush1.xpose.msra.mxu0 %v2969
  %3003 = vmatprep.subr.mxu0 0.0
  %3004 = vmatpush2.xpose.msra.mxu0 0.0
  %3005 = vmatprep.subr.mxu0 0.0
  %3006 = vmatpush2.xpose.msra.mxu0 0.0
  %3007 = vmatprep.subr.mxu0 0.0
  %3008 = vmatpush2.xpose.msra.mxu0 0.0
  %3009 = vmatprep.subr.mxu0 0.0
  %3010 = vmatpush2.xpose.msra.mxu0 0.0
  %3011 = vmatprep.subr.mxu0 0.0
  %3012 = vmatpush2.xpose.msra.mxu0 0.0
  %3013 = vmatprep.subr.mxu0 0.0
  %3014 = vmatpush2.xpose.msra.mxu0 0.0
  %3015 = vmatprep.subr.mxu0 0.0
  %3016 = vmatpush2.xpose.msra.mxu0 0.0
  %3017 = vmatprep.subr.mxu0 0.0
  %3018 = vmatpush2.xpose.msra.mxu0 0.0
  %3019 = vmatprep.subr.mxu0 0.0
  %3020 = vmatpush2.xpose.msra.mxu0 0.0
  %3021 = vmatprep.subr.mxu0 0.0
  %3022 = vmatpush2.xpose.msra.mxu0 0.0
  %3023 = vmatprep.subr.mxu0 0.0
  %3024 = vmatpush2.xpose.msra.mxu0 0.0
  %3025 = vmatprep.subr.mxu0 0.0
  %3026 = vmatpush2.xpose.msra.mxu0 0.0
  %3027 = vmatprep.subr.mxu0 0.0
  %3028 = vmatpush2.xpose.msra.mxu0 0.0
  %3029 = vmatprep.subr.mxu0 0.0
  %3030 = vmatpush2.xpose.msra.mxu0 0.0
  %3031 = vmatprep.subr.mxu0 0.0
  %3032 = vmatpush2.xpose.msra.mxu0 0.0
  %3033 = vmatprep.subr.mxu0 0.0
  %3034 = vmatpush2.xpose.msra.mxu0 0.0
  %3035 = vmatprep.mubr.f32.mxu0 0.0
  %3036 = vmatmul.mubr.f32.gmra.mxu0 %v2967
  %v3037 = vpop.f32.mrf.mxu0
  %v3038 = vadd.f32 0.0, %v3037
  %v3039 = vpop.f32.mrf.mxu0
  %3040 = vdwg.mxu0
  %v3041 = vmul.f32 %v3038, 0.35355338
  %v3042 = vadd.f32 %v3041, %v2871
  %v3043 = vsel %vm214, %v3042, -inf
  %3044 = vmax.xlane.f32.xlu0 %v3043
  %v3045 = vpop.xlane.xlu0 %3044
  %v3046 = vsub.f32 %v3042, %v3045
  %v3047 = vmul.f32 %v3046, 1.442695
  %v3048 = vpow.pop %v3047
  %v3049 = vsel %vm214, %v3048, 0.0
  %3050 = vadd.xlane.f32.xlu0 %v3049
  %v3051 = vpop.xlane.xlu0 %3050
  %v3052 = vrcp.pop %v3051
  %v3053 = vmul.f32 %v3048, %v3052
  %3054 = vrot.lane.b32.xlu0 %v2961, 56
  %v3055 = vpop.permute.xlu0 %3054
  %v3058 = vsel %vm214, %v3053, 0
  %3060 = vmatprep.subr.mxu0 0.0
  %3061 = vmatpush1.msra.mxu0 0.0
  %3062 = vmatprep.subr.mxu0 0.0
  %3063 = vmatpush1.msra.mxu0 0.0
  %3064 = vmatprep.subr.mxu0 0.0
  %3065 = vmatpush1.msra.mxu0 0.0
  %3066 = vmatprep.subr.mxu0 0.0
  %3067 = vmatpush1.msra.mxu0 0.0
  %3068 = vmatprep.subr.mxu0 0.0
  %3069 = vmatpush1.msra.mxu0 0.0
  %3070 = vmatprep.subr.mxu0 0.0
  %3071 = vmatpush1.msra.mxu0 0.0
  %3072 = vmatprep.subr.mxu0 0.0
  %3073 = vmatpush1.msra.mxu0 0.0
  %3074 = vmatprep.subr.mxu0 0.0
  %3075 = vmatpush1.msra.mxu0 0.0
  %3076 = vmatprep.subr.mxu0 0.0
  %3077 = vmatpush1.msra.mxu0 0.0
  %3078 = vmatprep.subr.mxu0 0.0
  %3079 = vmatpush1.msra.mxu0 0.0
  %3080 = vmatprep.subr.mxu0 0.0
  %3081 = vmatpush1.msra.mxu0 0.0
  %3082 = vmatprep.subr.mxu0 0.0
  %3083 = vmatpush1.msra.mxu0 0.0
  %3084 = vmatprep.subr.mxu0 0.0
  %3085 = vmatpush1.msra.mxu0 0.0
  %3086 = vmatprep.subr.mxu0 0.0
  %3087 = vmatpush1.msra.mxu0 0.0
  %3088 = vmatprep.subr.mxu0 0.0
  %3089 = vmatpush1.msra.mxu0 0.0
  %3090 = vmatprep.subr.mxu0 0.0
  %3091 = vmatpush1.msra.mxu0 %v3055
  %3092 = vmatprep.subr.mxu0 0.0
  %3093 = vmatpush2.msra.mxu0 0.0
  %3094 = vmatprep.subr.mxu0 0.0
  %3095 = vmatpush2.msra.mxu0 0.0
  %3096 = vmatprep.subr.mxu0 0.0
  %3097 = vmatpush2.msra.mxu0 0.0
  %3098 = vmatprep.subr.mxu0 0.0
  %3099 = vmatpush2.msra.mxu0 0.0
  %3100 = vmatprep.subr.mxu0 0.0
  %3101 = vmatpush2.msra.mxu0 0.0
  %3102 = vmatprep.subr.mxu0 0.0
  %3103 = vmatpush2.msra.mxu0 0.0
  %3104 = vmatprep.subr.mxu0 0.0
  %3105 = vmatpush2.msra.mxu0 0.0
  %3106 = vmatprep.subr.mxu0 0.0
  %3107 = vmatpush2.msra.mxu0 0.0
  %3108 = vmatprep.subr.mxu0 0.0
  %3109 = vmatpush2.msra.mxu0 0.0
  %3110 = vmatprep.subr.mxu0 0.0
  %3111 = vmatpush2.msra.mxu0 0.0
  %3112 = vmatprep.subr.mxu0 0.0
  %3113 = vmatpush2.msra.mxu0 0.0
  %3114 = vmatprep.subr.mxu0 0.0
  %3115 = vmatpush2.msra.mxu0 0.0
  %3116 = vmatprep.subr.mxu0 0.0
  %3117 = vmatpush2.msra.mxu0 0.0
  %3118 = vmatprep.subr.mxu0 0.0
  %3119 = vmatpush2.msra.mxu0 0.0
  %3120 = vmatprep.subr.mxu0 0.0
  %3121 = vmatpush2.msra.mxu0 0.0
  %3122 = vmatprep.subr.mxu0 0.0
  %3123 = vmatpush2.msra.mxu0 0.0
  %3124 = vmatprep.mubr.f32.mxu0 0.0
  %3125 = vmatmul.mubr.f32.gmra.mxu0 %v3058
  %v3126 = vpop.f32.mrf.mxu0
  %v3127 = vadd.f32 0.0, %v3126
  %v3128 = vpop.f32.mrf.mxu0
  %3129 = vdwg.mxu0
  %3131 = vrot.lane.b32.xlu0 %v3127, 8
  %v3132 = vpop.permute.xlu0 %3131
  %3134 = vst.msk [vmem:[#allocation3 + $0x8] sm:$0xff] %vm556, %v3132
  %v3135 = vld [vmem:[#allocation2 + $0x8] sm:$0xff]
  %3137 = vrot.lane.b32.xlu0 %v3135, 112
  %v3138 = vpop.permute.xlu0 %3137
  %3139 = vrot.lane.b32.xlu0 %v3135, 80
  %v3140 = vpop.permute.xlu0 %3139
  %v3141 = vsel %vm214, %v3138, 0
  %v3143 = vsel %vm214, %v3140, 0
  %3145 = vmatprep.subr.mxu0 0.0
  %3146 = vmatpush1.xpose.msra.mxu0 0.0
  %3147 = vmatprep.subr.mxu0 0.0
  %3148 = vmatpush1.xpose.msra.mxu0 0.0
  %3149 = vmatprep.subr.mxu0 0.0
  %3150 = vmatpush1.xpose.msra.mxu0 0.0
  %3151 = vmatprep.subr.mxu0 0.0
  %3152 = vmatpush1.xpose.msra.mxu0 0.0
  %3153 = vmatprep.subr.mxu0 0.0
  %3154 = vmatpush1.xpose.msra.mxu0 0.0
  %3155 = vmatprep.subr.mxu0 0.0
  %3156 = vmatpush1.xpose.msra.mxu0 0.0
  %3157 = vmatprep.subr.mxu0 0.0
  %3158 = vmatpush1.xpose.msra.mxu0 0.0
  %3159 = vmatprep.subr.mxu0 0.0
  %3160 = vmatpush1.xpose.msra.mxu0 0.0
  %3161 = vmatprep.subr.mxu0 0.0
  %3162 = vmatpush1.xpose.msra.mxu0 0.0
  %3163 = vmatprep.subr.mxu0 0.0
  %3164 = vmatpush1.xpose.msra.mxu0 0.0
  %3165 = vmatprep.subr.mxu0 0.0
  %3166 = vmatpush1.xpose.msra.mxu0 0.0
  %3167 = vmatprep.subr.mxu0 0.0
  %3168 = vmatpush1.xpose.msra.mxu0 0.0
  %3169 = vmatprep.subr.mxu0 0.0
  %3170 = vmatpush1.xpose.msra.mxu0 0.0
  %3171 = vmatprep.subr.mxu0 0.0
  %3172 = vmatpush1.xpose.msra.mxu0 0.0
  %3173 = vmatprep.subr.mxu0 0.0
  %3174 = vmatpush1.xpose.msra.mxu0 0.0
  %3175 = vmatprep.subr.mxu0 0.0
  %3176 = vmatpush1.xpose.msra.mxu0 %v3143
  %3177 = vmatprep.subr.mxu0 0.0
  %3178 = vmatpush2.xpose.msra.mxu0 0.0
  %3179 = vmatprep.subr.mxu0 0.0
  %3180 = vmatpush2.xpose.msra.mxu0 0.0
  %3181 = vmatprep.subr.mxu0 0.0
  %3182 = vmatpush2.xpose.msra.mxu0 0.0
  %3183 = vmatprep.subr.mxu0 0.0
  %3184 = vmatpush2.xpose.msra.mxu0 0.0
  %3185 = vmatprep.subr.mxu0 0.0
  %3186 = vmatpush2.xpose.msra.mxu0 0.0
  %3187 = vmatprep.subr.mxu0 0.0
  %3188 = vmatpush2.xpose.msra.mxu0 0.0
  %3189 = vmatprep.subr.mxu0 0.0
  %3190 = vmatpush2.xpose.msra.mxu0 0.0
  %3191 = vmatprep.subr.mxu0 0.0
  %3192 = vmatpush2.xpose.msra.mxu0 0.0
  %3193 = vmatprep.subr.mxu0 0.0
  %3194 = vmatpush2.xpose.msra.mxu0 0.0
  %3195 = vmatprep.subr.mxu0 0.0
  %3196 = vmatpush2.xpose.msra.mxu0 0.0
  %3197 = vmatprep.subr.mxu0 0.0
  %3198 = vmatpush2.xpose.msra.mxu0 0.0
  %3199 = vmatprep.subr.mxu0 0.0
  %3200 = vmatpush2.xpose.msra.mxu0 0.0
  %3201 = vmatprep.subr.mxu0 0.0
  %3202 = vmatpush2.xpose.msra.mxu0 0.0
  %3203 = vmatprep.subr.mxu0 0.0
  %3204 = vmatpush2.xpose.msra.mxu0 0.0
  %3205 = vmatprep.subr.mxu0 0.0
  %3206 = vmatpush2.xpose.msra.mxu0 0.0
  %3207 = vmatprep.subr.mxu0 0.0
  %3208 = vmatpush2.xpose.msra.mxu0 0.0
  %3209 = vmatprep.mubr.f32.mxu0 0.0
  %3210 = vmatmul.mubr.f32.gmra.mxu0 %v3141
  %v3211 = vpop.f32.mrf.mxu0
  %v3212 = vadd.f32 0.0, %v3211
  %v3213 = vpop.f32.mrf.mxu0
  %3214 = vdwg.mxu0
  %v3215 = vmul.f32 %v3212, 0.35355338
  %v3216 = vadd.f32 %v3215, %v2871
  %v3217 = vsel %vm214, %v3216, -inf
  %3218 = vmax.xlane.f32.xlu0 %v3217
  %v3219 = vpop.xlane.xlu0 %3218
  %v3220 = vsub.f32 %v3216, %v3219
  %v3221 = vmul.f32 %v3220, 1.442695
  %v3222 = vpow.pop %v3221
  %v3223 = vsel %vm214, %v3222, 0.0
  %3224 = vadd.xlane.f32.xlu0 %v3223
  %v3225 = vpop.xlane.xlu0 %3224
  %v3226 = vrcp.pop %v3225
  %v3227 = vmul.f32 %v3222, %v3226
  %3228 = vrot.lane.b32.xlu0 %v3135, 48
  %v3229 = vpop.permute.xlu0 %3228
  %v3232 = vsel %vm214, %v3227, 0
  %3234 = vmatprep.subr.mxu0 0.0
  %3235 = vmatpush1.msra.mxu0 0.0
  %3236 = vmatprep.subr.mxu0 0.0
  %3237 = vmatpush1.msra.mxu0 0.0
  %3238 = vmatprep.subr.mxu0 0.0
  %3239 = vmatpush1.msra.mxu0 0.0
  %3240 = vmatprep.subr.mxu0 0.0
  %3241 = vmatpush1.msra.mxu0 0.0
  %3242 = vmatprep.subr.mxu0 0.0
  %3243 = vmatpush1.msra.mxu0 0.0
  %3244 = vmatprep.subr.mxu0 0.0
  %3245 = vmatpush1.msra.mxu0 0.0
  %3246 = vmatprep.subr.mxu0 0.0
  %3247 = vmatpush1.msra.mxu0 0.0
  %3248 = vmatprep.subr.mxu0 0.0
  %3249 = vmatpush1.msra.mxu0 0.0
  %3250 = vmatprep.subr.mxu0 0.0
  %3251 = vmatpush1.msra.mxu0 0.0
  %3252 = vmatprep.subr.mxu0 0.0
  %3253 = vmatpush1.msra.mxu0 0.0
  %3254 = vmatprep.subr.mxu0 0.0
  %3255 = vmatpush1.msra.mxu0 0.0
  %3256 = vmatprep.subr.mxu0 0.0
  %3257 = vmatpush1.msra.mxu0 0.0
  %3258 = vmatprep.subr.mxu0 0.0
  %3259 = vmatpush1.msra.mxu0 0.0
  %3260 = vmatprep.subr.mxu0 0.0
  %3261 = vmatpush1.msra.mxu0 0.0
  %3262 = vmatprep.subr.mxu0 0.0
  %3263 = vmatpush1.msra.mxu0 0.0
  %3264 = vmatprep.subr.mxu0 0.0
  %3265 = vmatpush1.msra.mxu0 %v3229
  %3266 = vmatprep.subr.mxu0 0.0
  %3267 = vmatpush2.msra.mxu0 0.0
  %3268 = vmatprep.subr.mxu0 0.0
  %3269 = vmatpush2.msra.mxu0 0.0
  %3270 = vmatprep.subr.mxu0 0.0
  %3271 = vmatpush2.msra.mxu0 0.0
  %3272 = vmatprep.subr.mxu0 0.0
  %3273 = vmatpush2.msra.mxu0 0.0
  %3274 = vmatprep.subr.mxu0 0.0
  %3275 = vmatpush2.msra.mxu0 0.0
  %3276 = vmatprep.subr.mxu0 0.0
  %3277 = vmatpush2.msra.mxu0 0.0
  %3278 = vmatprep.subr.mxu0 0.0
  %3279 = vmatpush2.msra.mxu0 0.0
  %3280 = vmatprep.subr.mxu0 0.0
  %3281 = vmatpush2.msra.mxu0 0.0
  %3282 = vmatprep.subr.mxu0 0.0
  %3283 = vmatpush2.msra.mxu0 0.0
  %3284 = vmatprep.subr.mxu0 0.0
  %3285 = vmatpush2.msra.mxu0 0.0
  %3286 = vmatprep.subr.mxu0 0.0
  %3287 = vmatpush2.msra.mxu0 0.0
  %3288 = vmatprep.subr.mxu0 0.0
  %3289 = vmatpush2.msra.mxu0 0.0
  %3290 = vmatprep.subr.mxu0 0.0
  %3291 = vmatpush2.msra.mxu0 0.0
  %3292 = vmatprep.subr.mxu0 0.0
  %3293 = vmatpush2.msra.mxu0 0.0
  %3294 = vmatprep.subr.mxu0 0.0
  %3295 = vmatpush2.msra.mxu0 0.0
  %3296 = vmatprep.subr.mxu0 0.0
  %3297 = vmatpush2.msra.mxu0 0.0
  %3298 = vmatprep.mubr.f32.mxu0 0.0
  %3299 = vmatmul.mubr.f32.gmra.mxu0 %v3232
  %v3300 = vpop.f32.mrf.mxu0
  %v3301 = vadd.f32 0.0, %v3300
  %v3302 = vpop.f32.mrf.mxu0
  %3303 = vdwg.mxu0
  %3305 = vrot.lane.b32.xlu0 %v3301, 16
  %v3306 = vpop.permute.xlu0 %3305
  %3308 = vst.msk [vmem:[#allocation3 + $0x8] sm:$0xff] %vm731, %v3306
  %v3309 = vld [vmem:[#allocation2 + $0x8] sm:$0xff]
  %3311 = vrot.lane.b32.xlu0 %v3309, 104
  %v3312 = vpop.permute.xlu0 %3311
  %3313 = vrot.lane.b32.xlu0 %v3309, 72
  %v3314 = vpop.permute.xlu0 %3313
  %v3315 = vsel %vm214, %v3312, 0
  %v3317 = vsel %vm214, %v3314, 0
  %3319 = vmatprep.subr.mxu0 0.0
  %3320 = vmatpush1.xpose.msra.mxu0 0.0
  %3321 = vmatprep.subr.mxu0 0.0
  %3322 = vmatpush1.xpose.msra.mxu0 0.0
  %3323 = vmatprep.subr.mxu0 0.0
  %3324 = vmatpush1.xpose.msra.mxu0 0.0
  %3325 = vmatprep.subr.mxu0 0.0
  %3326 = vmatpush1.xpose.msra.mxu0 0.0
  %3327 = vmatprep.subr.mxu0 0.0
  %3328 = vmatpush1.xpose.msra.mxu0 0.0
  %3329 = vmatprep.subr.mxu0 0.0
  %3330 = vmatpush1.xpose.msra.mxu0 0.0
  %3331 = vmatprep.subr.mxu0 0.0
  %3332 = vmatpush1.xpose.msra.mxu0 0.0
  %3333 = vmatprep.subr.mxu0 0.0
  %3334 = vmatpush1.xpose.msra.mxu0 0.0
  %3335 = vmatprep.subr.mxu0 0.0
  %3336 = vmatpush1.xpose.msra.mxu0 0.0
  %3337 = vmatprep.subr.mxu0 0.0
  %3338 = vmatpush1.xpose.msra.mxu0 0.0
  %3339 = vmatprep.subr.mxu0 0.0
  %3340 = vmatpush1.xpose.msra.mxu0 0.0
  %3341 = vmatprep.subr.mxu0 0.0
  %3342 = vmatpush1.xpose.msra.mxu0 0.0
  %3343 = vmatprep.subr.mxu0 0.0
  %3344 = vmatpush1.xpose.msra.mxu0 0.0
  %3345 = vmatprep.subr.mxu0 0.0
  %3346 = vmatpush1.xpose.msra.mxu0 0.0
  %3347 = vmatprep.subr.mxu0 0.0
  %3348 = vmatpush1.xpose.msra.mxu0 0.0
  %3349 = vmatprep.subr.mxu0 0.0
  %3350 = vmatpush1.xpose.msra.mxu0 %v3317
  %3351 = vmatprep.subr.mxu0 0.0
  %3352 = vmatpush2.xpose.msra.mxu0 0.0
  %3353 = vmatprep.subr.mxu0 0.0
  %3354 = vmatpush2.xpose.msra.mxu0 0.0
  %3355 = vmatprep.subr.mxu0 0.0
  %3356 = vmatpush2.xpose.msra.mxu0 0.0
  %3357 = vmatprep.subr.mxu0 0.0
  %3358 = vmatpush2.xpose.msra.mxu0 0.0
  %3359 = vmatprep.subr.mxu0 0.0
  %3360 = vmatpush2.xpose.msra.mxu0 0.0
  %3361 = vmatprep.subr.mxu0 0.0
  %3362 = vmatpush2.xpose.msra.mxu0 0.0
  %3363 = vmatprep.subr.mxu0 0.0
  %3364 = vmatpush2.xpose.msra.mxu0 0.0
  %3365 = vmatprep.subr.mxu0 0.0
  %3366 = vmatpush2.xpose.msra.mxu0 0.0
  %3367 = vmatprep.subr.mxu0 0.0
  %3368 = vmatpush2.xpose.msra.mxu0 0.0
  %3369 = vmatprep.subr.mxu0 0.0
  %3370 = vmatpush2.xpose.msra.mxu0 0.0
  %3371 = vmatprep.subr.mxu0 0.0
  %3372 = vmatpush2.xpose.msra.mxu0 0.0
  %3373 = vmatprep.subr.mxu0 0.0
  %3374 = vmatpush2.xpose.msra.mxu0 0.0
  %3375 = vmatprep.subr.mxu0 0.0
  %3376 = vmatpush2.xpose.msra.mxu0 0.0
  %3377 = vmatprep.subr.mxu0 0.0
  %3378 = vmatpush2.xpose.msra.mxu0 0.0
  %3379 = vmatprep.subr.mxu0 0.0
  %3380 = vmatpush2.xpose.msra.mxu0 0.0
  %3381 = vmatprep.subr.mxu0 0.0
  %3382 = vmatpush2.xpose.msra.mxu0 0.0
  %3383 = vmatprep.mubr.f32.mxu0 0.0
  %3384 = vmatmul.mubr.f32.gmra.mxu0 %v3315
  %v3385 = vpop.f32.mrf.mxu0
  %v3386 = vadd.f32 0.0, %v3385
  %v3387 = vpop.f32.mrf.mxu0
  %3388 = vdwg.mxu0
  %v3389 = vmul.f32 %v3386, 0.35355338
  %v3390 = vadd.f32 %v3389, %v2871
  %v3391 = vsel %vm214, %v3390, -inf
  %3392 = vmax.xlane.f32.xlu0 %v3391
  %v3393 = vpop.xlane.xlu0 %3392
  %v3394 = vsub.f32 %v3390, %v3393
  %v3395 = vmul.f32 %v3394, 1.442695
  %v3396 = vpow.pop %v3395
  %v3397 = vsel %vm214, %v3396, 0.0
  %3398 = vadd.xlane.f32.xlu0 %v3397
  %v3399 = vpop.xlane.xlu0 %3398
  %v3400 = vrcp.pop %v3399
  %v3401 = vmul.f32 %v3396, %v3400
  %3402 = vrot.lane.b32.xlu0 %v3309, 40
  %v3403 = vpop.permute.xlu0 %3402
  %v3406 = vsel %vm214, %v3401, 0
  %3408 = vmatprep.subr.mxu0 0.0
  %3409 = vmatpush1.msra.mxu0 0.0
  %3410 = vmatprep.subr.mxu0 0.0
  %3411 = vmatpush1.msra.mxu0 0.0
  %3412 = vmatprep.subr.mxu0 0.0
  %3413 = vmatpush1.msra.mxu0 0.0
  %3414 = vmatprep.subr.mxu0 0.0
  %3415 = vmatpush1.msra.mxu0 0.0
  %3416 = vmatprep.subr.mxu0 0.0
  %3417 = vmatpush1.msra.mxu0 0.0
  %3418 = vmatprep.subr.mxu0 0.0
  %3419 = vmatpush1.msra.mxu0 0.0
  %3420 = vmatprep.subr.mxu0 0.0
  %3421 = vmatpush1.msra.mxu0 0.0
  %3422 = vmatprep.subr.mxu0 0.0
  %3423 = vmatpush1.msra.mxu0 0.0
  %3424 = vmatprep.subr.mxu0 0.0
  %3425 = vmatpush1.msra.mxu0 0.0
  %3426 = vmatprep.subr.mxu0 0.0
  %3427 = vmatpush1.msra.mxu0 0.0
  %3428 = vmatprep.subr.mxu0 0.0
  %3429 = vmatpush1.msra.mxu0 0.0
  %3430 = vmatprep.subr.mxu0 0.0
  %3431 = vmatpush1.msra.mxu0 0.0
  %3432 = vmatprep.subr.mxu0 0.0
  %3433 = vmatpush1.msra.mxu0 0.0
  %3434 = vmatprep.subr.mxu0 0.0
  %3435 = vmatpush1.msra.mxu0 0.0
  %3436 = vmatprep.subr.mxu0 0.0
  %3437 = vmatpush1.msra.mxu0 0.0
  %3438 = vmatprep.subr.mxu0 0.0
  %3439 = vmatpush1.msra.mxu0 %v3403
  %3440 = vmatprep.subr.mxu0 0.0
  %3441 = vmatpush2.msra.mxu0 0.0
  %3442 = vmatprep.subr.mxu0 0.0
  %3443 = vmatpush2.msra.mxu0 0.0
  %3444 = vmatprep.subr.mxu0 0.0
  %3445 = vmatpush2.msra.mxu0 0.0
  %3446 = vmatprep.subr.mxu0 0.0
  %3447 = vmatpush2.msra.mxu0 0.0
  %3448 = vmatprep.subr.mxu0 0.0
  %3449 = vmatpush2.msra.mxu0 0.0
  %3450 = vmatprep.subr.mxu0 0.0
  %3451 = vmatpush2.msra.mxu0 0.0
  %3452 = vmatprep.subr.mxu0 0.0
  %3453 = vmatpush2.msra.mxu0 0.0
  %3454 = vmatprep.subr.mxu0 0.0
  %3455 = vmatpush2.msra.mxu0 0.0
  %3456 = vmatprep.subr.mxu0 0.0
  %3457 = vmatpush2.msra.mxu0 0.0
  %3458 = vmatprep.subr.mxu0 0.0
  %3459 = vmatpush2.msra.mxu0 0.0
  %3460 = vmatprep.subr.mxu0 0.0
  %3461 = vmatpush2.msra.mxu0 0.0
  %3462 = vmatprep.subr.mxu0 0.0
  %3463 = vmatpush2.msra.mxu0 0.0
  %3464 = vmatprep.subr.mxu0 0.0
  %3465 = vmatpush2.msra.mxu0 0.0
  %3466 = vmatprep.subr.mxu0 0.0
  %3467 = vmatpush2.msra.mxu0 0.0
  %3468 = vmatprep.subr.mxu0 0.0
  %3469 = vmatpush2.msra.mxu0 0.0
  %3470 = vmatprep.subr.mxu0 0.0
  %3471 = vmatpush2.msra.mxu0 0.0
  %3472 = vmatprep.mubr.f32.mxu0 0.0
  %3473 = vmatmul.mubr.f32.gmra.mxu0 %v3406
  %v3474 = vpop.f32.mrf.mxu0
  %v3475 = vadd.f32 0.0, %v3474
  %v3476 = vpop.f32.mrf.mxu0
  %3477 = vdwg.mxu0
  %3479 = vrot.lane.b32.xlu0 %v3475, 24
  %v3480 = vpop.permute.xlu0 %3479
  %3482 = vst.msk [vmem:[#allocation3 + $0x8] sm:$0xff] %vm906, %v3480
  %v3483 = vld [vmem:[#allocation3] sm:$0xff]
  %v3484 = vld [vmem:[#allocation3 + $0x8] sm:$0xff]
  %s3485 = scalar_lea.vmem %s6, 32
  %v3486 = vld [vmem:[%s3485] sm:$0xff]
  %v3487 = vld [vmem:[%s3485 + $0x8] sm:$0xff]
  %v3488 = vld [vmem:[%s3485 + $0x10] sm:$0xff]
  %v3489 = vld [vmem:[%s3485 + $0x18] sm:$0xff]
  %s3490 = scalar_lea.vmem %s7, 1
  %v3491 = vld [vmem:[%s3490] sm:$0x1]
  %v3493 = vlaneseq
  %v3494 = vshrl.u32 %v3493, 7
  %v3495 = vsub.s32 0, %v3494
  %v3496 = vrot.slane %v3491, %v3495
  %v3499 = vsel %vm71, %v3483, 0
  %v3502 = vsel %vm71, %v3484, 0
  %3504 = vmatprep.subr.mxu0 0.0
  %3505 = vmatpush1.msra.mxu0 0.0
  %3506 = vmatprep.subr.mxu0 0.0
  %3507 = vmatpush1.msra.mxu0 0.0
  %3508 = vmatprep.subr.mxu0 0.0
  %3509 = vmatpush1.msra.mxu0 0.0
  %3510 = vmatprep.subr.mxu0 0.0
  %3511 = vmatpush1.msra.mxu0 0.0
  %3512 = vmatprep.subr.mxu0 0.0
  %3513 = vmatpush1.msra.mxu0 0.0
  %3514 = vmatprep.subr.mxu0 0.0
  %3515 = vmatpush1.msra.mxu0 0.0
  %3516 = vmatprep.subr.mxu0 0.0
  %3517 = vmatpush1.msra.mxu0 0.0
  %3518 = vmatprep.subr.mxu0 0.0
  %3519 = vmatpush1.msra.mxu0 0.0
  %3520 = vmatprep.subr.mxu0 0.0
  %3521 = vmatpush1.msra.mxu0 0.0
  %3522 = vmatprep.subr.mxu0 0.0
  %3523 = vmatpush1.msra.mxu0 0.0
  %3524 = vmatprep.subr.mxu0 0.0
  %3525 = vmatpush1.msra.mxu0 0.0
  %3526 = vmatprep.subr.mxu0 0.0
  %3527 = vmatpush1.msra.mxu0 0.0
  %3528 = vmatprep.subr.mxu0 0.0
  %3529 = vmatpush1.msra.mxu0 %v3489
  %3530 = vmatprep.subr.mxu0 0.0
  %3531 = vmatpush1.msra.mxu0 %v3488
  %3532 = vmatprep.subr.mxu0 0.0
  %3533 = vmatpush1.msra.mxu0 %v3487
  %3534 = vmatprep.subr.mxu0 0.0
  %3535 = vmatpush1.msra.mxu0 %v3486
  %3536 = vmatprep.subr.mxu0 0.0
  %3537 = vmatpush2.msra.mxu0 0.0
  %3538 = vmatprep.subr.mxu0 0.0
  %3539 = vmatpush2.msra.mxu0 0.0
  %3540 = vmatprep.subr.mxu0 0.0
  %3541 = vmatpush2.msra.mxu0 0.0
  %3542 = vmatprep.subr.mxu0 0.0
  %3543 = vmatpush2.msra.mxu0 0.0
  %3544 = vmatprep.subr.mxu0 0.0
  %3545 = vmatpush2.msra.mxu0 0.0
  %3546 = vmatprep.subr.mxu0 0.0
  %3547 = vmatpush2.msra.mxu0 0.0
  %3548 = vmatprep.subr.mxu0 0.0
  %3549 = vmatpush2.msra.mxu0 0.0
  %3550 = vmatprep.subr.mxu0 0.0
  %3551 = vmatpush2.msra.mxu0 0.0
  %3552 = vmatprep.subr.mxu0 0.0
  %3553 = vmatpush2.msra.mxu0 0.0
  %3554 = vmatprep.subr.mxu0 0.0
  %3555 = vmatpush2.msra.mxu0 0.0
  %3556 = vmatprep.subr.mxu0 0.0
  %3557 = vmatpush2.msra.mxu0 0.0
  %3558 = vmatprep.subr.mxu0 0.0
  %3559 = vmatpush2.msra.mxu0 0.0
  %3560 = vmatprep.subr.mxu0 0.0
  %3561 = vmatpush2.msra.mxu0 0.0
  %3562 = vmatprep.subr.mxu0 0.0
  %3563 = vmatpush2.msra.mxu0 0.0
  %3564 = vmatprep.subr.mxu0 0.0
  %3565 = vmatpush2.msra.mxu0 0.0
  %3566 = vmatprep.subr.mxu0 0.0
  %3567 = vmatpush2.msra.mxu0 0.0
  %3568 = vmatprep.mubr.f32.mxu0 0.0
  %3569 = vmatmul.mubr.f32.gmra.mxu0 %v3499
  %v3570 = vpop.f32.mrf.mxu0
  %v3571 = vadd.f32 %v3496, %v3570
  %v3572 = vpop.f32.mrf.mxu0
  %3573 = vmatprep.mubr.f32.mxu0 0.0
  %3574 = vmatmul.mubr.f32.gmra.mxu0 %v3502
  %v3575 = vpop.f32.mrf.mxu0
  %v3576 = vadd.f32 %v3496, %v3575
  %v3577 = vpop.f32.mrf.mxu0
  %3578 = vdwg.mxu0
  %v3579 = vadd.f32 %v3571, %v1995
  %v3580 = vadd.f32 %v3576, %v1996
  %s3581 = scalar_lea.vmem %s8, 1
  %v3582 = vld [vmem:[%s3581] sm:$0x1]
  %s3583 = scalar_lea.vmem %s9, 1
  %v3584 = vld [vmem:[%s3583] sm:$0x1]
  %v3585 = vsel %vm71, %v3579, 0.0
  %3586 = vadd.xlane.f32.xlu0 %v3585
  %v3587 = vpop.xlane.xlu0 %3586
  %v3588 = vsel %vm71, %v3580, 0.0
  %3589 = vadd.xlane.f32.xlu0 %v3588
  %v3590 = vpop.xlane.xlu0 %3589
  %v3591 = vmul.f32 %v3587, %v78
  %v3592 = vmul.f32 %v3590, %v78
  %v3593 = vsub.f32 %v3579, %v3591
  %v3594 = vsub.f32 %v3580, %v3592
  %v3595 = vmul.f32 %v3593, %v3593
  %v3596 = vmul.f32 %v3594, %v3594
  %v3597 = vsel %vm71, %v3595, 0.0
  %3598 = vadd.xlane.f32.xlu0 %v3597
  %v3599 = vpop.xlane.xlu0 %3598
  %v3600 = vsel %vm71, %v3596, 0.0
  %3601 = vadd.xlane.f32.xlu0 %v3600
  %v3602 = vpop.xlane.xlu0 %3601
  %v3603 = vmul.f32 %v3599, %v78
  %v3604 = vmul.f32 %v3602, %v78
  %v3605 = vadd.f32 %v3603, 1e-05
  %v3606 = vadd.f32 %v3604, 1e-05
  %v3607 = vrsqrt.pop %v3605
  %v3608 = vrsqrt.pop %v3606
  %v3609 = vmul.f32 %v3593, %v3607
  %v3610 = vmul.f32 %v3594, %v3608
  %v3612 = vlaneseq
  %v3613 = vshrl.u32 %v3612, 7
  %v3614 = vsub.s32 0, %v3613
  %v3615 = vrot.slane %v3582, %v3614
  %v3617 = vmul.f32 %v3609, %v3615
  %v3618 = vmul.f32 %v3610, %v3615
  %v3620 = vlaneseq
  %v3621 = vshrl.u32 %v3620, 7
  %v3622 = vsub.s32 0, %v3621
  %v3623 = vrot.slane %v3584, %v3622
  %v3625 = vadd.f32 %v3617, %v3623
  %v3626 = vadd.f32 %v3618, %v3623
  %s3627 = scalar_lea.vmem %s10, 32
  %v3628 = vld [vmem:[%s3627] sm:$0xff]
  %v3629 = vld [vmem:[%s3627 + $0x8] sm:$0xff]
  %v3630 = vld [vmem:[%s3627 + $0x10] sm:$0xff]
  %v3631 = vld [vmem:[%s3627 + $0x18] sm:$0xff]
  %s3632 = scalar_lea.vmem %s11, 1
  %v3633 = vld [vmem:[%s3632] sm:$0x1]
  %v3635 = vlaneseq
  %v3636 = vshrl.u32 %v3635, 7
  %v3637 = vsub.s32 0, %v3636
  %v3638 = vrot.slane %v3633, %v3637
  %v3641 = vsel %vm71, %v3625, 0
  %v3644 = vsel %vm71, %v3626, 0
  %3646 = vmatprep.subr.mxu0 0.0
  %3647 = vmatpush1.msra.mxu0 0.0
  %3648 = vmatprep.subr.mxu0 0.0
  %3649 = vmatpush1.msra.mxu0 0.0
  %3650 = vmatprep.subr.mxu0 0.0
  %3651 = vmatpush1.msra.mxu0 0.0
  %3652 = vmatprep.subr.mxu0 0.0
  %3653 = vmatpush1.msra.mxu0 0.0
  %3654 = vmatprep.subr.mxu0 0.0
  %3655 = vmatpush1.msra.mxu0 0.0
  %3656 = vmatprep.subr.mxu0 0.0
  %3657 = vmatpush1.msra.mxu0 0.0
  %3658 = vmatprep.subr.mxu0 0.0
  %3659 = vmatpush1.msra.mxu0 0.0
  %3660 = vmatprep.subr.mxu0 0.0
  %3661 = vmatpush1.msra.mxu0 0.0
  %3662 = vmatprep.subr.mxu0 0.0
  %3663 = vmatpush1.msra.mxu0 0.0
  %3664 = vmatprep.subr.mxu0 0.0
  %3665 = vmatpush1.msra.mxu0 0.0
  %3666 = vmatprep.subr.mxu0 0.0
  %3667 = vmatpush1.msra.mxu0 0.0
  %3668 = vmatprep.subr.mxu0 0.0
  %3669 = vmatpush1.msra.mxu0 0.0
  %3670 = vmatprep.subr.mxu0 0.0
  %3671 = vmatpush1.msra.mxu0 %v3631
  %3672 = vmatprep.subr.mxu0 0.0
  %3673 = vmatpush1.msra.mxu0 %v3630
  %3674 = vmatprep.subr.mxu0 0.0
  %3675 = vmatpush1.msra.mxu0 %v3629
  %3676 = vmatprep.subr.mxu0 0.0
  %3677 = vmatpush1.msra.mxu0 %v3628
  %3678 = vmatprep.subr.mxu0 0.0
  %3679 = vmatpush2.msra.mxu0 0.0
  %3680 = vmatprep.subr.mxu0 0.0
  %3681 = vmatpush2.msra.mxu0 0.0
  %3682 = vmatprep.subr.mxu0 0.0
  %3683 = vmatpush2.msra.mxu0 0.0
  %3684 = vmatprep.subr.mxu0 0.0
  %3685 = vmatpush2.msra.mxu0 0.0
  %3686 = vmatprep.subr.mxu0 0.0
  %3687 = vmatpush2.msra.mxu0 0.0
  %3688 = vmatprep.subr.mxu0 0.0
  %3689 = vmatpush2.msra.mxu0 0.0
  %3690 = vmatprep.subr.mxu0 0.0
  %3691 = vmatpush2.msra.mxu0 0.0
  %3692 = vmatprep.subr.mxu0 0.0
  %3693 = vmatpush2.msra.mxu0 0.0
  %3694 = vmatprep.subr.mxu0 0.0
  %3695 = vmatpush2.msra.mxu0 0.0
  %3696 = vmatprep.subr.mxu0 0.0
  %3697 = vmatpush2.msra.mxu0 0.0
  %3698 = vmatprep.subr.mxu0 0.0
  %3699 = vmatpush2.msra.mxu0 0.0
  %3700 = vmatprep.subr.mxu0 0.0
  %3701 = vmatpush2.msra.mxu0 0.0
  %3702 = vmatprep.subr.mxu0 0.0
  %3703 = vmatpush2.msra.mxu0 0.0
  %3704 = vmatprep.subr.mxu0 0.0
  %3705 = vmatpush2.msra.mxu0 0.0
  %3706 = vmatprep.subr.mxu0 0.0
  %3707 = vmatpush2.msra.mxu0 0.0
  %3708 = vmatprep.subr.mxu0 0.0
  %3709 = vmatpush2.msra.mxu0 0.0
  %3710 = vmatprep.mubr.f32.mxu0 0.0
  %3711 = vmatmul.mubr.f32.gmra.mxu0 %v3641
  %v3712 = vpop.f32.mrf.mxu0
  %v3713 = vadd.f32 %v3638, %v3712
  %v3714 = vpop.f32.mrf.mxu0
  %3715 = vmatprep.mubr.f32.mxu0 0.0
  %3716 = vmatmul.mubr.f32.gmra.mxu0 %v3644
  %v3717 = vpop.f32.mrf.mxu0
  %v3718 = vadd.f32 %v3638, %v3717
  %v3719 = vpop.f32.mrf.mxu0
  %3720 = vdwg.mxu0
  %v3721 = vmul.f32 %v3713, 0.5
  %v3722 = vmul.f32 %v3718, 0.5
  %v3723 = vmul.f32 %v3713, 0.044715
  %v3724 = vmul.f32 %v3718, 0.044715
  %v3725 = vmul.f32 %v3723, %v3713
  %v3726 = vmul.f32 %v3724, %v3718
  %v3727 = vmul.f32 %v3725, %v3713
  %v3728 = vmul.f32 %v3726, %v3718
  %v3729 = vadd.f32 %v3713, %v3727
  %v3730 = vadd.f32 %v3718, %v3728
  %v3731 = vmul.f32 %v3729, 0.7978846
  %v3732 = vmul.f32 %v3730, 0.7978846
  %v3733 = vtanh.pop %v3731
  %v3734 = vtanh.pop %v3732
  %v3735 = vadd.f32 %v3733, 1.0
  %v3736 = vadd.f32 %v3734, 1.0
  %v3737 = vmul.f32 %v3721, %v3735
  %v3738 = vmul.f32 %v3722, %v3736
  %s3739 = scalar_lea.vmem %s12, 128
  %v3740 = vld [vmem:[%s3739] sm:$0xff]
  %v3741 = vld [vmem:[%s3739 + $0x8] sm:$0xff]
  %v3742 = vld [vmem:[%s3739 + $0x10] sm:$0xff]
  %v3743 = vld [vmem:[%s3739 + $0x18] sm:$0xff]
  %v3744 = vld [vmem:[%s3739 + $0x20] sm:$0xff]
  %v3745 = vld [vmem:[%s3739 + $0x28] sm:$0xff]
  %v3746 = vld [vmem:[%s3739 + $0x30] sm:$0xff]
  %v3747 = vld [vmem:[%s3739 + $0x38] sm:$0xff]
  %v3748 = vld [vmem:[%s3739 + $0x40] sm:$0xff]
  %v3749 = vld [vmem:[%s3739 + $0x48] sm:$0xff]
  %v3750 = vld [vmem:[%s3739 + $0x50] sm:$0xff]
  %v3751 = vld [vmem:[%s3739 + $0x58] sm:$0xff]
  %v3752 = vld [vmem:[%s3739 + $0x60] sm:$0xff]
  %v3753 = vld [vmem:[%s3739 + $0x68] sm:$0xff]
  %v3754 = vld [vmem:[%s3739 + $0x70] sm:$0xff]
  %v3755 = vld [vmem:[%s3739 + $0x78] sm:$0xff]
  %s3756 = scalar_lea.vmem %s13, 1
  %v3757 = vld [vmem:[%s3756] sm:$0x1]
  %v3759 = vlaneseq
  %v3760 = vshrl.u32 %v3759, 7
  %v3761 = vsub.s32 0, %v3760
  %v3762 = vrot.slane %v3757, %v3761
  %3764 = vmatprep.subr.mxu0 0.0
  %3765 = vmatpush1.msra.mxu0 %v3755
  %3766 = vmatprep.subr.mxu0 0.0
  %3767 = vmatpush1.msra.mxu0 %v3754
  %3768 = vmatprep.subr.mxu0 0.0
  %3769 = vmatpush1.msra.mxu0 %v3753
  %3770 = vmatprep.subr.mxu0 0.0
  %3771 = vmatpush1.msra.mxu0 %v3752
  %3772 = vmatprep.subr.mxu0 0.0
  %3773 = vmatpush1.msra.mxu0 %v3751
  %3774 = vmatprep.subr.mxu0 0.0
  %3775 = vmatpush1.msra.mxu0 %v3750
  %3776 = vmatprep.subr.mxu0 0.0
  %3777 = vmatpush1.msra.mxu0 %v3749
  %3778 = vmatprep.subr.mxu0 0.0
  %3779 = vmatpush1.msra.mxu0 %v3748
  %3780 = vmatprep.subr.mxu0 0.0
  %3781 = vmatpush1.msra.mxu0 %v3747
  %3782 = vmatprep.subr.mxu0 0.0
  %3783 = vmatpush1.msra.mxu0 %v3746
  %3784 = vmatprep.subr.mxu0 0.0
  %3785 = vmatpush1.msra.mxu0 %v3745
  %3786 = vmatprep.subr.mxu0 0.0
  %3787 = vmatpush1.msra.mxu0 %v3744
  %3788 = vmatprep.subr.mxu0 0.0
  %3789 = vmatpush1.msra.mxu0 %v3743
  %3790 = vmatprep.subr.mxu0 0.0
  %3791 = vmatpush1.msra.mxu0 %v3742
  %3792 = vmatprep.subr.mxu0 0.0
  %3793 = vmatpush1.msra.mxu0 %v3741
  %3794 = vmatprep.subr.mxu0 0.0
  %3795 = vmatpush1.msra.mxu0 %v3740
  %3796 = vmatprep.subr.mxu0 0.0
  %3797 = vmatpush2.msra.mxu0 0.0
  %3798 = vmatprep.subr.mxu0 0.0
  %3799 = vmatpush2.msra.mxu0 0.0
  %3800 = vmatprep.subr.mxu0 0.0
  %3801 = vmatpush2.msra.mxu0 0.0
  %3802 = vmatprep.subr.mxu0 0.0
  %3803 = vmatpush2.msra.mxu0 0.0
  %3804 = vmatprep.subr.mxu0 0.0
  %3805 = vmatpush2.msra.mxu0 0.0
  %3806 = vmatprep.subr.mxu0 0.0
  %3807 = vmatpush2.msra.mxu0 0.0
  %3808 = vmatprep.subr.mxu0 0.0
  %3809 = vmatpush2.msra.mxu0 0.0
  %3810 = vmatprep.subr.mxu0 0.0
  %3811 = vmatpush2.msra.mxu0 0.0
  %3812 = vmatprep.subr.mxu0 0.0
  %3813 = vmatpush2.msra.mxu0 0.0
  %3814 = vmatprep.subr.mxu0 0.0
  %3815 = vmatpush2.msra.mxu0 0.0
  %3816 = vmatprep.subr.mxu0 0.0
  %3817 = vmatpush2.msra.mxu0 0.0
  %3818 = vmatprep.subr.mxu0 0.0
  %3819 = vmatpush2.msra.mxu0 0.0
  %3820 = vmatprep.subr.mxu0 0.0
  %3821 = vmatpush2.msra.mxu0 0.0
  %3822 = vmatprep.subr.mxu0 0.0
  %3823 = vmatpush2.msra.mxu0 0.0
  %3824 = vmatprep.subr.mxu0 0.0
  %3825 = vmatpush2.msra.mxu0 0.0
  %3826 = vmatprep.subr.mxu0 0.0
  %3827 = vmatpush2.msra.mxu0 0.0
  %3828 = vmatprep.mubr.f32.mxu0 0.0
  %3829 = vmatmul.mubr.f32.gmra.mxu0 %v3737
  %v3830 = vpop.f32.mrf.mxu0
  %v3831 = vadd.f32 %v3762, %v3830
  %v3832 = vpop.f32.mrf.mxu0
  %3833 = vmatprep.mubr.f32.mxu0 0.0
  %3834 = vmatmul.mubr.f32.gmra.mxu0 %v3738
  %v3835 = vpop.f32.mrf.mxu0
  %v3836 = vadd.f32 %v3762, %v3835
  %v3837 = vpop.f32.mrf.mxu0
  %3838 = vdwg.mxu0
  %v3839 = vadd.f32 %v3831, %v3625
  %v3840 = vadd.f32 %v3836, %v3626
  %s3841 = scalar_lea.vmem %s14, 1
  %v3842 = vld [vmem:[%s3841] sm:$0x1]
  %s3843 = scalar_lea.vmem %s15, 1
  %v3844 = vld [vmem:[%s3843] sm:$0x1]
  %v3845 = vsel %vm71, %v3839, 0.0
  %3846 = vadd.xlane.f32.xlu0 %v3845
  %v3847 = vpop.xlane.xlu0 %3846
  %v3848 = vsel %vm71, %v3840, 0.0
  %3849 = vadd.xlane.f32.xlu0 %v3848
  %v3850 = vpop.xlane.xlu0 %3849
  %v3851 = vmul.f32 %v3847, %v78
  %v3852 = vmul.f32 %v3850, %v78
  %v3853 = vsub.f32 %v3839, %v3851
  %v3854 = vsub.f32 %v3840, %v3852
  %v3855 = vmul.f32 %v3853, %v3853
  %v3856 = vmul.f32 %v3854, %v3854
  %v3857 = vsel %vm71, %v3855, 0.0
  %3858 = vadd.xlane.f32.xlu0 %v3857
  %v3859 = vpop.xlane.xlu0 %3858
  %v3860 = vsel %vm71, %v3856, 0.0
  %3861 = vadd.xlane.f32.xlu0 %v3860
  %v3862 = vpop.xlane.xlu0 %3861
  %v3863 = vmul.f32 %v3859, %v78
  %v3864 = vmul.f32 %v3862, %v78
  %v3865 = vadd.f32 %v3863, 1e-05
  %v3866 = vadd.f32 %v3864, 1e-05
  %v3867 = vrsqrt.pop %v3865
  %v3868 = vrsqrt.pop %v3866
  %v3869 = vmul.f32 %v3853, %v3867
  %v3870 = vmul.f32 %v3854, %v3868
  %v3872 = vlaneseq
  %v3873 = vshrl.u32 %v3872, 7
  %v3874 = vsub.s32 0, %v3873
  %v3875 = vrot.slane %v3842, %v3874
  %v3877 = vmul.f32 %v3869, %v3875
  %v3878 = vmul.f32 %v3870, %v3875
  %v3880 = vlaneseq
  %v3881 = vshrl.u32 %v3880, 7
  %v3882 = vsub.s32 0, %v3881
  %v3883 = vrot.slane %v3844, %v3882
  %v3885 = vadd.f32 %v3877, %v3883
  %v3886 = vadd.f32 %v3878, %v3883
  %3887 = vst.msk [vmem:[#allocation3] sm:$0xff] %vm71, %v3885
  %3888 = vst.msk [vmem:[#allocation3 + $0x8] sm:$0xff] %vm71, %v3886
  %v3889 = vld [vmem:[#allocation3] sm:$0x1]
  %v3890 = vld [vmem:[%s16] sm:$0xff]
  %v3891 = vld [vmem:[%s16 + $0x8] sm:$0xff]
  %v3892 = vld [vmem:[%s16 + $0x10] sm:$0xff]
  %v3893 = vld [vmem:[%s16 + $0x18] sm:$0xff]
  %v3894 = vld [vmem:[%s17] sm:$0x1]
  %v3896 = vsel %vm71, %v3889, 0
  %3898 = vmatprep.subr.mxu0 0.0
  %3899 = vmatpush1.msra.mxu0 0.0
  %3900 = vmatprep.subr.mxu0 0.0
  %3901 = vmatpush1.msra.mxu0 0.0
  %3902 = vmatprep.subr.mxu0 0.0
  %3903 = vmatpush1.msra.mxu0 0.0
  %3904 = vmatprep.subr.mxu0 0.0
  %3905 = vmatpush1.msra.mxu0 0.0
  %3906 = vmatprep.subr.mxu0 0.0
  %3907 = vmatpush1.msra.mxu0 0.0
  %3908 = vmatprep.subr.mxu0 0.0
  %3909 = vmatpush1.msra.mxu0 0.0
  %3910 = vmatprep.subr.mxu0 0.0
  %3911 = vmatpush1.msra.mxu0 0.0
  %3912 = vmatprep.subr.mxu0 0.0
  %3913 = vmatpush1.msra.mxu0 0.0
  %3914 = vmatprep.subr.mxu0 0.0
  %3915 = vmatpush1.msra.mxu0 0.0
  %3916 = vmatprep.subr.mxu0 0.0
  %3917 = vmatpush1.msra.mxu0 0.0
  %3918 = vmatprep.subr.mxu0 0.0
  %3919 = vmatpush1.msra.mxu0 0.0
  %3920 = vmatprep.subr.mxu0 0.0
  %3921 = vmatpush1.msra.mxu0 0.0
  %3922 = vmatprep.subr.mxu0 0.0
  %3923 = vmatpush1.msra.mxu0 %v3893
  %3924 = vmatprep.subr.mxu0 0.0
  %3925 = vmatpush1.msra.mxu0 %v3892
  %3926 = vmatprep.subr.mxu0 0.0
  %3927 = vmatpush1.msra.mxu0 %v3891
  %3928 = vmatprep.subr.mxu0 0.0
  %3929 = vmatpush1.msra.mxu0 %v3890
  %3930 = vmatprep.subr.mxu0 0.0
  %3931 = vmatpush2.msra.mxu0 0.0
  %3932 = vmatprep.subr.mxu0 0.0
  %3933 = vmatpush2.msra.mxu0 0.0
  %3934 = vmatprep.subr.mxu0 0.0
  %3935 = vmatpush2.msra.mxu0 0.0
  %3936 = vmatprep.subr.mxu0 0.0
  %3937 = vmatpush2.msra.mxu0 0.0
  %3938 = vmatprep.subr.mxu0 0.0
  %3939 = vmatpush2.msra.mxu0 0.0
  %3940 = vmatprep.subr.mxu0 0.0
  %3941 = vmatpush2.msra.mxu0 0.0
  %3942 = vmatprep.subr.mxu0 0.0
  %3943 = vmatpush2.msra.mxu0 0.0
  %3944 = vmatprep.subr.mxu0 0.0
  %3945 = vmatpush2.msra.mxu0 0.0
  %3946 = vmatprep.subr.mxu0 0.0
  %3947 = vmatpush2.msra.mxu0 0.0
  %3948 = vmatprep.subr.mxu0 0.0
  %3949 = vmatpush2.msra.mxu0 0.0
  %3950 = vmatprep.subr.mxu0 0.0
  %3951 = vmatpush2.msra.mxu0 0.0
  %3952 = vmatprep.subr.mxu0 0.0
  %3953 = vmatpush2.msra.mxu0 0.0
  %3954 = vmatprep.subr.mxu0 0.0
  %3955 = vmatpush2.msra.mxu0 0.0
  %3956 = vmatprep.subr.mxu0 0.0
  %3957 = vmatpush2.msra.mxu0 0.0
  %3958 = vmatprep.subr.mxu0 0.0
  %3959 = vmatpush2.msra.mxu0 0.0
  %3960 = vmatprep.subr.mxu0 0.0
  %3961 = vmatpush2.msra.mxu0 0.0
  %3962 = vmatprep.mubr.f32.mxu0 0.0
  %3963 = vmatmul.mubr.f32.gmra.mxu0 %v3896
  %v3964 = vpop.f32.mrf.mxu0
  %v3965 = vadd.f32 %v3894, %v3964
  %v3966 = vpop.f32.mrf.mxu0
  %3967 = vdwg.mxu0
  %v3968 = vtanh.pop %v3965
  %v3969 = vld [vmem:[%s18] sm:$0x1]
  %v3970 = vmul.f32 %v3968, %v3969
  %vm3971 = vcmask 253952
  %v3972 = vsel %vm3971, %v3970, 0.0
  %3973 = vadd.xlane.f32.xlu0 %v3972
  %v3974 = vpop.xlane.xlu0 %3973
  %v3975 = vld [vmem:[#allocation4] sm:$0x1]
  %v3976 = vadd.f32 %v3974, %v3975
  %v3977 = vxor.u32 %v3976, 2147483648
  %v3978 = vmul.f32 %v3977, 1.442695
  %v3979 = vpow.pop %v3978
  %v3980 = vadd.f32 %v3979, 1.0
  %v3981 = vrcp.pop %v3980
  %v3982 = vmul.f32 1.0, %v3981
  %vm3983 = vcmask 0
  %3984 = vst.msk [vmem:[%s20] sm:$0x1] %vm3983, %v3982
  %v3985 = vld [vmem:[#allocation3 + $0x8] sm:$0x1]
  %v3986 = vld [vmem:[%s16] sm:$0xff]
  %v3987 = vld [vmem:[%s16 + $0x8] sm:$0xff]
  %v3988 = vld [vmem:[%s16 + $0x10] sm:$0xff]
  %v3989 = vld [vmem:[%s16 + $0x18] sm:$0xff]
  %v3990 = vld [vmem:[%s17] sm:$0x1]
  %v3992 = vsel %vm71, %v3985, 0
  %3994 = vmatprep.subr.mxu0 0.0
  %3995 = vmatpush1.msra.mxu0 0.0
  %3996 = vmatprep.subr.mxu0 0.0
  %3997 = vmatpush1.msra.mxu0 0.0
  %3998 = vmatprep.subr.mxu0 0.0
  %3999 = vmatpush1.msra.mxu0 0.0
  %4000 = vmatprep.subr.mxu0 0.0
  %4001 = vmatpush1.msra.mxu0 0.0
  %4002 = vmatprep.subr.mxu0 0.0
  %4003 = vmatpush1.msra.mxu0 0.0
  %4004 = vmatprep.subr.mxu0 0.0
  %4005 = vmatpush1.msra.mxu0 0.0
  %4006 = vmatprep.subr.mxu0 0.0
  %4007 = vmatpush1.msra.mxu0 0.0
  %4008 = vmatprep.subr.mxu0 0.0
  %4009 = vmatpush1.msra.mxu0 0.0
  %4010 = vmatprep.subr.mxu0 0.0
  %4011 = vmatpush1.msra.mxu0 0.0
  %4012 = vmatprep.subr.mxu0 0.0
  %4013 = vmatpush1.msra.mxu0 0.0
  %4014 = vmatprep.subr.mxu0 0.0
  %4015 = vmatpush1.msra.mxu0 0.0
  %4016 = vmatprep.subr.mxu0 0.0
  %4017 = vmatpush1.msra.mxu0 0.0
  %4018 = vmatprep.subr.mxu0 0.0
  %4019 = vmatpush1.msra.mxu0 %v3989
  %4020 = vmatprep.subr.mxu0 0.0
  %4021 = vmatpush1.msra.mxu0 %v3988
  %4022 = vmatprep.subr.mxu0 0.0
  %4023 = vmatpush1.msra.mxu0 %v3987
  %4024 = vmatprep.subr.mxu0 0.0
  %4025 = vmatpush1.msra.mxu0 %v3986
  %4026 = vmatprep.subr.mxu0 0.0
  %4027 = vmatpush2.msra.mxu0 0.0
  %4028 = vmatprep.subr.mxu0 0.0
  %4029 = vmatpush2.msra.mxu0 0.0
  %4030 = vmatprep.subr.mxu0 0.0
  %4031 = vmatpush2.msra.mxu0 0.0
  %4032 = vmatprep.subr.mxu0 0.0
  %4033 = vmatpush2.msra.mxu0 0.0
  %4034 = vmatprep.subr.mxu0 0.0
  %4035 = vmatpush2.msra.mxu0 0.0
  %4036 = vmatprep.subr.mxu0 0.0
  %4037 = vmatpush2.msra.mxu0 0.0
  %4038 = vmatprep.subr.mxu0 0.0
  %4039 = vmatpush2.msra.mxu0 0.0
  %4040 = vmatprep.subr.mxu0 0.0
  %4041 = vmatpush2.msra.mxu0 0.0
  %4042 = vmatprep.subr.mxu0 0.0
  %4043 = vmatpush2.msra.mxu0 0.0
  %4044 = vmatprep.subr.mxu0 0.0
  %4045 = vmatpush2.msra.mxu0 0.0
  %4046 = vmatprep.subr.mxu0 0.0
  %4047 = vmatpush2.msra.mxu0 0.0
  %4048 = vmatprep.subr.mxu0 0.0
  %4049 = vmatpush2.msra.mxu0 0.0
  %4050 = vmatprep.subr.mxu0 0.0
  %4051 = vmatpush2.msra.mxu0 0.0
  %4052 = vmatprep.subr.mxu0 0.0
  %4053 = vmatpush2.msra.mxu0 0.0
  %4054 = vmatprep.subr.mxu0 0.0
  %4055 = vmatpush2.msra.mxu0 0.0
  %4056 = vmatprep.subr.mxu0 0.0
  %4057 = vmatpush2.msra.mxu0 0.0
  %4058 = vmatprep.mubr.f32.mxu0 0.0
  %4059 = vmatmul.mubr.f32.gmra.mxu0 %v3992
  %v4060 = vpop.f32.mrf.mxu0
  %v4061 = vadd.f32 %v3990, %v4060
  %v4062 = vpop.f32.mrf.mxu0
  %4063 = vdwg.mxu0
  %v4064 = vtanh.pop %v4061
  %v4065 = vld [vmem:[%s18] sm:$0x1]
  %v4066 = vmul.f32 %v4064, %v4065
  %v4067 = vsel %vm3971, %v4066, 0.0
  %4068 = vadd.xlane.f32.xlu0 %v4067
  %v4069 = vpop.xlane.xlu0 %4068
  %v4070 = vld [vmem:[#allocation4] sm:$0x1]
  %v4071 = vadd.f32 %v4069, %v4070
  %v4072 = vxor.u32 %v4071, 2147483648
  %v4073 = vmul.f32 %v4072, 1.442695
  %v4074 = vpow.pop %v4073
  %v4075 = vadd.f32 %v4074, 1.0
  %v4076 = vrcp.pop %v4075
  %v4077 = vmul.f32 1.0, %v4076
  %4078 = vst.msk [vmem:[%s20 + $0x1] sm:$0x1] %vm3983, %v4077
  // Predicated region
  $region82: #{roberta_xlm_forward.1} parent=0 // pred_check
    _
  $region83: #{roberta_xlm_forward.1} parent=0 // pred_check_branch
    %4080 = sbr.rel (0) target = $region85
  $region84: #{roberta_xlm_forward.1} parent=0 // pred_region
    _
  $region85: #{roberta_xlm_forward.1} parent=0 // pred_fallthru
    _
  // Predicated region
  $region86: #{roberta_xlm_forward.1} parent=0 // pred_check
    _
  $region87: #{roberta_xlm_forward.1} parent=0 // pred_check_branch
    %4082 = sbr.rel (0) target = $region89
  $region88: #{roberta_xlm_forward.1} parent=0 // pred_region
    _
  $region89: #{roberta_xlm_forward.1} parent=0 // pred_fallthru
    _

</llo_original>
